<compile_context>
chip_gen: v6e
topology: v6e:2x2x1
jax: 0.10.0
libtpu: 0.0.40
codegen_flags: <defaults>
</compile_context>

<pallas_src>
import jax
import jax.numpy as jnp
from jax import lax
from jax.experimental import pallas as pl
from jax.experimental.pallas import tpu as pltpu

SEQ = 28
D_IN = 28
HIDDEN = 128
N_CLASSES = 10
OUT_PAD = 128          # lane-dense head width (cols 10..127 are zero)
MAX_TB = 256           # max batch rows per grid step


def _rnn_kernel(x_ref, wih0_ref, whh0_ref, b0_ref,
                w1_ref, b1_ref, wlin_ref, blin_ref,
                out_ref,
                xproj_ref):
    TB = x_ref.shape[1]

    # ---- prologue: layer-0 input projection for the whole sequence (1 matmul)
    x_flat = x_ref[...].reshape(SEQ * TB, D_IN)
    xp = (jnp.dot(x_flat, wih0_ref[...], preferred_element_type=jnp.float32)
          + b0_ref[...])
    xproj_ref[...] = xp.reshape(SEQ, TB, HIDDEN)

    # hoist bias broadcast out of the recurrence
    b1_full = jnp.broadcast_to(b1_ref[...], (TB, HIDDEN))

    def step(t, carry):
        h0_prev, h1_prev = carry
        # layer 0: h0 = tanh(xproj[t] + h0_prev @ Whh0)
        h0 = jnp.tanh(
            xproj_ref[t]
            + jnp.dot(h0_prev, whh0_ref[...], preferred_element_type=jnp.float32))
        # layer 1 (fused K=256): h1 = tanh([h0 | h1_prev] @ [Wih1; Whh1] + b1)
        h01 = jnp.concatenate([h0, h1_prev], axis=-1)            # (TB, 256)
        h1 = jnp.tanh(
            jnp.dot(h01, w1_ref[...], preferred_element_type=jnp.float32)
            + b1_full)
        return (h0, h1)

    h_init = (jnp.zeros((TB, HIDDEN), jnp.float32),
              jnp.zeros((TB, HIDDEN), jnp.float32))
    _, h1_last = lax.fori_loop(0, SEQ, step, h_init, unroll=True)

    # linear head (lane-dense padded output)
    out_ref[...] = (
        jnp.dot(h1_last, wlin_ref[...], preferred_element_type=jnp.float32)
        + blin_ref[...])


@jax.jit
def rnn_model_forward(x, params):
    """x: any shape reshapeable to (-1, 28, 28), float32. Returns (B, 10)."""
    x = x.reshape(-1, SEQ, D_IN).astype(jnp.float32)
    B = x.shape[0]

    # batch tiling: sublane-aligned, tiled across a parallel grid axis
    B_pad = max(8, ((B + 7) // 8) * 8)
    TB = min(B_pad, MAX_TB)
    B_pad = ((B_pad + TB - 1) // TB) * TB
    grid = (B_pad // TB,)

    x_pad = jnp.zeros((B_pad, SEQ, D_IN), jnp.float32).at[:B].set(x)
    x_seq = jnp.transpose(x_pad, (1, 0, 2))                      # (SEQ, B_pad, D_IN)

    (wih0, whh0, b0, wih1, whh1, b1, wlin, blin) = params
    # fuse layer-1 weights and lane-pad the head
    w1 = jnp.concatenate([wih1, whh1], axis=0)                   # (256, 128)
    wlin_pad = jnp.zeros((HIDDEN, OUT_PAD), jnp.float32).at[:, :N_CLASSES].set(wlin)
    blin_pad = jnp.zeros((1, OUT_PAD), jnp.float32).at[:, :N_CLASSES].set(blin)

    out = pl.pallas_call(
        _rnn_kernel,
        out_shape=jax.ShapeDtypeStruct((B_pad, OUT_PAD), jnp.float32),
        grid=grid,
        in_specs=[
            pl.BlockSpec((SEQ, TB, D_IN), lambda b: (0, b, 0)),   # x (time-major)
            pl.BlockSpec((D_IN, HIDDEN), lambda b: (0, 0)),       # Wih0
            pl.BlockSpec((HIDDEN, HIDDEN), lambda b: (0, 0)),     # Whh0
            pl.BlockSpec((1, HIDDEN), lambda b: (0, 0)),          # b0 (b_ih+b_hh)
            pl.BlockSpec((2 * HIDDEN, HIDDEN), lambda b: (0, 0)), # [Wih1; Whh1]
            pl.BlockSpec((1, HIDDEN), lambda b: (0, 0)),          # b1 (b_ih+b_hh)
            pl.BlockSpec((HIDDEN, OUT_PAD), lambda b: (0, 0)),    # Wlin (padded)
            pl.BlockSpec((1, OUT_PAD), lambda b: (0, 0)),         # blin (padded)
        ],
        out_specs=pl.BlockSpec((TB, OUT_PAD), lambda b: (b, 0)),
        scratch_shapes=[
            pltpu.VMEM((SEQ, TB, HIDDEN), jnp.float32),           # xproj
        ],
        compiler_params=pltpu.CompilerParams(
            dimension_semantics=("parallel",)),
    )(x_seq, wih0, whh0, b0, w1, b1, wlin_pad, blin_pad)

    return out[:B, :N_CLASSES]


def init_params(key):
    """Deterministic init mirroring PyTorch shapes; weights stored transposed
    (in_features, out_features). RNN biases are pre-summed (b_ih + b_hh)."""
    ks = jax.random.split(key, 12)
    bound = 1.0 / jnp.sqrt(HIDDEN)
    u = lambda k, shape: jax.random.uniform(k, shape, jnp.float32, -bound, bound)

    wih0 = u(ks[0], (D_IN, HIDDEN))
    whh0 = u(ks[1], (HIDDEN, HIDDEN))
    b0 = u(ks[2], (1, HIDDEN)) + u(ks[3], (1, HIDDEN))
    wih1 = u(ks[4], (HIDDEN, HIDDEN))
    whh1 = u(ks[5], (HIDDEN, HIDDEN))
    b1 = u(ks[6], (1, HIDDEN)) + u(ks[7], (1, HIDDEN))
    wlin = u(ks[8], (HIDDEN, N_CLASSES))
    blin = u(ks[9], (1, N_CLASSES))
    return (wih0, whh0, b0, wih1, whh1, b1, wlin, blin)


def reference_forward(x, params):
    """Pure-JAX reference with identical semantics (for validation)."""
    (wih0, whh0, b0, wih1, whh1, b1, wlin, blin) = params
    x = x.reshape(-1, SEQ, D_IN).astype(jnp.float32)
    B = x.shape[0]
    h0 = jnp.zeros((B, HIDDEN), jnp.float32)
    h1 = jnp.zeros((B, HIDDEN), jnp.float32)
    for t in range(SEQ):
        xt = x[:, t, :]
        h0 = jnp.tanh(xt @ wih0 + h0 @ whh0 + b0)
        h1 = jnp.tanh(h0 @ wih1 + h1 @ whh1 + b1)
    return h1 @ wlin + blin


if __name__ == "__main__":
    key = jax.random.PRNGKey(0)
    pkey, xkey = jax.random.split(key)
    params = init_params(pkey)

    # MNIST-like input: batch=2, (1, 28, 28) images -> reshaped to (2, 28, 28)
    x = jax.random.normal(xkey, (2, 1, 28, 28), jnp.float32)

    out = rnn_model_forward(x, params)
    out = jax.block_until_ready(out)

    ref = reference_forward(x, params)
    assert out.shape == (2, N_CLASSES)
    assert jnp.allclose(out, ref, atol=1e-4, rtol=1e-4), "mismatch vs reference"

    print("KERNEL_OK")
</pallas_src>

<mosaic_0001>
module attributes {stable_mosaic.version = 11 : i64} {
  func.func @_rnn_kernel(%arg0: i32, %arg1: memref<28x8x28xf32, #tpu.memory_space<vmem>>, %arg2: memref<28x128xf32, #tpu.memory_space<vmem>>, %arg3: memref<128x128xf32, #tpu.memory_space<vmem>>, %arg4: memref<1x128xf32, #tpu.memory_space<vmem>>, %arg5: memref<256x128xf32, #tpu.memory_space<vmem>>, %arg6: memref<1x128xf32, #tpu.memory_space<vmem>>, %arg7: memref<128x128xf32, #tpu.memory_space<vmem>>, %arg8: memref<1x128xf32, #tpu.memory_space<vmem>>, %arg9: memref<8x128xf32, #tpu.memory_space<vmem>>, %arg10: memref<28x8x128xf32, #tpu.memory_space<vmem>>) attributes {dimension_semantics = [#tpu.dimension_semantics<parallel>], iteration_bounds = array<i64: 1>, scalar_prefetch = 0 : i64, scratch_operands = 1 : i64, tpu.core_type = #tpu.core_type<tc>, window_params = [{transform_indices = @transform_0, window_bounds = array<i64: 28, 8, 28>}, {pipeline_mode = #tpu.pipeline_mode<synchronous>, transform_indices = @transform_1, window_bounds = array<i64: 28, 128>}, {pipeline_mode = #tpu.pipeline_mode<synchronous>, transform_indices = @transform_2, window_bounds = array<i64: 128, 128>}, {pipeline_mode = #tpu.pipeline_mode<synchronous>, transform_indices = @transform_3, window_bounds = array<i64: 1, 128>}, {pipeline_mode = #tpu.pipeline_mode<synchronous>, transform_indices = @transform_4, window_bounds = array<i64: 256, 128>}, {pipeline_mode = #tpu.pipeline_mode<synchronous>, transform_indices = @transform_5, window_bounds = array<i64: 1, 128>}, {pipeline_mode = #tpu.pipeline_mode<synchronous>, transform_indices = @transform_6, window_bounds = array<i64: 128, 128>}, {pipeline_mode = #tpu.pipeline_mode<synchronous>, transform_indices = @transform_7, window_bounds = array<i64: 1, 128>}, {transform_indices = @transform_8, window_bounds = array<i64: 8, 128>}]} {
    %c0 = arith.constant 0 : index
    %c0_0 = arith.constant 0 : index
    %c0_1 = arith.constant 0 : index
    %0 = vector.load %arg1[%c0, %c0_0, %c0_1] : memref<28x8x28xf32, #tpu.memory_space<vmem>>, vector<28x8x28xf32>
    %1 = vector.shape_cast %0 : vector<28x8x28xf32> to vector<224x28xf32>
    %c0_2 = arith.constant 0 : index
    %c0_3 = arith.constant 0 : index
    %2 = vector.load %arg2[%c0_2, %c0_3] : memref<28x128xf32, #tpu.memory_space<vmem>>, vector<28x128xf32>
    %cst = arith.constant dense<0.000000e+00> : vector<224x128xf32>
    %3 = tpu.matmul %1, %2, %cst {dimension_numbers = #tpu.dot_dimension_numbers<[1], [0], [0], [1], [0, 0, 1, 1], [], []>} : vector<224x28xf32>, vector<28x128xf32>, vector<224x128xf32> -> vector<224x128xf32>
    %c0_4 = arith.constant 0 : index
    %c0_5 = arith.constant 0 : index
    %4 = vector.load %arg4[%c0_4, %c0_5] : memref<1x128xf32, #tpu.memory_space<vmem>>, vector<1x128xf32>
    %5 = vector.broadcast %4 : vector<1x128xf32> to vector<224x128xf32>
    %6 = arith.addf %3, %5 : vector<224x128xf32>
    %7 = vector.shape_cast %6 : vector<224x128xf32> to vector<28x8x128xf32>
    %c0_6 = arith.constant 0 : index
    %c0_7 = arith.constant 0 : index
    %c0_8 = arith.constant 0 : index
    %8 = vector.load %arg10[%c0_6, %c0_7, %c0_8] : memref<28x8x128xf32, #tpu.memory_space<vmem>>, vector<28x8x128xf32>
    tpu.vector_store %arg10[%c0_6, %c0_7, %c0_8], %7 {strides = array<i32>} : memref<28x8x128xf32, #tpu.memory_space<vmem>>, vector<28x8x128xf32>,
    %c0_9 = arith.constant 0 : index
    %c0_10 = arith.constant 0 : index
    %9 = vector.load %arg6[%c0_9, %c0_10] : memref<1x128xf32, #tpu.memory_space<vmem>>, vector<1x128xf32>
    %10 = vector.shape_cast %9 : vector<1x128xf32> to vector<1x128xf32>
    %11 = vector.broadcast %10 : vector<1x128xf32> to vector<8x128xf32>
    %cst_11 = arith.constant 0.000000e+00 : f32
    %12 = vector.broadcast %cst_11 : f32 to vector<8x128xf32>
    %cst_12 = arith.constant 0.000000e+00 : f32
    %13 = vector.broadcast %cst_12 : f32 to vector<8x128xf32>
    %c0_i32 = arith.constant 0 : i32
    %14 = arith.index_cast %c0_i32 : i32 to index
    %c0_13 = arith.constant 0 : index
    %c0_14 = arith.constant 0 : index
    %15 = vector.load %arg10[%14, %c0_13, %c0_14] : memref<28x8x128xf32, #tpu.memory_space<vmem>>, vector<1x8x128xf32>
    %16 = vector.shape_cast %15 : vector<1x8x128xf32> to vector<8x128xf32>
    %c0_15 = arith.constant 0 : index
    %c0_16 = arith.constant 0 : index
    %17 = vector.load %arg3[%c0_15, %c0_16] : memref<128x128xf32, #tpu.memory_space<vmem>>, vector<128x128xf32>
    %cst_17 = arith.constant dense<0.000000e+00> : vector<8x128xf32>
    %18 = tpu.matmul %12, %17, %cst_17 {dimension_numbers = #tpu.dot_dimension_numbers<[1], [0], [0], [1], [0, 0, 1, 1], [], []>} : vector<8x128xf32>, vector<128x128xf32>, vector<8x128xf32> -> vector<8x128xf32>
    %19 = arith.addf %16, %18 : vector<8x128xf32>
    %20 = math.tanh %19 : vector<8x128xf32>
    %21 = tpu.concatenate %20, %13 in 1 : vector<8x128xf32>, vector<8x128xf32> -> vector<8x256xf32>
    %c0_18 = arith.constant 0 : index
    %c0_19 = arith.constant 0 : index
    %22 = vector.load %arg5[%c0_18, %c0_19] : memref<256x128xf32, #tpu.memory_space<vmem>>, vector<256x128xf32>
    %cst_20 = arith.constant dense<0.000000e+00> : vector<8x128xf32>
    %23 = tpu.matmul %21, %22, %cst_20 {dimension_numbers = #tpu.dot_dimension_numbers<[1], [0], [0], [1], [0, 0, 1, 1], [], []>} : vector<8x256xf32>, vector<256x128xf32>, vector<8x128xf32> -> vector<8x128xf32>
    %24 = arith.addf %23, %11 : vector<8x128xf32>
    %25 = math.tanh %24 : vector<8x128xf32>
    %c1_i32 = arith.constant 1 : i32
    %26 = arith.index_cast %c1_i32 : i32 to index
    %c0_21 = arith.constant 0 : index
    %c0_22 = arith.constant 0 : index
    %27 = vector.load %arg10[%26, %c0_21, %c0_22] : memref<28x8x128xf32, #tpu.memory_space<vmem>>, vector<1x8x128xf32>
    %28 = vector.shape_cast %27 : vector<1x8x128xf32> to vector<8x128xf32>
    %c0_23 = arith.constant 0 : index
    %c0_24 = arith.constant 0 : index
    %29 = vector.load %arg3[%c0_23, %c0_24] : memref<128x128xf32, #tpu.memory_space<vmem>>, vector<128x128xf32>
    %cst_25 = arith.constant dense<0.000000e+00> : vector<8x128xf32>
    %30 = tpu.matmul %20, %29, %cst_25 {dimension_numbers = #tpu.dot_dimension_numbers<[1], [0], [0], [1], [0, 0, 1, 1], [], []>} : vector<8x128xf32>, vector<128x128xf32>, vector<8x128xf32> -> vector<8x128xf32>
    %31 = arith.addf %28, %30 : vector<8x128xf32>
    %32 = math.tanh %31 : vector<8x128xf32>
    %33 = tpu.concatenate %32, %25 in 1 : vector<8x128xf32>, vector<8x128xf32> -> vector<8x256xf32>
    %c0_26 = arith.constant 0 : index
    %c0_27 = arith.constant 0 : index
    %34 = vector.load %arg5[%c0_26, %c0_27] : memref<256x128xf32, #tpu.memory_space<vmem>>, vector<256x128xf32>
    %cst_28 = arith.constant dense<0.000000e+00> : vector<8x128xf32>
    %35 = tpu.matmul %33, %34, %cst_28 {dimension_numbers = #tpu.dot_dimension_numbers<[1], [0], [0], [1], [0, 0, 1, 1], [], []>} : vector<8x256xf32>, vector<256x128xf32>, vector<8x128xf32> -> vector<8x128xf32>
    %36 = arith.addf %35, %11 : vector<8x128xf32>
    %37 = math.tanh %36 : vector<8x128xf32>
    %c2_i32 = arith.constant 2 : i32
    %38 = arith.index_cast %c2_i32 : i32 to index
    %c0_29 = arith.constant 0 : index
    %c0_30 = arith.constant 0 : index
    %39 = vector.load %arg10[%38, %c0_29, %c0_30] : memref<28x8x128xf32, #tpu.memory_space<vmem>>, vector<1x8x128xf32>
    %40 = vector.shape_cast %39 : vector<1x8x128xf32> to vector<8x128xf32>
    %c0_31 = arith.constant 0 : index
    %c0_32 = arith.constant 0 : index
    %41 = vector.load %arg3[%c0_31, %c0_32] : memref<128x128xf32, #tpu.memory_space<vmem>>, vector<128x128xf32>
    %cst_33 = arith.constant dense<0.000000e+00> : vector<8x128xf32>
    %42 = tpu.matmul %32, %41, %cst_33 {dimension_numbers = #tpu.dot_dimension_numbers<[1], [0], [0], [1], [0, 0, 1, 1], [], []>} : vector<8x128xf32>, vector<128x128xf32>, vector<8x128xf32> -> vector<8x128xf32>
    %43 = arith.addf %40, %42 : vector<8x128xf32>
    %44 = math.tanh %43 : vector<8x128xf32>
    %45 = tpu.concatenate %44, %37 in 1 : vector<8x128xf32>, vector<8x128xf32> -> vector<8x256xf32>
    %c0_34 = arith.constant 0 : index
    %c0_35 = arith.constant 0 : index
    %46 = vector.load %arg5[%c0_34, %c0_35] : memref<256x128xf32, #tpu.memory_space<vmem>>, vector<256x128xf32>
    %cst_36 = arith.constant dense<0.000000e+00> : vector<8x128xf32>
    %47 = tpu.matmul %45, %46, %cst_36 {dimension_numbers = #tpu.dot_dimension_numbers<[1], [0], [0], [1], [0, 0, 1, 1], [], []>} : vector<8x256xf32>, vector<256x128xf32>, vector<8x128xf32> -> vector<8x128xf32>
    %48 = arith.addf %47, %11 : vector<8x128xf32>
    %49 = math.tanh %48 : vector<8x128xf32>
    %c3_i32 = arith.constant 3 : i32
    %50 = arith.index_cast %c3_i32 : i32 to index
    %c0_37 = arith.constant 0 : index
    %c0_38 = arith.constant 0 : index
    %51 = vector.load %arg10[%50, %c0_37, %c0_38] : memref<28x8x128xf32, #tpu.memory_space<vmem>>, vector<1x8x128xf32>
    %52 = vector.shape_cast %51 : vector<1x8x128xf32> to vector<8x128xf32>
    %c0_39 = arith.constant 0 : index
    %c0_40 = arith.constant 0 : index
    %53 = vector.load %arg3[%c0_39, %c0_40] : memref<128x128xf32, #tpu.memory_space<vmem>>, vector<128x128xf32>
    %cst_41 = arith.constant dense<0.000000e+00> : vector<8x128xf32>
    %54 = tpu.matmul %44, %53, %cst_41 {dimension_numbers = #tpu.dot_dimension_numbers<[1], [0], [0], [1], [0, 0, 1, 1], [], []>} : vector<8x128xf32>, vector<128x128xf32>, vector<8x128xf32> -> vector<8x128xf32>
    %55 = arith.addf %52, %54 : vector<8x128xf32>
    %56 = math.tanh %55 : vector<8x128xf32>
    %57 = tpu.concatenate %56, %49 in 1 : vector<8x128xf32>, vector<8x128xf32> -> vector<8x256xf32>
    %c0_42 = arith.constant 0 : index
    %c0_43 = arith.constant 0 : index
    %58 = vector.load %arg5[%c0_42, %c0_43] : memref<256x128xf32, #tpu.memory_space<vmem>>, vector<256x128xf32>
    %cst_44 = arith.constant dense<0.000000e+00> : vector<8x128xf32>
    %59 = tpu.matmul %57, %58, %cst_44 {dimension_numbers = #tpu.dot_dimension_numbers<[1], [0], [0], [1], [0, 0, 1, 1], [], []>} : vector<8x256xf32>, vector<256x128xf32>, vector<8x128xf32> -> vector<8x128xf32>
    %60 = arith.addf %59, %11 : vector<8x128xf32>
    %61 = math.tanh %60 : vector<8x128xf32>
    %c4_i32 = arith.constant 4 : i32
    %62 = arith.index_cast %c4_i32 : i32 to index
    %c0_45 = arith.constant 0 : index
    %c0_46 = arith.constant 0 : index
    %63 = vector.load %arg10[%62, %c0_45, %c0_46] : memref<28x8x128xf32, #tpu.memory_space<vmem>>, vector<1x8x128xf32>
    %64 = vector.shape_cast %63 : vector<1x8x128xf32> to vector<8x128xf32>
    %c0_47 = arith.constant 0 : index
    %c0_48 = arith.constant 0 : index
    %65 = vector.load %arg3[%c0_47, %c0_48] : memref<128x128xf32, #tpu.memory_space<vmem>>, vector<128x128xf32>
    %cst_49 = arith.constant dense<0.000000e+00> : vector<8x128xf32>
    %66 = tpu.matmul %56, %65, %cst_49 {dimension_numbers = #tpu.dot_dimension_numbers<[1], [0], [0], [1], [0, 0, 1, 1], [], []>} : vector<8x128xf32>, vector<128x128xf32>, vector<8x128xf32> -> vector<8x128xf32>
    %67 = arith.addf %64, %66 : vector<8x128xf32>
    %68 = math.tanh %67 : vector<8x128xf32>
    %69 = tpu.concatenate %68, %61 in 1 : vector<8x128xf32>, vector<8x128xf32> -> vector<8x256xf32>
    %c0_50 = arith.constant 0 : index
    %c0_51 = arith.constant 0 : index
    %70 = vector.load %arg5[%c0_50, %c0_51] : memref<256x128xf32, #tpu.memory_space<vmem>>, vector<256x128xf32>
    %cst_52 = arith.constant dense<0.000000e+00> : vector<8x128xf32>
    %71 = tpu.matmul %69, %70, %cst_52 {dimension_numbers = #tpu.dot_dimension_numbers<[1], [0], [0], [1], [0, 0, 1, 1], [], []>} : vector<8x256xf32>, vector<256x128xf32>, vector<8x128xf32> -> vector<8x128xf32>
    %72 = arith.addf %71, %11 : vector<8x128xf32>
    %73 = math.tanh %72 : vector<8x128xf32>
    %c5_i32 = arith.constant 5 : i32
    %74 = arith.index_cast %c5_i32 : i32 to index
    %c0_53 = arith.constant 0 : index
    %c0_54 = arith.constant 0 : index
    %75 = vector.load %arg10[%74, %c0_53, %c0_54] : memref<28x8x128xf32, #tpu.memory_space<vmem>>, vector<1x8x128xf32>
    %76 = vector.shape_cast %75 : vector<1x8x128xf32> to vector<8x128xf32>
    %c0_55 = arith.constant 0 : index
    %c0_56 = arith.constant 0 : index
    %77 = vector.load %arg3[%c0_55, %c0_56] : memref<128x128xf32, #tpu.memory_space<vmem>>, vector<128x128xf32>
    %cst_57 = arith.constant dense<0.000000e+00> : vector<8x128xf32>
    %78 = tpu.matmul %68, %77, %cst_57 {dimension_numbers = #tpu.dot_dimension_numbers<[1], [0], [0], [1], [0, 0, 1, 1], [], []>} : vector<8x128xf32>, vector<128x128xf32>, vector<8x128xf32> -> vector<8x128xf32>
    %79 = arith.addf %76, %78 : vector<8x128xf32>
    %80 = math.tanh %79 : vector<8x128xf32>
    %81 = tpu.concatenate %80, %73 in 1 : vector<8x128xf32>, vector<8x128xf32> -> vector<8x256xf32>
    %c0_58 = arith.constant 0 : index
    %c0_59 = arith.constant 0 : index
    %82 = vector.load %arg5[%c0_58, %c0_59] : memref<256x128xf32, #tpu.memory_space<vmem>>, vector<256x128xf32>
    %cst_60 = arith.constant dense<0.000000e+00> : vector<8x128xf32>
    %83 = tpu.matmul %81, %82, %cst_60 {dimension_numbers = #tpu.dot_dimension_numbers<[1], [0], [0], [1], [0, 0, 1, 1], [], []>} : vector<8x256xf32>, vector<256x128xf32>, vector<8x128xf32> -> vector<8x128xf32>
    %84 = arith.addf %83, %11 : vector<8x128xf32>
    %85 = math.tanh %84 : vector<8x128xf32>
    %c6_i32 = arith.constant 6 : i32
    %86 = arith.index_cast %c6_i32 : i32 to index
    %c0_61 = arith.constant 0 : index
    %c0_62 = arith.constant 0 : index
    %87 = vector.load %arg10[%86, %c0_61, %c0_62] : memref<28x8x128xf32, #tpu.memory_space<vmem>>, vector<1x8x128xf32>
    %88 = vector.shape_cast %87 : vector<1x8x128xf32> to vector<8x128xf32>
    %c0_63 = arith.constant 0 : index
    %c0_64 = arith.constant 0 : index
    %89 = vector.load %arg3[%c0_63, %c0_64] : memref<128x128xf32, #tpu.memory_space<vmem>>, vector<128x128xf32>
    %cst_65 = arith.constant dense<0.000000e+00> : vector<8x128xf32>
    %90 = tpu.matmul %80, %89, %cst_65 {dimension_numbers = #tpu.dot_dimension_numbers<[1], [0], [0], [1], [0, 0, 1, 1], [], []>} : vector<8x128xf32>, vector<128x128xf32>, vector<8x128xf32> -> vector<8x128xf32>
    %91 = arith.addf %88, %90 : vector<8x128xf32>
    %92 = math.tanh %91 : vector<8x128xf32>
    %93 = tpu.concatenate %92, %85 in 1 : vector<8x128xf32>, vector<8x128xf32> -> vector<8x256xf32>
    %c0_66 = arith.constant 0 : index
    %c0_67 = arith.constant 0 : index
    %94 = vector.load %arg5[%c0_66, %c0_67] : memref<256x128xf32, #tpu.memory_space<vmem>>, vector<256x128xf32>
    %cst_68 = arith.constant dense<0.000000e+00> : vector<8x128xf32>
    %95 = tpu.matmul %93, %94, %cst_68 {dimension_numbers = #tpu.dot_dimension_numbers<[1], [0], [0], [1], [0, 0, 1, 1], [], []>} : vector<8x256xf32>, vector<256x128xf32>, vector<8x128xf32> -> vector<8x128xf32>
    %96 = arith.addf %95, %11 : vector<8x128xf32>
    %97 = math.tanh %96 : vector<8x128xf32>
    %c7_i32 = arith.constant 7 : i32
    %98 = arith.index_cast %c7_i32 : i32 to index
    %c0_69 = arith.constant 0 : index
    %c0_70 = arith.constant 0 : index
    %99 = vector.load %arg10[%98, %c0_69, %c0_70] : memref<28x8x128xf32, #tpu.memory_space<vmem>>, vector<1x8x128xf32>
    %100 = vector.shape_cast %99 : vector<1x8x128xf32> to vector<8x128xf32>
    %c0_71 = arith.constant 0 : index
    %c0_72 = arith.constant 0 : index
    %101 = vector.load %arg3[%c0_71, %c0_72] : memref<128x128xf32, #tpu.memory_space<vmem>>, vector<128x128xf32>
    %cst_73 = arith.constant dense<0.000000e+00> : vector<8x128xf32>
    %102 = tpu.matmul %92, %101, %cst_73 {dimension_numbers = #tpu.dot_dimension_numbers<[1], [0], [0], [1], [0, 0, 1, 1], [], []>} : vector<8x128xf32>, vector<128x128xf32>, vector<8x128xf32> -> vector<8x128xf32>
    %103 = arith.addf %100, %102 : vector<8x128xf32>
    %104 = math.tanh %103 : vector<8x128xf32>
    %105 = tpu.concatenate %104, %97 in 1 : vector<8x128xf32>, vector<8x128xf32> -> vector<8x256xf32>
    %c0_74 = arith.constant 0 : index
    %c0_75 = arith.constant 0 : index
    %106 = vector.load %arg5[%c0_74, %c0_75] : memref<256x128xf32, #tpu.memory_space<vmem>>, vector<256x128xf32>
    %cst_76 = arith.constant dense<0.000000e+00> : vector<8x128xf32>
    %107 = tpu.matmul %105, %106, %cst_76 {dimension_numbers = #tpu.dot_dimension_numbers<[1], [0], [0], [1], [0, 0, 1, 1], [], []>} : vector<8x256xf32>, vector<256x128xf32>, vector<8x128xf32> -> vector<8x128xf32>
    %108 = arith.addf %107, %11 : vector<8x128xf32>
    %109 = math.tanh %108 : vector<8x128xf32>
    %c8_i32 = arith.constant 8 : i32
    %110 = arith.index_cast %c8_i32 : i32 to index
    %c0_77 = arith.constant 0 : index
    %c0_78 = arith.constant 0 : index
    %111 = vector.load %arg10[%110, %c0_77, %c0_78] : memref<28x8x128xf32, #tpu.memory_space<vmem>>, vector<1x8x128xf32>
    %112 = vector.shape_cast %111 : vector<1x8x128xf32> to vector<8x128xf32>
    %c0_79 = arith.constant 0 : index
    %c0_80 = arith.constant 0 : index
    %113 = vector.load %arg3[%c0_79, %c0_80] : memref<128x128xf32, #tpu.memory_space<vmem>>, vector<128x128xf32>
    %cst_81 = arith.constant dense<0.000000e+00> : vector<8x128xf32>
    %114 = tpu.matmul %104, %113, %cst_81 {dimension_numbers = #tpu.dot_dimension_numbers<[1], [0], [0], [1], [0, 0, 1, 1], [], []>} : vector<8x128xf32>, vector<128x128xf32>, vector<8x128xf32> -> vector<8x128xf32>
    %115 = arith.addf %112, %114 : vector<8x128xf32>
    %116 = math.tanh %115 : vector<8x128xf32>
    %117 = tpu.concatenate %116, %109 in 1 : vector<8x128xf32>, vector<8x128xf32> -> vector<8x256xf32>
    %c0_82 = arith.constant 0 : index
    %c0_83 = arith.constant 0 : index
    %118 = vector.load %arg5[%c0_82, %c0_83] : memref<256x128xf32, #tpu.memory_space<vmem>>, vector<256x128xf32>
    %cst_84 = arith.constant dense<0.000000e+00> : vector<8x128xf32>
    %119 = tpu.matmul %117, %118, %cst_84 {dimension_numbers = #tpu.dot_dimension_numbers<[1], [0], [0], [1], [0, 0, 1, 1], [], []>} : vector<8x256xf32>, vector<256x128xf32>, vector<8x128xf32> -> vector<8x128xf32>
    %120 = arith.addf %119, %11 : vector<8x128xf32>
    %121 = math.tanh %120 : vector<8x128xf32>
    %c9_i32 = arith.constant 9 : i32
    %122 = arith.index_cast %c9_i32 : i32 to index
    %c0_85 = arith.constant 0 : index
    %c0_86 = arith.constant 0 : index
    %123 = vector.load %arg10[%122, %c0_85, %c0_86] : memref<28x8x128xf32, #tpu.memory_space<vmem>>, vector<1x8x128xf32>
    %124 = vector.shape_cast %123 : vector<1x8x128xf32> to vector<8x128xf32>
    %c0_87 = arith.constant 0 : index
    %c0_88 = arith.constant 0 : index
    %125 = vector.load %arg3[%c0_87, %c0_88] : memref<128x128xf32, #tpu.memory_space<vmem>>, vector<128x128xf32>
    %cst_89 = arith.constant dense<0.000000e+00> : vector<8x128xf32>
    %126 = tpu.matmul %116, %125, %cst_89 {dimension_numbers = #tpu.dot_dimension_numbers<[1], [0], [0], [1], [0, 0, 1, 1], [], []>} : vector<8x128xf32>, vector<128x128xf32>, vector<8x128xf32> -> vector<8x128xf32>
    %127 = arith.addf %124, %126 : vector<8x128xf32>
    %128 = math.tanh %127 : vector<8x128xf32>
    %129 = tpu.concatenate %128, %121 in 1 : vector<8x128xf32>, vector<8x128xf32> -> vector<8x256xf32>
    %c0_90 = arith.constant 0 : index
    %c0_91 = arith.constant 0 : index
    %130 = vector.load %arg5[%c0_90, %c0_91] : memref<256x128xf32, #tpu.memory_space<vmem>>, vector<256x128xf32>
    %cst_92 = arith.constant dense<0.000000e+00> : vector<8x128xf32>
    %131 = tpu.matmul %129, %130, %cst_92 {dimension_numbers = #tpu.dot_dimension_numbers<[1], [0], [0], [1], [0, 0, 1, 1], [], []>} : vector<8x256xf32>, vector<256x128xf32>, vector<8x128xf32> -> vector<8x128xf32>
    %132 = arith.addf %131, %11 : vector<8x128xf32>
    %133 = math.tanh %132 : vector<8x128xf32>
    %c10_i32 = arith.constant 10 : i32
    %134 = arith.index_cast %c10_i32 : i32 to index
    %c0_93 = arith.constant 0 : index
    %c0_94 = arith.constant 0 : index
    %135 = vector.load %arg10[%134, %c0_93, %c0_94] : memref<28x8x128xf32, #tpu.memory_space<vmem>>, vector<1x8x128xf32>
    %136 = vector.shape_cast %135 : vector<1x8x128xf32> to vector<8x128xf32>
    %c0_95 = arith.constant 0 : index
    %c0_96 = arith.constant 0 : index
    %137 = vector.load %arg3[%c0_95, %c0_96] : memref<128x128xf32, #tpu.memory_space<vmem>>, vector<128x128xf32>
    %cst_97 = arith.constant dense<0.000000e+00> : vector<8x128xf32>
    %138 = tpu.matmul %128, %137, %cst_97 {dimension_numbers = #tpu.dot_dimension_numbers<[1], [0], [0], [1], [0, 0, 1, 1], [], []>} : vector<8x128xf32>, vector<128x128xf32>, vector<8x128xf32> -> vector<8x128xf32>
    %139 = arith.addf %136, %138 : vector<8x128xf32>
    %140 = math.tanh %139 : vector<8x128xf32>
    %141 = tpu.concatenate %140, %133 in 1 : vector<8x128xf32>, vector<8x128xf32> -> vector<8x256xf32>
    %c0_98 = arith.constant 0 : index
    %c0_99 = arith.constant 0 : index
    %142 = vector.load %arg5[%c0_98, %c0_99] : memref<256x128xf32, #tpu.memory_space<vmem>>, vector<256x128xf32>
    %cst_100 = arith.constant dense<0.000000e+00> : vector<8x128xf32>
    %143 = tpu.matmul %141, %142, %cst_100 {dimension_numbers = #tpu.dot_dimension_numbers<[1], [0], [0], [1], [0, 0, 1, 1], [], []>} : vector<8x256xf32>, vector<256x128xf32>, vector<8x128xf32> -> vector<8x128xf32>
    %144 = arith.addf %143, %11 : vector<8x128xf32>
    %145 = math.tanh %144 : vector<8x128xf32>
    %c11_i32 = arith.constant 11 : i32
    %146 = arith.index_cast %c11_i32 : i32 to index
    %c0_101 = arith.constant 0 : index
    %c0_102 = arith.constant 0 : index
    %147 = vector.load %arg10[%146, %c0_101, %c0_102] : memref<28x8x128xf32, #tpu.memory_space<vmem>>, vector<1x8x128xf32>
    %148 = vector.shape_cast %147 : vector<1x8x128xf32> to vector<8x128xf32>
    %c0_103 = arith.constant 0 : index
    %c0_104 = arith.constant 0 : index
    %149 = vector.load %arg3[%c0_103, %c0_104] : memref<128x128xf32, #tpu.memory_space<vmem>>, vector<128x128xf32>
    %cst_105 = arith.constant dense<0.000000e+00> : vector<8x128xf32>
    %150 = tpu.matmul %140, %149, %cst_105 {dimension_numbers = #tpu.dot_dimension_numbers<[1], [0], [0], [1], [0, 0, 1, 1], [], []>} : vector<8x128xf32>, vector<128x128xf32>, vector<8x128xf32> -> vector<8x128xf32>
    %151 = arith.addf %148, %150 : vector<8x128xf32>
    %152 = math.tanh %151 : vector<8x128xf32>
    %153 = tpu.concatenate %152, %145 in 1 : vector<8x128xf32>, vector<8x128xf32> -> vector<8x256xf32>
    %c0_106 = arith.constant 0 : index
    %c0_107 = arith.constant 0 : index
    %154 = vector.load %arg5[%c0_106, %c0_107] : memref<256x128xf32, #tpu.memory_space<vmem>>, vector<256x128xf32>
    %cst_108 = arith.constant dense<0.000000e+00> : vector<8x128xf32>
    %155 = tpu.matmul %153, %154, %cst_108 {dimension_numbers = #tpu.dot_dimension_numbers<[1], [0], [0], [1], [0, 0, 1, 1], [], []>} : vector<8x256xf32>, vector<256x128xf32>, vector<8x128xf32> -> vector<8x128xf32>
    %156 = arith.addf %155, %11 : vector<8x128xf32>
    %157 = math.tanh %156 : vector<8x128xf32>
    %c12_i32 = arith.constant 12 : i32
    %158 = arith.index_cast %c12_i32 : i32 to index
    %c0_109 = arith.constant 0 : index
    %c0_110 = arith.constant 0 : index
    %159 = vector.load %arg10[%158, %c0_109, %c0_110] : memref<28x8x128xf32, #tpu.memory_space<vmem>>, vector<1x8x128xf32>
    %160 = vector.shape_cast %159 : vector<1x8x128xf32> to vector<8x128xf32>
    %c0_111 = arith.constant 0 : index
    %c0_112 = arith.constant 0 : index
    %161 = vector.load %arg3[%c0_111, %c0_112] : memref<128x128xf32, #tpu.memory_space<vmem>>, vector<128x128xf32>
    %cst_113 = arith.constant dense<0.000000e+00> : vector<8x128xf32>
    %162 = tpu.matmul %152, %161, %cst_113 {dimension_numbers = #tpu.dot_dimension_numbers<[1], [0], [0], [1], [0, 0, 1, 1], [], []>} : vector<8x128xf32>, vector<128x128xf32>, vector<8x128xf32> -> vector<8x128xf32>
    %163 = arith.addf %160, %162 : vector<8x128xf32>
    %164 = math.tanh %163 : vector<8x128xf32>
    %165 = tpu.concatenate %164, %157 in 1 : vector<8x128xf32>, vector<8x128xf32> -> vector<8x256xf32>
    %c0_114 = arith.constant 0 : index
    %c0_115 = arith.constant 0 : index
    %166 = vector.load %arg5[%c0_114, %c0_115] : memref<256x128xf32, #tpu.memory_space<vmem>>, vector<256x128xf32>
    %cst_116 = arith.constant dense<0.000000e+00> : vector<8x128xf32>
    %167 = tpu.matmul %165, %166, %cst_116 {dimension_numbers = #tpu.dot_dimension_numbers<[1], [0], [0], [1], [0, 0, 1, 1], [], []>} : vector<8x256xf32>, vector<256x128xf32>, vector<8x128xf32> -> vector<8x128xf32>
    %168 = arith.addf %167, %11 : vector<8x128xf32>
    %169 = math.tanh %168 : vector<8x128xf32>
    %c13_i32 = arith.constant 13 : i32
    %170 = arith.index_cast %c13_i32 : i32 to index
    %c0_117 = arith.constant 0 : index
    %c0_118 = arith.constant 0 : index
    %171 = vector.load %arg10[%170, %c0_117, %c0_118] : memref<28x8x128xf32, #tpu.memory_space<vmem>>, vector<1x8x128xf32>
    %172 = vector.shape_cast %171 : vector<1x8x128xf32> to vector<8x128xf32>
    %c0_119 = arith.constant 0 : index
    %c0_120 = arith.constant 0 : index
    %173 = vector.load %arg3[%c0_119, %c0_120] : memref<128x128xf32, #tpu.memory_space<vmem>>, vector<128x128xf32>
    %cst_121 = arith.constant dense<0.000000e+00> : vector<8x128xf32>
    %174 = tpu.matmul %164, %173, %cst_121 {dimension_numbers = #tpu.dot_dimension_numbers<[1], [0], [0], [1], [0, 0, 1, 1], [], []>} : vector<8x128xf32>, vector<128x128xf32>, vector<8x128xf32> -> vector<8x128xf32>
    %175 = arith.addf %172, %174 : vector<8x128xf32>
    %176 = math.tanh %175 : vector<8x128xf32>
    %177 = tpu.concatenate %176, %169 in 1 : vector<8x128xf32>, vector<8x128xf32> -> vector<8x256xf32>
    %c0_122 = arith.constant 0 : index
    %c0_123 = arith.constant 0 : index
    %178 = vector.load %arg5[%c0_122, %c0_123] : memref<256x128xf32, #tpu.memory_space<vmem>>, vector<256x128xf32>
    %cst_124 = arith.constant dense<0.000000e+00> : vector<8x128xf32>
    %179 = tpu.matmul %177, %178, %cst_124 {dimension_numbers = #tpu.dot_dimension_numbers<[1], [0], [0], [1], [0, 0, 1, 1], [], []>} : vector<8x256xf32>, vector<256x128xf32>, vector<8x128xf32> -> vector<8x128xf32>
    %180 = arith.addf %179, %11 : vector<8x128xf32>
    %181 = math.tanh %180 : vector<8x128xf32>
    %c14_i32 = arith.constant 14 : i32
    %182 = arith.index_cast %c14_i32 : i32 to index
    %c0_125 = arith.constant 0 : index
    %c0_126 = arith.constant 0 : index
    %183 = vector.load %arg10[%182, %c0_125, %c0_126] : memref<28x8x128xf32, #tpu.memory_space<vmem>>, vector<1x8x128xf32>
    %184 = vector.shape_cast %183 : vector<1x8x128xf32> to vector<8x128xf32>
    %c0_127 = arith.constant 0 : index
    %c0_128 = arith.constant 0 : index
    %185 = vector.load %arg3[%c0_127, %c0_128] : memref<128x128xf32, #tpu.memory_space<vmem>>, vector<128x128xf32>
    %cst_129 = arith.constant dense<0.000000e+00> : vector<8x128xf32>
    %186 = tpu.matmul %176, %185, %cst_129 {dimension_numbers = #tpu.dot_dimension_numbers<[1], [0], [0], [1], [0, 0, 1, 1], [], []>} : vector<8x128xf32>, vector<128x128xf32>, vector<8x128xf32> -> vector<8x128xf32>
    %187 = arith.addf %184, %186 : vector<8x128xf32>
    %188 = math.tanh %187 : vector<8x128xf32>
    %189 = tpu.concatenate %188, %181 in 1 : vector<8x128xf32>, vector<8x128xf32> -> vector<8x256xf32>
    %c0_130 = arith.constant 0 : index
    %c0_131 = arith.constant 0 : index
    %190 = vector.load %arg5[%c0_130, %c0_131] : memref<256x128xf32, #tpu.memory_space<vmem>>, vector<256x128xf32>
    %cst_132 = arith.constant dense<0.000000e+00> : vector<8x128xf32>
    %191 = tpu.matmul %189, %190, %cst_132 {dimension_numbers = #tpu.dot_dimension_numbers<[1], [0], [0], [1], [0, 0, 1, 1], [], []>} : vector<8x256xf32>, vector<256x128xf32>, vector<8x128xf32> -> vector<8x128xf32>
    %192 = arith.addf %191, %11 : vector<8x128xf32>
    %193 = math.tanh %192 : vector<8x128xf32>
    %c15_i32 = arith.constant 15 : i32
    %194 = arith.index_cast %c15_i32 : i32 to index
    %c0_133 = arith.constant 0 : index
    %c0_134 = arith.constant 0 : index
    %195 = vector.load %arg10[%194, %c0_133, %c0_134] : memref<28x8x128xf32, #tpu.memory_space<vmem>>, vector<1x8x128xf32>
    %196 = vector.shape_cast %195 : vector<1x8x128xf32> to vector<8x128xf32>
    %c0_135 = arith.constant 0 : index
    %c0_136 = arith.constant 0 : index
    %197 = vector.load %arg3[%c0_135, %c0_136] : memref<128x128xf32, #tpu.memory_space<vmem>>, vector<128x128xf32>
    %cst_137 = arith.constant dense<0.000000e+00> : vector<8x128xf32>
    %198 = tpu.matmul %188, %197, %cst_137 {dimension_numbers = #tpu.dot_dimension_numbers<[1], [0], [0], [1], [0, 0, 1, 1], [], []>} : vector<8x128xf32>, vector<128x128xf32>, vector<8x128xf32> -> vector<8x128xf32>
    %199 = arith.addf %196, %198 : vector<8x128xf32>
    %200 = math.tanh %199 : vector<8x128xf32>
    %201 = tpu.concatenate %200, %193 in 1 : vector<8x128xf32>, vector<8x128xf32> -> vector<8x256xf32>
    %c0_138 = arith.constant 0 : index
    %c0_139 = arith.constant 0 : index
    %202 = vector.load %arg5[%c0_138, %c0_139] : memref<256x128xf32, #tpu.memory_space<vmem>>, vector<256x128xf32>
    %cst_140 = arith.constant dense<0.000000e+00> : vector<8x128xf32>
    %203 = tpu.matmul %201, %202, %cst_140 {dimension_numbers = #tpu.dot_dimension_numbers<[1], [0], [0], [1], [0, 0, 1, 1], [], []>} : vector<8x256xf32>, vector<256x128xf32>, vector<8x128xf32> -> vector<8x128xf32>
    %204 = arith.addf %203, %11 : vector<8x128xf32>
    %205 = math.tanh %204 : vector<8x128xf32>
    %c16_i32 = arith.constant 16 : i32
    %206 = arith.index_cast %c16_i32 : i32 to index
    %c0_141 = arith.constant 0 : index
    %c0_142 = arith.constant 0 : index
    %207 = vector.load %arg10[%206, %c0_141, %c0_142] : memref<28x8x128xf32, #tpu.memory_space<vmem>>, vector<1x8x128xf32>
    %208 = vector.shape_cast %207 : vector<1x8x128xf32> to vector<8x128xf32>
    %c0_143 = arith.constant 0 : index
    %c0_144 = arith.constant 0 : index
    %209 = vector.load %arg3[%c0_143, %c0_144] : memref<128x128xf32, #tpu.memory_space<vmem>>, vector<128x128xf32>
    %cst_145 = arith.constant dense<0.000000e+00> : vector<8x128xf32>
    %210 = tpu.matmul %200, %209, %cst_145 {dimension_numbers = #tpu.dot_dimension_numbers<[1], [0], [0], [1], [0, 0, 1, 1], [], []>} : vector<8x128xf32>, vector<128x128xf32>, vector<8x128xf32> -> vector<8x128xf32>
    %211 = arith.addf %208, %210 : vector<8x128xf32>
    %212 = math.tanh %211 : vector<8x128xf32>
    %213 = tpu.concatenate %212, %205 in 1 : vector<8x128xf32>, vector<8x128xf32> -> vector<8x256xf32>
    %c0_146 = arith.constant 0 : index
    %c0_147 = arith.constant 0 : index
    %214 = vector.load %arg5[%c0_146, %c0_147] : memref<256x128xf32, #tpu.memory_space<vmem>>, vector<256x128xf32>
    %cst_148 = arith.constant dense<0.000000e+00> : vector<8x128xf32>
    %215 = tpu.matmul %213, %214, %cst_148 {dimension_numbers = #tpu.dot_dimension_numbers<[1], [0], [0], [1], [0, 0, 1, 1], [], []>} : vector<8x256xf32>, vector<256x128xf32>, vector<8x128xf32> -> vector<8x128xf32>
    %216 = arith.addf %215, %11 : vector<8x128xf32>
    %217 = math.tanh %216 : vector<8x128xf32>
    %c17_i32 = arith.constant 17 : i32
    %218 = arith.index_cast %c17_i32 : i32 to index
    %c0_149 = arith.constant 0 : index
    %c0_150 = arith.constant 0 : index
    %219 = vector.load %arg10[%218, %c0_149, %c0_150] : memref<28x8x128xf32, #tpu.memory_space<vmem>>, vector<1x8x128xf32>
    %220 = vector.shape_cast %219 : vector<1x8x128xf32> to vector<8x128xf32>
    %c0_151 = arith.constant 0 : index
    %c0_152 = arith.constant 0 : index
    %221 = vector.load %arg3[%c0_151, %c0_152] : memref<128x128xf32, #tpu.memory_space<vmem>>, vector<128x128xf32>
    %cst_153 = arith.constant dense<0.000000e+00> : vector<8x128xf32>
    %222 = tpu.matmul %212, %221, %cst_153 {dimension_numbers = #tpu.dot_dimension_numbers<[1], [0], [0], [1], [0, 0, 1, 1], [], []>} : vector<8x128xf32>, vector<128x128xf32>, vector<8x128xf32> -> vector<8x128xf32>
    %223 = arith.addf %220, %222 : vector<8x128xf32>
    %224 = math.tanh %223 : vector<8x128xf32>
    %225 = tpu.concatenate %224, %217 in 1 : vector<8x128xf32>, vector<8x128xf32> -> vector<8x256xf32>
    %c0_154 = arith.constant 0 : index
    %c0_155 = arith.constant 0 : index
    %226 = vector.load %arg5[%c0_154, %c0_155] : memref<256x128xf32, #tpu.memory_space<vmem>>, vector<256x128xf32>
    %cst_156 = arith.constant dense<0.000000e+00> : vector<8x128xf32>
    %227 = tpu.matmul %225, %226, %cst_156 {dimension_numbers = #tpu.dot_dimension_numbers<[1], [0], [0], [1], [0, 0, 1, 1], [], []>} : vector<8x256xf32>, vector<256x128xf32>, vector<8x128xf32> -> vector<8x128xf32>
    %228 = arith.addf %227, %11 : vector<8x128xf32>
    %229 = math.tanh %228 : vector<8x128xf32>
    %c18_i32 = arith.constant 18 : i32
    %230 = arith.index_cast %c18_i32 : i32 to index
    %c0_157 = arith.constant 0 : index
    %c0_158 = arith.constant 0 : index
    %231 = vector.load %arg10[%230, %c0_157, %c0_158] : memref<28x8x128xf32, #tpu.memory_space<vmem>>, vector<1x8x128xf32>
    %232 = vector.shape_cast %231 : vector<1x8x128xf32> to vector<8x128xf32>
    %c0_159 = arith.constant 0 : index
    %c0_160 = arith.constant 0 : index
    %233 = vector.load %arg3[%c0_159, %c0_160] : memref<128x128xf32, #tpu.memory_space<vmem>>, vector<128x128xf32>
    %cst_161 = arith.constant dense<0.000000e+00> : vector<8x128xf32>
    %234 = tpu.matmul %224, %233, %cst_161 {dimension_numbers = #tpu.dot_dimension_numbers<[1], [0], [0], [1], [0, 0, 1, 1], [], []>} : vector<8x128xf32>, vector<128x128xf32>, vector<8x128xf32> -> vector<8x128xf32>
    %235 = arith.addf %232, %234 : vector<8x128xf32>
    %236 = math.tanh %235 : vector<8x128xf32>
    %237 = tpu.concatenate %236, %229 in 1 : vector<8x128xf32>, vector<8x128xf32> -> vector<8x256xf32>
    %c0_162 = arith.constant 0 : index
    %c0_163 = arith.constant 0 : index
    %238 = vector.load %arg5[%c0_162, %c0_163] : memref<256x128xf32, #tpu.memory_space<vmem>>, vector<256x128xf32>
    %cst_164 = arith.constant dense<0.000000e+00> : vector<8x128xf32>
    %239 = tpu.matmul %237, %238, %cst_164 {dimension_numbers = #tpu.dot_dimension_numbers<[1], [0], [0], [1], [0, 0, 1, 1], [], []>} : vector<8x256xf32>, vector<256x128xf32>, vector<8x128xf32> -> vector<8x128xf32>
    %240 = arith.addf %239, %11 : vector<8x128xf32>
    %241 = math.tanh %240 : vector<8x128xf32>
    %c19_i32 = arith.constant 19 : i32
    %242 = arith.index_cast %c19_i32 : i32 to index
    %c0_165 = arith.constant 0 : index
    %c0_166 = arith.constant 0 : index
    %243 = vector.load %arg10[%242, %c0_165, %c0_166] : memref<28x8x128xf32, #tpu.memory_space<vmem>>, vector<1x8x128xf32>
    %244 = vector.shape_cast %243 : vector<1x8x128xf32> to vector<8x128xf32>
    %c0_167 = arith.constant 0 : index
    %c0_168 = arith.constant 0 : index
    %245 = vector.load %arg3[%c0_167, %c0_168] : memref<128x128xf32, #tpu.memory_space<vmem>>, vector<128x128xf32>
    %cst_169 = arith.constant dense<0.000000e+00> : vector<8x128xf32>
    %246 = tpu.matmul %236, %245, %cst_169 {dimension_numbers = #tpu.dot_dimension_numbers<[1], [0], [0], [1], [0, 0, 1, 1], [], []>} : vector<8x128xf32>, vector<128x128xf32>, vector<8x128xf32> -> vector<8x128xf32>
    %247 = arith.addf %244, %246 : vector<8x128xf32>
    %248 = math.tanh %247 : vector<8x128xf32>
    %249 = tpu.concatenate %248, %241 in 1 : vector<8x128xf32>, vector<8x128xf32> -> vector<8x256xf32>
    %c0_170 = arith.constant 0 : index
    %c0_171 = arith.constant 0 : index
    %250 = vector.load %arg5[%c0_170, %c0_171] : memref<256x128xf32, #tpu.memory_space<vmem>>, vector<256x128xf32>
    %cst_172 = arith.constant dense<0.000000e+00> : vector<8x128xf32>
    %251 = tpu.matmul %249, %250, %cst_172 {dimension_numbers = #tpu.dot_dimension_numbers<[1], [0], [0], [1], [0, 0, 1, 1], [], []>} : vector<8x256xf32>, vector<256x128xf32>, vector<8x128xf32> -> vector<8x128xf32>
    %252 = arith.addf %251, %11 : vector<8x128xf32>
    %253 = math.tanh %252 : vector<8x128xf32>
    %c20_i32 = arith.constant 20 : i32
    %254 = arith.index_cast %c20_i32 : i32 to index
    %c0_173 = arith.constant 0 : index
    %c0_174 = arith.constant 0 : index
    %255 = vector.load %arg10[%254, %c0_173, %c0_174] : memref<28x8x128xf32, #tpu.memory_space<vmem>>, vector<1x8x128xf32>
    %256 = vector.shape_cast %255 : vector<1x8x128xf32> to vector<8x128xf32>
    %c0_175 = arith.constant 0 : index
    %c0_176 = arith.constant 0 : index
    %257 = vector.load %arg3[%c0_175, %c0_176] : memref<128x128xf32, #tpu.memory_space<vmem>>, vector<128x128xf32>
    %cst_177 = arith.constant dense<0.000000e+00> : vector<8x128xf32>
    %258 = tpu.matmul %248, %257, %cst_177 {dimension_numbers = #tpu.dot_dimension_numbers<[1], [0], [0], [1], [0, 0, 1, 1], [], []>} : vector<8x128xf32>, vector<128x128xf32>, vector<8x128xf32> -> vector<8x128xf32>
    %259 = arith.addf %256, %258 : vector<8x128xf32>
    %260 = math.tanh %259 : vector<8x128xf32>
    %261 = tpu.concatenate %260, %253 in 1 : vector<8x128xf32>, vector<8x128xf32> -> vector<8x256xf32>
    %c0_178 = arith.constant 0 : index
    %c0_179 = arith.constant 0 : index
    %262 = vector.load %arg5[%c0_178, %c0_179] : memref<256x128xf32, #tpu.memory_space<vmem>>, vector<256x128xf32>
    %cst_180 = arith.constant dense<0.000000e+00> : vector<8x128xf32>
    %263 = tpu.matmul %261, %262, %cst_180 {dimension_numbers = #tpu.dot_dimension_numbers<[1], [0], [0], [1], [0, 0, 1, 1], [], []>} : vector<8x256xf32>, vector<256x128xf32>, vector<8x128xf32> -> vector<8x128xf32>
    %264 = arith.addf %263, %11 : vector<8x128xf32>
    %265 = math.tanh %264 : vector<8x128xf32>
    %c21_i32 = arith.constant 21 : i32
    %266 = arith.index_cast %c21_i32 : i32 to index
    %c0_181 = arith.constant 0 : index
    %c0_182 = arith.constant 0 : index
    %267 = vector.load %arg10[%266, %c0_181, %c0_182] : memref<28x8x128xf32, #tpu.memory_space<vmem>>, vector<1x8x128xf32>
    %268 = vector.shape_cast %267 : vector<1x8x128xf32> to vector<8x128xf32>
    %c0_183 = arith.constant 0 : index
    %c0_184 = arith.constant 0 : index
    %269 = vector.load %arg3[%c0_183, %c0_184] : memref<128x128xf32, #tpu.memory_space<vmem>>, vector<128x128xf32>
    %cst_185 = arith.constant dense<0.000000e+00> : vector<8x128xf32>
    %270 = tpu.matmul %260, %269, %cst_185 {dimension_numbers = #tpu.dot_dimension_numbers<[1], [0], [0], [1], [0, 0, 1, 1], [], []>} : vector<8x128xf32>, vector<128x128xf32>, vector<8x128xf32> -> vector<8x128xf32>
    %271 = arith.addf %268, %270 : vector<8x128xf32>
    %272 = math.tanh %271 : vector<8x128xf32>
    %273 = tpu.concatenate %272, %265 in 1 : vector<8x128xf32>, vector<8x128xf32> -> vector<8x256xf32>
    %c0_186 = arith.constant 0 : index
    %c0_187 = arith.constant 0 : index
    %274 = vector.load %arg5[%c0_186, %c0_187] : memref<256x128xf32, #tpu.memory_space<vmem>>, vector<256x128xf32>
    %cst_188 = arith.constant dense<0.000000e+00> : vector<8x128xf32>
    %275 = tpu.matmul %273, %274, %cst_188 {dimension_numbers = #tpu.dot_dimension_numbers<[1], [0], [0], [1], [0, 0, 1, 1], [], []>} : vector<8x256xf32>, vector<256x128xf32>, vector<8x128xf32> -> vector<8x128xf32>
    %276 = arith.addf %275, %11 : vector<8x128xf32>
    %277 = math.tanh %276 : vector<8x128xf32>
    %c22_i32 = arith.constant 22 : i32
    %278 = arith.index_cast %c22_i32 : i32 to index
    %c0_189 = arith.constant 0 : index
    %c0_190 = arith.constant 0 : index
    %279 = vector.load %arg10[%278, %c0_189, %c0_190] : memref<28x8x128xf32, #tpu.memory_space<vmem>>, vector<1x8x128xf32>
    %280 = vector.shape_cast %279 : vector<1x8x128xf32> to vector<8x128xf32>
    %c0_191 = arith.constant 0 : index
    %c0_192 = arith.constant 0 : index
    %281 = vector.load %arg3[%c0_191, %c0_192] : memref<128x128xf32, #tpu.memory_space<vmem>>, vector<128x128xf32>
    %cst_193 = arith.constant dense<0.000000e+00> : vector<8x128xf32>
    %282 = tpu.matmul %272, %281, %cst_193 {dimension_numbers = #tpu.dot_dimension_numbers<[1], [0], [0], [1], [0, 0, 1, 1], [], []>} : vector<8x128xf32>, vector<128x128xf32>, vector<8x128xf32> -> vector<8x128xf32>
    %283 = arith.addf %280, %282 : vector<8x128xf32>
    %284 = math.tanh %283 : vector<8x128xf32>
    %285 = tpu.concatenate %284, %277 in 1 : vector<8x128xf32>, vector<8x128xf32> -> vector<8x256xf32>
    %c0_194 = arith.constant 0 : index
    %c0_195 = arith.constant 0 : index
    %286 = vector.load %arg5[%c0_194, %c0_195] : memref<256x128xf32, #tpu.memory_space<vmem>>, vector<256x128xf32>
    %cst_196 = arith.constant dense<0.000000e+00> : vector<8x128xf32>
    %287 = tpu.matmul %285, %286, %cst_196 {dimension_numbers = #tpu.dot_dimension_numbers<[1], [0], [0], [1], [0, 0, 1, 1], [], []>} : vector<8x256xf32>, vector<256x128xf32>, vector<8x128xf32> -> vector<8x128xf32>
    %288 = arith.addf %287, %11 : vector<8x128xf32>
    %289 = math.tanh %288 : vector<8x128xf32>
    %c23_i32 = arith.constant 23 : i32
    %290 = arith.index_cast %c23_i32 : i32 to index
    %c0_197 = arith.constant 0 : index
    %c0_198 = arith.constant 0 : index
    %291 = vector.load %arg10[%290, %c0_197, %c0_198] : memref<28x8x128xf32, #tpu.memory_space<vmem>>, vector<1x8x128xf32>
    %292 = vector.shape_cast %291 : vector<1x8x128xf32> to vector<8x128xf32>
    %c0_199 = arith.constant 0 : index
    %c0_200 = arith.constant 0 : index
    %293 = vector.load %arg3[%c0_199, %c0_200] : memref<128x128xf32, #tpu.memory_space<vmem>>, vector<128x128xf32>
    %cst_201 = arith.constant dense<0.000000e+00> : vector<8x128xf32>
    %294 = tpu.matmul %284, %293, %cst_201 {dimension_numbers = #tpu.dot_dimension_numbers<[1], [0], [0], [1], [0, 0, 1, 1], [], []>} : vector<8x128xf32>, vector<128x128xf32>, vector<8x128xf32> -> vector<8x128xf32>
    %295 = arith.addf %292, %294 : vector<8x128xf32>
    %296 = math.tanh %295 : vector<8x128xf32>
    %297 = tpu.concatenate %296, %289 in 1 : vector<8x128xf32>, vector<8x128xf32> -> vector<8x256xf32>
    %c0_202 = arith.constant 0 : index
    %c0_203 = arith.constant 0 : index
    %298 = vector.load %arg5[%c0_202, %c0_203] : memref<256x128xf32, #tpu.memory_space<vmem>>, vector<256x128xf32>
    %cst_204 = arith.constant dense<0.000000e+00> : vector<8x128xf32>
    %299 = tpu.matmul %297, %298, %cst_204 {dimension_numbers = #tpu.dot_dimension_numbers<[1], [0], [0], [1], [0, 0, 1, 1], [], []>} : vector<8x256xf32>, vector<256x128xf32>, vector<8x128xf32> -> vector<8x128xf32>
    %300 = arith.addf %299, %11 : vector<8x128xf32>
    %301 = math.tanh %300 : vector<8x128xf32>
    %c24_i32 = arith.constant 24 : i32
    %302 = arith.index_cast %c24_i32 : i32 to index
    %c0_205 = arith.constant 0 : index
    %c0_206 = arith.constant 0 : index
    %303 = vector.load %arg10[%302, %c0_205, %c0_206] : memref<28x8x128xf32, #tpu.memory_space<vmem>>, vector<1x8x128xf32>
    %304 = vector.shape_cast %303 : vector<1x8x128xf32> to vector<8x128xf32>
    %c0_207 = arith.constant 0 : index
    %c0_208 = arith.constant 0 : index
    %305 = vector.load %arg3[%c0_207, %c0_208] : memref<128x128xf32, #tpu.memory_space<vmem>>, vector<128x128xf32>
    %cst_209 = arith.constant dense<0.000000e+00> : vector<8x128xf32>
    %306 = tpu.matmul %296, %305, %cst_209 {dimension_numbers = #tpu.dot_dimension_numbers<[1], [0], [0], [1], [0, 0, 1, 1], [], []>} : vector<8x128xf32>, vector<128x128xf32>, vector<8x128xf32> -> vector<8x128xf32>
    %307 = arith.addf %304, %306 : vector<8x128xf32>
    %308 = math.tanh %307 : vector<8x128xf32>
    %309 = tpu.concatenate %308, %301 in 1 : vector<8x128xf32>, vector<8x128xf32> -> vector<8x256xf32>
    %c0_210 = arith.constant 0 : index
    %c0_211 = arith.constant 0 : index
    %310 = vector.load %arg5[%c0_210, %c0_211] : memref<256x128xf32, #tpu.memory_space<vmem>>, vector<256x128xf32>
    %cst_212 = arith.constant dense<0.000000e+00> : vector<8x128xf32>
    %311 = tpu.matmul %309, %310, %cst_212 {dimension_numbers = #tpu.dot_dimension_numbers<[1], [0], [0], [1], [0, 0, 1, 1], [], []>} : vector<8x256xf32>, vector<256x128xf32>, vector<8x128xf32> -> vector<8x128xf32>
    %312 = arith.addf %311, %11 : vector<8x128xf32>
    %313 = math.tanh %312 : vector<8x128xf32>
    %c25_i32 = arith.constant 25 : i32
    %314 = arith.index_cast %c25_i32 : i32 to index
    %c0_213 = arith.constant 0 : index
    %c0_214 = arith.constant 0 : index
    %315 = vector.load %arg10[%314, %c0_213, %c0_214] : memref<28x8x128xf32, #tpu.memory_space<vmem>>, vector<1x8x128xf32>
    %316 = vector.shape_cast %315 : vector<1x8x128xf32> to vector<8x128xf32>
    %c0_215 = arith.constant 0 : index
    %c0_216 = arith.constant 0 : index
    %317 = vector.load %arg3[%c0_215, %c0_216] : memref<128x128xf32, #tpu.memory_space<vmem>>, vector<128x128xf32>
    %cst_217 = arith.constant dense<0.000000e+00> : vector<8x128xf32>
    %318 = tpu.matmul %308, %317, %cst_217 {dimension_numbers = #tpu.dot_dimension_numbers<[1], [0], [0], [1], [0, 0, 1, 1], [], []>} : vector<8x128xf32>, vector<128x128xf32>, vector<8x128xf32> -> vector<8x128xf32>
    %319 = arith.addf %316, %318 : vector<8x128xf32>
    %320 = math.tanh %319 : vector<8x128xf32>
    %321 = tpu.concatenate %320, %313 in 1 : vector<8x128xf32>, vector<8x128xf32> -> vector<8x256xf32>
    %c0_218 = arith.constant 0 : index
    %c0_219 = arith.constant 0 : index
    %322 = vector.load %arg5[%c0_218, %c0_219] : memref<256x128xf32, #tpu.memory_space<vmem>>, vector<256x128xf32>
    %cst_220 = arith.constant dense<0.000000e+00> : vector<8x128xf32>
    %323 = tpu.matmul %321, %322, %cst_220 {dimension_numbers = #tpu.dot_dimension_numbers<[1], [0], [0], [1], [0, 0, 1, 1], [], []>} : vector<8x256xf32>, vector<256x128xf32>, vector<8x128xf32> -> vector<8x128xf32>
    %324 = arith.addf %323, %11 : vector<8x128xf32>
    %325 = math.tanh %324 : vector<8x128xf32>
    %c26_i32 = arith.constant 26 : i32
    %326 = arith.index_cast %c26_i32 : i32 to index
    %c0_221 = arith.constant 0 : index
    %c0_222 = arith.constant 0 : index
    %327 = vector.load %arg10[%326, %c0_221, %c0_222] : memref<28x8x128xf32, #tpu.memory_space<vmem>>, vector<1x8x128xf32>
    %328 = vector.shape_cast %327 : vector<1x8x128xf32> to vector<8x128xf32>
    %c0_223 = arith.constant 0 : index
    %c0_224 = arith.constant 0 : index
    %329 = vector.load %arg3[%c0_223, %c0_224] : memref<128x128xf32, #tpu.memory_space<vmem>>, vector<128x128xf32>
    %cst_225 = arith.constant dense<0.000000e+00> : vector<8x128xf32>
    %330 = tpu.matmul %320, %329, %cst_225 {dimension_numbers = #tpu.dot_dimension_numbers<[1], [0], [0], [1], [0, 0, 1, 1], [], []>} : vector<8x128xf32>, vector<128x128xf32>, vector<8x128xf32> -> vector<8x128xf32>
    %331 = arith.addf %328, %330 : vector<8x128xf32>
    %332 = math.tanh %331 : vector<8x128xf32>
    %333 = tpu.concatenate %332, %325 in 1 : vector<8x128xf32>, vector<8x128xf32> -> vector<8x256xf32>
    %c0_226 = arith.constant 0 : index
    %c0_227 = arith.constant 0 : index
    %334 = vector.load %arg5[%c0_226, %c0_227] : memref<256x128xf32, #tpu.memory_space<vmem>>, vector<256x128xf32>
    %cst_228 = arith.constant dense<0.000000e+00> : vector<8x128xf32>
    %335 = tpu.matmul %333, %334, %cst_228 {dimension_numbers = #tpu.dot_dimension_numbers<[1], [0], [0], [1], [0, 0, 1, 1], [], []>} : vector<8x256xf32>, vector<256x128xf32>, vector<8x128xf32> -> vector<8x128xf32>
    %336 = arith.addf %335, %11 : vector<8x128xf32>
    %337 = math.tanh %336 : vector<8x128xf32>
    %c27_i32 = arith.constant 27 : i32
    %338 = arith.index_cast %c27_i32 : i32 to index
    %c0_229 = arith.constant 0 : index
    %c0_230 = arith.constant 0 : index
    %339 = vector.load %arg10[%338, %c0_229, %c0_230] : memref<28x8x128xf32, #tpu.memory_space<vmem>>, vector<1x8x128xf32>
    %340 = vector.shape_cast %339 : vector<1x8x128xf32> to vector<8x128xf32>
    %c0_231 = arith.constant 0 : index
    %c0_232 = arith.constant 0 : index
    %341 = vector.load %arg3[%c0_231, %c0_232] : memref<128x128xf32, #tpu.memory_space<vmem>>, vector<128x128xf32>
    %cst_233 = arith.constant dense<0.000000e+00> : vector<8x128xf32>
    %342 = tpu.matmul %332, %341, %cst_233 {dimension_numbers = #tpu.dot_dimension_numbers<[1], [0], [0], [1], [0, 0, 1, 1], [], []>} : vector<8x128xf32>, vector<128x128xf32>, vector<8x128xf32> -> vector<8x128xf32>
    %343 = arith.addf %340, %342 : vector<8x128xf32>
    %344 = math.tanh %343 : vector<8x128xf32>
    %345 = tpu.concatenate %344, %337 in 1 : vector<8x128xf32>, vector<8x128xf32> -> vector<8x256xf32>
    %c0_234 = arith.constant 0 : index
    %c0_235 = arith.constant 0 : index
    %346 = vector.load %arg5[%c0_234, %c0_235] : memref<256x128xf32, #tpu.memory_space<vmem>>, vector<256x128xf32>
    %cst_236 = arith.constant dense<0.000000e+00> : vector<8x128xf32>
    %347 = tpu.matmul %345, %346, %cst_236 {dimension_numbers = #tpu.dot_dimension_numbers<[1], [0], [0], [1], [0, 0, 1, 1], [], []>} : vector<8x256xf32>, vector<256x128xf32>, vector<8x128xf32> -> vector<8x128xf32>
    %348 = arith.addf %347, %11 : vector<8x128xf32>
    %349 = math.tanh %348 : vector<8x128xf32>
    %c28_i32 = arith.constant 28 : i32
    %c0_237 = arith.constant 0 : index
    %c0_238 = arith.constant 0 : index
    %350 = vector.load %arg7[%c0_237, %c0_238] : memref<128x128xf32, #tpu.memory_space<vmem>>, vector<128x128xf32>
    %cst_239 = arith.constant dense<0.000000e+00> : vector<8x128xf32>
    %351 = tpu.matmul %349, %350, %cst_239 {dimension_numbers = #tpu.dot_dimension_numbers<[1], [0], [0], [1], [0, 0, 1, 1], [], []>} : vector<8x128xf32>, vector<128x128xf32>, vector<8x128xf32> -> vector<8x128xf32>
    %c0_240 = arith.constant 0 : index
    %c0_241 = arith.constant 0 : index
    %352 = vector.load %arg8[%c0_240, %c0_241] : memref<1x128xf32, #tpu.memory_space<vmem>>, vector<1x128xf32>
    %353 = vector.broadcast %352 : vector<1x128xf32> to vector<8x128xf32>
    %354 = arith.addf %351, %353 : vector<8x128xf32>
    %c0_242 = arith.constant 0 : index
    %c0_243 = arith.constant 0 : index
    %355 = vector.load %arg9[%c0_242, %c0_243] : memref<8x128xf32, #tpu.memory_space<vmem>>, vector<8x128xf32>
    tpu.vector_store %arg9[%c0_242, %c0_243], %354 {strides = array<i32>} : memref<8x128xf32, #tpu.memory_space<vmem>>, vector<8x128xf32>,
    return
  }
  func.func @transform_0(%arg0: i32) -> (i32, i32, i32) {
    %c0_i32 = arith.constant 0 : i32
    %c0_i32_0 = arith.constant 0 : i32
    %c0_i32_1 = arith.constant 0 : i32
    return %c0_i32, %arg0, %c0_i32_0 : i32, i32, i32
  }
  func.func @transform_1(%arg0: i32) -> (i32, i32) {
    %c0_i32 = arith.constant 0 : i32
    %c0_i32_0 = arith.constant 0 : i32
    %c0_i32_1 = arith.constant 0 : i32
    return %c0_i32, %c0_i32_0 : i32, i32
  }
  func.func @transform_2(%arg0: i32) -> (i32, i32) {
    %c0_i32 = arith.constant 0 : i32
    %c0_i32_0 = arith.constant 0 : i32
    %c0_i32_1 = arith.constant 0 : i32
    return %c0_i32, %c0_i32_0 : i32, i32
  }
  func.func @transform_3(%arg0: i32) -> (i32, i32) {
    %c0_i32 = arith.constant 0 : i32
    %c0_i32_0 = arith.constant 0 : i32
    %c0_i32_1 = arith.constant 0 : i32
    return %c0_i32, %c0_i32_0 : i32, i32
  }
  func.func @transform_4(%arg0: i32) -> (i32, i32) {
    %c0_i32 = arith.constant 0 : i32
    %c0_i32_0 = arith.constant 0 : i32
    %c0_i32_1 = arith.constant 0 : i32
    return %c0_i32, %c0_i32_0 : i32, i32
  }
  func.func @transform_5(%arg0: i32) -> (i32, i32) {
    %c0_i32 = arith.constant 0 : i32
    %c0_i32_0 = arith.constant 0 : i32
    %c0_i32_1 = arith.constant 0 : i32
    return %c0_i32, %c0_i32_0 : i32, i32
  }
  func.func @transform_6(%arg0: i32) -> (i32, i32) {
    %c0_i32 = arith.constant 0 : i32
    %c0_i32_0 = arith.constant 0 : i32
    %c0_i32_1 = arith.constant 0 : i32
    return %c0_i32, %c0_i32_0 : i32, i32
  }
  func.func @transform_7(%arg0: i32) -> (i32, i32) {
    %c0_i32 = arith.constant 0 : i32
    %c0_i32_0 = arith.constant 0 : i32
    %c0_i32_1 = arith.constant 0 : i32
    return %c0_i32, %c0_i32_0 : i32, i32
  }
  func.func @transform_8(%arg0: i32) -> (i32, i32) {
    %c0_i32 = arith.constant 0 : i32
    %c0_i32_0 = arith.constant 0 : i32
    return %arg0, %c0_i32 : i32, i32
  }
}

</mosaic_0001>

<llo_original>
// kernel: rnn_model_forward.1
$region0: #{rnn_model_forward.1}
  #allocation0 [shape = 'u32[]', space=smem, size = 0x4, offset = 0x4, fixed_abs, tag = 'smem constant byte address 0x4 - core index']
  #allocation1 [shape = 'u32[144,128]{1,0:T(1,128)}', space=vmem, size = 0x12000, scoped, tag = 'internal scratch']
  #allocation2 [shape = 'f32[28,8,128]{2,1,0:T(8,128)}', space=vmem, size = 0x1c000, scoped, tag = 'scratch operand']
  %s0 = inlined_call_operand.vmem [shape: f32[28,8,28], index: 0, kind: input, shape index: {}]
  %s1 = inlined_call_operand.vmem [shape: f32[28,128], index: 1, kind: input, shape index: {}]
  %s2 = inlined_call_operand.vmem [shape: f32[128,128], index: 2, kind: input, shape index: {}]
  %s3 = inlined_call_operand.vmem [shape: f32[1,128], index: 3, kind: input, shape index: {}]
  %s4 = inlined_call_operand.vmem [shape: f32[256,128], index: 4, kind: input, shape index: {}]
  %s5 = inlined_call_operand.vmem [shape: f32[1,128], index: 5, kind: input, shape index: {}]
  %s6 = inlined_call_operand.vmem [shape: f32[128,128], index: 6, kind: input, shape index: {}]
  %s7 = inlined_call_operand.vmem [shape: f32[1,128], index: 7, kind: input, shape index: {}]
  %s8 = inlined_call_operand.vmem [shape: f32[8,128], index: 8, kind: output, shape index: {}]
  %s9 = sld [smem:[#allocation0]]
  $region42: #{rnn_model_forward.1} parent=0
    _
  %s11 = ssub.s32 1, %s9
  %s12 = scalar_select 0, %s11, %s9
  // Predicated region
  $region2: #{rnn_model_forward.1} parent=0 // pred_check
    _
  $region3: #{rnn_model_forward.1} parent=0 // pred_check_branch
    %14 = sbr.rel (0) target = $region5
  $region4: #{rnn_model_forward.1} parent=0 // pred_region
    _
  $region5: #{rnn_model_forward.1} parent=0 // pred_fallthru
    _
  // Predicated region
  $region6: #{rnn_model_forward.1} parent=0 // pred_check
    _
  $region7: #{rnn_model_forward.1} parent=0 // pred_check_branch
    %16 = sbr.rel (0) target = $region9
  $region8: #{rnn_model_forward.1} parent=0 // pred_region
    _
  $region9: #{rnn_model_forward.1} parent=0 // pred_fallthru
    _
  // Predicated region
  $region10: #{rnn_model_forward.1} parent=0 // pred_check
    _
  $region11: #{rnn_model_forward.1} parent=0 // pred_check_branch
    %18 = sbr.rel (0) target = $region13
  $region12: #{rnn_model_forward.1} parent=0 // pred_region
    _
  $region13: #{rnn_model_forward.1} parent=0 // pred_fallthru
    _
  // Predicated region
  $region14: #{rnn_model_forward.1} parent=0 // pred_check
    _
  $region15: #{rnn_model_forward.1} parent=0 // pred_check_branch
    %20 = sbr.rel (0) target = $region17
  $region16: #{rnn_model_forward.1} parent=0 // pred_region
    _
  $region17: #{rnn_model_forward.1} parent=0 // pred_fallthru
    _
  // Predicated region
  $region18: #{rnn_model_forward.1} parent=0 // pred_check
    _
  $region19: #{rnn_model_forward.1} parent=0 // pred_check_branch
    %22 = sbr.rel (0) target = $region21
  $region20: #{rnn_model_forward.1} parent=0 // pred_region
    _
  $region21: #{rnn_model_forward.1} parent=0 // pred_fallthru
    _
  // Predicated region
  $region22: #{rnn_model_forward.1} parent=0 // pred_check
    _
  $region23: #{rnn_model_forward.1} parent=0 // pred_check_branch
    %24 = sbr.rel (0) target = $region25
  $region24: #{rnn_model_forward.1} parent=0 // pred_region
    _
  $region25: #{rnn_model_forward.1} parent=0 // pred_fallthru
    _
  // Predicated region
  $region26: #{rnn_model_forward.1} parent=0 // pred_check
    _
  $region27: #{rnn_model_forward.1} parent=0 // pred_check_branch
    %26 = sbr.rel (0) target = $region29
  $region28: #{rnn_model_forward.1} parent=0 // pred_region
    _
  $region29: #{rnn_model_forward.1} parent=0 // pred_fallthru
    _
  // Predicated region
  $region30: #{rnn_model_forward.1} parent=0 // pred_check
    _
  $region31: #{rnn_model_forward.1} parent=0 // pred_check_branch
    %28 = sbr.rel (0) target = $region33
  $region32: #{rnn_model_forward.1} parent=0 // pred_region
    _
  $region33: #{rnn_model_forward.1} parent=0 // pred_fallthru
    _
  %v29 = vld [vmem:[%s0] sm:$0xff]
  %v30 = vld [vmem:[%s0 + $0x8] sm:$0xff]
  %v31 = vld [vmem:[%s0 + $0x10] sm:$0xff]
  %v32 = vld [vmem:[%s0 + $0x18] sm:$0xff]
  %v33 = vld [vmem:[%s0 + $0x20] sm:$0xff]
  %v34 = vld [vmem:[%s0 + $0x28] sm:$0xff]
  %v35 = vld [vmem:[%s0 + $0x30] sm:$0xff]
  %v36 = vld [vmem:[%s0 + $0x38] sm:$0xff]
  %v37 = vld [vmem:[%s0 + $0x40] sm:$0xff]
  %v38 = vld [vmem:[%s0 + $0x48] sm:$0xff]
  %v39 = vld [vmem:[%s0 + $0x50] sm:$0xff]
  %v40 = vld [vmem:[%s0 + $0x58] sm:$0xff]
  %v41 = vld [vmem:[%s0 + $0x60] sm:$0xff]
  %v42 = vld [vmem:[%s0 + $0x68] sm:$0xff]
  %v43 = vld [vmem:[%s0 + $0x70] sm:$0xff]
  %v44 = vld [vmem:[%s0 + $0x78] sm:$0xff]
  %v45 = vld [vmem:[%s0 + $0x80] sm:$0xff]
  %v46 = vld [vmem:[%s0 + $0x88] sm:$0xff]
  %v47 = vld [vmem:[%s0 + $0x90] sm:$0xff]
  %v48 = vld [vmem:[%s0 + $0x98] sm:$0xff]
  %v49 = vld [vmem:[%s0 + $0xa0] sm:$0xff]
  %v50 = vld [vmem:[%s0 + $0xa8] sm:$0xff]
  %v51 = vld [vmem:[%s0 + $0xb0] sm:$0xff]
  %v52 = vld [vmem:[%s0 + $0xb8] sm:$0xff]
  %v53 = vld [vmem:[%s0 + $0xc0] sm:$0xff]
  %v54 = vld [vmem:[%s0 + $0xc8] sm:$0xff]
  %v55 = vld [vmem:[%s0 + $0xd0] sm:$0xff]
  %v56 = vld [vmem:[%s0 + $0xd8] sm:$0xff]
  %v57 = vld [vmem:[%s1] sm:$0xff]
  %v58 = vld [vmem:[%s1 + $0x8] sm:$0xff]
  %v59 = vld [vmem:[%s1 + $0x10] sm:$0xff]
  %v60 = vld [vmem:[%s1 + $0x18] sm:$0xf]
  %v61 = vld [vmem:[%s3] sm:$0x1]
  %v63 = vlaneseq
  %v64 = vshrl.u32 %v63, 7
  %v65 = vsub.s32 0, %v64
  %v66 = vrot.slane %v61, %v65
  %vm68 = vcmask 228352
  %v70 = vsel %vm68, %v29, 0
  %v73 = vsel %vm68, %v30, 0
  %v76 = vsel %vm68, %v31, 0
  %v79 = vsel %vm68, %v32, 0
  %v82 = vsel %vm68, %v33, 0
  %v85 = vsel %vm68, %v34, 0
  %v88 = vsel %vm68, %v35, 0
  %v91 = vsel %vm68, %v36, 0
  %v94 = vsel %vm68, %v37, 0
  %v97 = vsel %vm68, %v38, 0
  %v100 = vsel %vm68, %v39, 0
  %v103 = vsel %vm68, %v40, 0
  %v106 = vsel %vm68, %v41, 0
  %v109 = vsel %vm68, %v42, 0
  %v112 = vsel %vm68, %v43, 0
  %v115 = vsel %vm68, %v44, 0
  %v118 = vsel %vm68, %v45, 0
  %v121 = vsel %vm68, %v46, 0
  %v124 = vsel %vm68, %v47, 0
  %v127 = vsel %vm68, %v48, 0
  %v130 = vsel %vm68, %v49, 0
  %v133 = vsel %vm68, %v50, 0
  %v136 = vsel %vm68, %v51, 0
  %v139 = vsel %vm68, %v52, 0
  %v142 = vsel %vm68, %v53, 0
  %v145 = vsel %vm68, %v54, 0
  %v148 = vsel %vm68, %v55, 0
  %v151 = vsel %vm68, %v56, 0
  %vm153 = vcmask 1043456
  %v155 = vsel %vm153, %v60, 0
  %157 = vmatprep.subr.mxu0 0.0
  %158 = vmatpush1.msra.mxu0 0.0
  %159 = vmatprep.subr.mxu0 0.0
  %160 = vmatpush1.msra.mxu0 0.0
  %161 = vmatprep.subr.mxu0 0.0
  %162 = vmatpush1.msra.mxu0 0.0
  %163 = vmatprep.subr.mxu0 0.0
  %164 = vmatpush1.msra.mxu0 0.0
  %165 = vmatprep.subr.mxu0 0.0
  %166 = vmatpush1.msra.mxu0 0.0
  %167 = vmatprep.subr.mxu0 0.0
  %168 = vmatpush1.msra.mxu0 0.0
  %169 = vmatprep.subr.mxu0 0.0
  %170 = vmatpush1.msra.mxu0 0.0
  %171 = vmatprep.subr.mxu0 0.0
  %172 = vmatpush1.msra.mxu0 0.0
  %173 = vmatprep.subr.mxu0 0.0
  %174 = vmatpush1.msra.mxu0 0.0
  %175 = vmatprep.subr.mxu0 0.0
  %176 = vmatpush1.msra.mxu0 0.0
  %177 = vmatprep.subr.mxu0 0.0
  %178 = vmatpush1.msra.mxu0 0.0
  %179 = vmatprep.subr.mxu0 0.0
  %180 = vmatpush1.msra.mxu0 0.0
  %181 = vmatprep.subr.mxu0 0.0
  %182 = vmatpush1.msra.mxu0 %v155
  %183 = vmatprep.subr.mxu0 0.0
  %184 = vmatpush1.msra.mxu0 %v59
  %185 = vmatprep.subr.mxu0 0.0
  %186 = vmatpush1.msra.mxu0 %v58
  %187 = vmatprep.subr.mxu0 0.0
  %188 = vmatpush1.msra.mxu0 %v57
  %189 = vmatprep.subr.mxu0 0.0
  %190 = vmatpush2.msra.mxu0 0.0
  %191 = vmatprep.subr.mxu0 0.0
  %192 = vmatpush2.msra.mxu0 0.0
  %193 = vmatprep.subr.mxu0 0.0
  %194 = vmatpush2.msra.mxu0 0.0
  %195 = vmatprep.subr.mxu0 0.0
  %196 = vmatpush2.msra.mxu0 0.0
  %197 = vmatprep.subr.mxu0 0.0
  %198 = vmatpush2.msra.mxu0 0.0
  %199 = vmatprep.subr.mxu0 0.0
  %200 = vmatpush2.msra.mxu0 0.0
  %201 = vmatprep.subr.mxu0 0.0
  %202 = vmatpush2.msra.mxu0 0.0
  %203 = vmatprep.subr.mxu0 0.0
  %204 = vmatpush2.msra.mxu0 0.0
  %205 = vmatprep.subr.mxu0 0.0
  %206 = vmatpush2.msra.mxu0 0.0
  %207 = vmatprep.subr.mxu0 0.0
  %208 = vmatpush2.msra.mxu0 0.0
  %209 = vmatprep.subr.mxu0 0.0
  %210 = vmatpush2.msra.mxu0 0.0
  %211 = vmatprep.subr.mxu0 0.0
  %212 = vmatpush2.msra.mxu0 0.0
  %213 = vmatprep.subr.mxu0 0.0
  %214 = vmatpush2.msra.mxu0 0.0
  %215 = vmatprep.subr.mxu0 0.0
  %216 = vmatpush2.msra.mxu0 0.0
  %217 = vmatprep.subr.mxu0 0.0
  %218 = vmatpush2.msra.mxu0 0.0
  %219 = vmatprep.subr.mxu0 0.0
  %220 = vmatpush2.msra.mxu0 0.0
  %221 = vmatprep.mubr.f32.mxu0 0.0
  %222 = vmatmul.mubr.f32.gmra.mxu0 %v70
  %v223 = vpop.f32.mrf.mxu0
  %v224 = vadd.f32 %v66, %v223
  %v225 = vpop.f32.mrf.mxu0
  %226 = vmatprep.mubr.f32.mxu0 0.0
  %227 = vmatmul.mubr.f32.gmra.mxu0 %v73
  %v228 = vpop.f32.mrf.mxu0
  %v229 = vadd.f32 %v66, %v228
  %v230 = vpop.f32.mrf.mxu0
  %231 = vmatprep.mubr.f32.mxu0 0.0
  %232 = vmatmul.mubr.f32.gmra.mxu0 %v76
  %v233 = vpop.f32.mrf.mxu0
  %v234 = vadd.f32 %v66, %v233
  %v235 = vpop.f32.mrf.mxu0
  %236 = vmatprep.mubr.f32.mxu0 0.0
  %237 = vmatmul.mubr.f32.gmra.mxu0 %v79
  %v238 = vpop.f32.mrf.mxu0
  %v239 = vadd.f32 %v66, %v238
  %v240 = vpop.f32.mrf.mxu0
  %241 = vmatprep.mubr.f32.mxu0 0.0
  %242 = vmatmul.mubr.f32.gmra.mxu0 %v82
  %v243 = vpop.f32.mrf.mxu0
  %v244 = vadd.f32 %v66, %v243
  %v245 = vpop.f32.mrf.mxu0
  %246 = vmatprep.mubr.f32.mxu0 0.0
  %247 = vmatmul.mubr.f32.gmra.mxu0 %v85
  %v248 = vpop.f32.mrf.mxu0
  %v249 = vadd.f32 %v66, %v248
  %v250 = vpop.f32.mrf.mxu0
  %251 = vmatprep.mubr.f32.mxu0 0.0
  %252 = vmatmul.mubr.f32.gmra.mxu0 %v88
  %v253 = vpop.f32.mrf.mxu0
  %v254 = vadd.f32 %v66, %v253
  %v255 = vpop.f32.mrf.mxu0
  %256 = vmatprep.mubr.f32.mxu0 0.0
  %257 = vmatmul.mubr.f32.gmra.mxu0 %v91
  %v258 = vpop.f32.mrf.mxu0
  %v259 = vadd.f32 %v66, %v258
  %v260 = vpop.f32.mrf.mxu0
  %261 = vmatprep.mubr.f32.mxu0 0.0
  %262 = vmatmul.mubr.f32.gmra.mxu0 %v94
  %v263 = vpop.f32.mrf.mxu0
  %v264 = vadd.f32 %v66, %v263
  %v265 = vpop.f32.mrf.mxu0
  %266 = vmatprep.mubr.f32.mxu0 0.0
  %267 = vmatmul.mubr.f32.gmra.mxu0 %v97
  %v268 = vpop.f32.mrf.mxu0
  %v269 = vadd.f32 %v66, %v268
  %v270 = vpop.f32.mrf.mxu0
  %271 = vmatprep.mubr.f32.mxu0 0.0
  %272 = vmatmul.mubr.f32.gmra.mxu0 %v100
  %v273 = vpop.f32.mrf.mxu0
  %v274 = vadd.f32 %v66, %v273
  %v275 = vpop.f32.mrf.mxu0
  %276 = vmatprep.mubr.f32.mxu0 0.0
  %277 = vmatmul.mubr.f32.gmra.mxu0 %v103
  %v278 = vpop.f32.mrf.mxu0
  %v279 = vadd.f32 %v66, %v278
  %v280 = vpop.f32.mrf.mxu0
  %281 = vmatprep.mubr.f32.mxu0 0.0
  %282 = vmatmul.mubr.f32.gmra.mxu0 %v106
  %v283 = vpop.f32.mrf.mxu0
  %v284 = vadd.f32 %v66, %v283
  %v285 = vpop.f32.mrf.mxu0
  %286 = vmatprep.mubr.f32.mxu0 0.0
  %287 = vmatmul.mubr.f32.gmra.mxu0 %v109
  %v288 = vpop.f32.mrf.mxu0
  %v289 = vadd.f32 %v66, %v288
  %v290 = vpop.f32.mrf.mxu0
  %291 = vmatprep.mubr.f32.mxu0 0.0
  %292 = vmatmul.mubr.f32.gmra.mxu0 %v112
  %v293 = vpop.f32.mrf.mxu0
  %v294 = vadd.f32 %v66, %v293
  %v295 = vpop.f32.mrf.mxu0
  %296 = vmatprep.mubr.f32.mxu0 0.0
  %297 = vmatmul.mubr.f32.gmra.mxu0 %v115
  %v298 = vpop.f32.mrf.mxu0
  %v299 = vadd.f32 %v66, %v298
  %v300 = vpop.f32.mrf.mxu0
  %301 = vmatprep.mubr.f32.mxu0 0.0
  %302 = vmatmul.mubr.f32.gmra.mxu0 %v118
  %v303 = vpop.f32.mrf.mxu0
  %v304 = vadd.f32 %v66, %v303
  %v305 = vpop.f32.mrf.mxu0
  %306 = vmatprep.mubr.f32.mxu0 0.0
  %307 = vmatmul.mubr.f32.gmra.mxu0 %v121
  %v308 = vpop.f32.mrf.mxu0
  %v309 = vadd.f32 %v66, %v308
  %v310 = vpop.f32.mrf.mxu0
  %311 = vmatprep.mubr.f32.mxu0 0.0
  %312 = vmatmul.mubr.f32.gmra.mxu0 %v124
  %v313 = vpop.f32.mrf.mxu0
  %v314 = vadd.f32 %v66, %v313
  %v315 = vpop.f32.mrf.mxu0
  %316 = vmatprep.mubr.f32.mxu0 0.0
  %317 = vmatmul.mubr.f32.gmra.mxu0 %v127
  %v318 = vpop.f32.mrf.mxu0
  %v319 = vadd.f32 %v66, %v318
  %v320 = vpop.f32.mrf.mxu0
  %321 = vmatprep.mubr.f32.mxu0 0.0
  %322 = vmatmul.mubr.f32.gmra.mxu0 %v130
  %v323 = vpop.f32.mrf.mxu0
  %v324 = vadd.f32 %v66, %v323
  %v325 = vpop.f32.mrf.mxu0
  %326 = vmatprep.mubr.f32.mxu0 0.0
  %327 = vmatmul.mubr.f32.gmra.mxu0 %v133
  %v328 = vpop.f32.mrf.mxu0
  %v329 = vadd.f32 %v66, %v328
  %v330 = vpop.f32.mrf.mxu0
  %331 = vmatprep.mubr.f32.mxu0 0.0
  %332 = vmatmul.mubr.f32.gmra.mxu0 %v136
  %v333 = vpop.f32.mrf.mxu0
  %v334 = vadd.f32 %v66, %v333
  %v335 = vpop.f32.mrf.mxu0
  %336 = vmatprep.mubr.f32.mxu0 0.0
  %337 = vmatmul.mubr.f32.gmra.mxu0 %v139
  %v338 = vpop.f32.mrf.mxu0
  %v339 = vadd.f32 %v66, %v338
  %v340 = vpop.f32.mrf.mxu0
  %341 = vmatprep.mubr.f32.mxu0 0.0
  %342 = vmatmul.mubr.f32.gmra.mxu0 %v142
  %v343 = vpop.f32.mrf.mxu0
  %v344 = vadd.f32 %v66, %v343
  %v345 = vpop.f32.mrf.mxu0
  %346 = vmatprep.mubr.f32.mxu0 0.0
  %347 = vmatmul.mubr.f32.gmra.mxu0 %v145
  %v348 = vpop.f32.mrf.mxu0
  %v349 = vadd.f32 %v66, %v348
  %v350 = vpop.f32.mrf.mxu0
  %351 = vmatprep.mubr.f32.mxu0 0.0
  %352 = vmatmul.mubr.f32.gmra.mxu0 %v148
  %v353 = vpop.f32.mrf.mxu0
  %v354 = vadd.f32 %v66, %v353
  %v355 = vpop.f32.mrf.mxu0
  %356 = vmatprep.mubr.f32.mxu0 0.0
  %357 = vmatmul.mubr.f32.gmra.mxu0 %v151
  %v358 = vpop.f32.mrf.mxu0
  %v359 = vadd.f32 %v66, %v358
  %v360 = vpop.f32.mrf.mxu0
  %361 = vdwg.mxu0
  %362 = vst [vmem:[#allocation2] sm:$0xff] %v224
  %363 = vst [vmem:[#allocation2 + $0x8] sm:$0xff] %v229
  %364 = vst [vmem:[#allocation2 + $0x10] sm:$0xff] %v234
  %365 = vst [vmem:[#allocation2 + $0x18] sm:$0xff] %v239
  %366 = vst [vmem:[#allocation2 + $0x20] sm:$0xff] %v244
  %367 = vst [vmem:[#allocation2 + $0x28] sm:$0xff] %v249
  %368 = vst [vmem:[#allocation2 + $0x30] sm:$0xff] %v254
  %369 = vst [vmem:[#allocation2 + $0x38] sm:$0xff] %v259
  %370 = vst [vmem:[#allocation2 + $0x40] sm:$0xff] %v264
  %371 = vst [vmem:[#allocation2 + $0x48] sm:$0xff] %v269
  %372 = vst [vmem:[#allocation2 + $0x50] sm:$0xff] %v274
  %373 = vst [vmem:[#allocation2 + $0x58] sm:$0xff] %v279
  %374 = vst [vmem:[#allocation2 + $0x60] sm:$0xff] %v284
  %375 = vst [vmem:[#allocation2 + $0x68] sm:$0xff] %v289
  %376 = vst [vmem:[#allocation2 + $0x70] sm:$0xff] %v294
  %377 = vst [vmem:[#allocation2 + $0x78] sm:$0xff] %v299
  %378 = vst [vmem:[#allocation2 + $0x80] sm:$0xff] %v304
  %379 = vst [vmem:[#allocation2 + $0x88] sm:$0xff] %v309
  %380 = vst [vmem:[#allocation2 + $0x90] sm:$0xff] %v314
  %381 = vst [vmem:[#allocation2 + $0x98] sm:$0xff] %v319
  %382 = vst [vmem:[#allocation2 + $0xa0] sm:$0xff] %v324
  %383 = vst [vmem:[#allocation2 + $0xa8] sm:$0xff] %v329
  %384 = vst [vmem:[#allocation2 + $0xb0] sm:$0xff] %v334
  %385 = vst [vmem:[#allocation2 + $0xb8] sm:$0xff] %v339
  %386 = vst [vmem:[#allocation2 + $0xc0] sm:$0xff] %v344
  %387 = vst [vmem:[#allocation2 + $0xc8] sm:$0xff] %v349
  %388 = vst [vmem:[#allocation2 + $0xd0] sm:$0xff] %v354
  %389 = vst [vmem:[#allocation2 + $0xd8] sm:$0xff] %v359
  %v390 = vld [vmem:[%s5] sm:$0x1]
  %v392 = vlaneseq
  %v393 = vshrl.u32 %v392, 7
  %v394 = vsub.s32 0, %v393
  %v395 = vrot.slane %v390, %v394
  %v397 = vld [vmem:[#allocation2] sm:$0xff]
  %v398 = vld [vmem:[%s2] sm:$0xff]
  %v399 = vld [vmem:[%s2 + $0x8] sm:$0xff]
  %v400 = vld [vmem:[%s2 + $0x10] sm:$0xff]
  %v401 = vld [vmem:[%s2 + $0x18] sm:$0xff]
  %v402 = vld [vmem:[%s2 + $0x20] sm:$0xff]
  %v403 = vld [vmem:[%s2 + $0x28] sm:$0xff]
  %v404 = vld [vmem:[%s2 + $0x30] sm:$0xff]
  %v405 = vld [vmem:[%s2 + $0x38] sm:$0xff]
  %v406 = vld [vmem:[%s2 + $0x40] sm:$0xff]
  %v407 = vld [vmem:[%s2 + $0x48] sm:$0xff]
  %v408 = vld [vmem:[%s2 + $0x50] sm:$0xff]
  %v409 = vld [vmem:[%s2 + $0x58] sm:$0xff]
  %v410 = vld [vmem:[%s2 + $0x60] sm:$0xff]
  %v411 = vld [vmem:[%s2 + $0x68] sm:$0xff]
  %v412 = vld [vmem:[%s2 + $0x70] sm:$0xff]
  %v413 = vld [vmem:[%s2 + $0x78] sm:$0xff]
  %414 = vmatprep.subr.mxu0 0.0
  %415 = vmatpush1.msra.mxu0 %v413
  %416 = vmatprep.subr.mxu0 0.0
  %417 = vmatpush1.msra.mxu0 %v412
  %418 = vmatprep.subr.mxu0 0.0
  %419 = vmatpush1.msra.mxu0 %v411
  %420 = vmatprep.subr.mxu0 0.0
  %421 = vmatpush1.msra.mxu0 %v410
  %422 = vmatprep.subr.mxu0 0.0
  %423 = vmatpush1.msra.mxu0 %v409
  %424 = vmatprep.subr.mxu0 0.0
  %425 = vmatpush1.msra.mxu0 %v408
  %426 = vmatprep.subr.mxu0 0.0
  %427 = vmatpush1.msra.mxu0 %v407
  %428 = vmatprep.subr.mxu0 0.0
  %429 = vmatpush1.msra.mxu0 %v406
  %430 = vmatprep.subr.mxu0 0.0
  %431 = vmatpush1.msra.mxu0 %v405
  %432 = vmatprep.subr.mxu0 0.0
  %433 = vmatpush1.msra.mxu0 %v404
  %434 = vmatprep.subr.mxu0 0.0
  %435 = vmatpush1.msra.mxu0 %v403
  %436 = vmatprep.subr.mxu0 0.0
  %437 = vmatpush1.msra.mxu0 %v402
  %438 = vmatprep.subr.mxu0 0.0
  %439 = vmatpush1.msra.mxu0 %v401
  %440 = vmatprep.subr.mxu0 0.0
  %441 = vmatpush1.msra.mxu0 %v400
  %442 = vmatprep.subr.mxu0 0.0
  %443 = vmatpush1.msra.mxu0 %v399
  %444 = vmatprep.subr.mxu0 0.0
  %445 = vmatpush1.msra.mxu0 %v398
  %446 = vmatprep.subr.mxu0 0.0
  %447 = vmatpush2.msra.mxu0 0.0
  %448 = vmatprep.subr.mxu0 0.0
  %449 = vmatpush2.msra.mxu0 0.0
  %450 = vmatprep.subr.mxu0 0.0
  %451 = vmatpush2.msra.mxu0 0.0
  %452 = vmatprep.subr.mxu0 0.0
  %453 = vmatpush2.msra.mxu0 0.0
  %454 = vmatprep.subr.mxu0 0.0
  %455 = vmatpush2.msra.mxu0 0.0
  %456 = vmatprep.subr.mxu0 0.0
  %457 = vmatpush2.msra.mxu0 0.0
  %458 = vmatprep.subr.mxu0 0.0
  %459 = vmatpush2.msra.mxu0 0.0
  %460 = vmatprep.subr.mxu0 0.0
  %461 = vmatpush2.msra.mxu0 0.0
  %462 = vmatprep.subr.mxu0 0.0
  %463 = vmatpush2.msra.mxu0 0.0
  %464 = vmatprep.subr.mxu0 0.0
  %465 = vmatpush2.msra.mxu0 0.0
  %466 = vmatprep.subr.mxu0 0.0
  %467 = vmatpush2.msra.mxu0 0.0
  %468 = vmatprep.subr.mxu0 0.0
  %469 = vmatpush2.msra.mxu0 0.0
  %470 = vmatprep.subr.mxu0 0.0
  %471 = vmatpush2.msra.mxu0 0.0
  %472 = vmatprep.subr.mxu0 0.0
  %473 = vmatpush2.msra.mxu0 0.0
  %474 = vmatprep.subr.mxu0 0.0
  %475 = vmatpush2.msra.mxu0 0.0
  %476 = vmatprep.subr.mxu0 0.0
  %477 = vmatpush2.msra.mxu0 0.0
  %478 = vmatprep.mubr.f32.mxu0 0.0
  %479 = vmatmul.mubr.f32.gmra.mxu0 0.0
  %v480 = vpop.f32.mrf.mxu0
  %v481 = vadd.f32 0.0, %v480
  %v482 = vpop.f32.mrf.mxu0
  %483 = vdwg.mxu0
  %v484 = vadd.f32 %v397, %v481
  %v485 = vtanh.pop %v484
  %v486 = vld [vmem:[%s4] sm:$0xff]
  %v487 = vld [vmem:[%s4 + $0x8] sm:$0xff]
  %v488 = vld [vmem:[%s4 + $0x10] sm:$0xff]
  %v489 = vld [vmem:[%s4 + $0x18] sm:$0xff]
  %v490 = vld [vmem:[%s4 + $0x20] sm:$0xff]
  %v491 = vld [vmem:[%s4 + $0x28] sm:$0xff]
  %v492 = vld [vmem:[%s4 + $0x30] sm:$0xff]
  %v493 = vld [vmem:[%s4 + $0x38] sm:$0xff]
  %v494 = vld [vmem:[%s4 + $0x40] sm:$0xff]
  %v495 = vld [vmem:[%s4 + $0x48] sm:$0xff]
  %v496 = vld [vmem:[%s4 + $0x50] sm:$0xff]
  %v497 = vld [vmem:[%s4 + $0x58] sm:$0xff]
  %v498 = vld [vmem:[%s4 + $0x60] sm:$0xff]
  %v499 = vld [vmem:[%s4 + $0x68] sm:$0xff]
  %v500 = vld [vmem:[%s4 + $0x70] sm:$0xff]
  %v501 = vld [vmem:[%s4 + $0x78] sm:$0xff]
  %v502 = vld [vmem:[%s4 + $0x80] sm:$0xff]
  %v503 = vld [vmem:[%s4 + $0x88] sm:$0xff]
  %v504 = vld [vmem:[%s4 + $0x90] sm:$0xff]
  %v505 = vld [vmem:[%s4 + $0x98] sm:$0xff]
  %v506 = vld [vmem:[%s4 + $0xa0] sm:$0xff]
  %v507 = vld [vmem:[%s4 + $0xa8] sm:$0xff]
  %v508 = vld [vmem:[%s4 + $0xb0] sm:$0xff]
  %v509 = vld [vmem:[%s4 + $0xb8] sm:$0xff]
  %v510 = vld [vmem:[%s4 + $0xc0] sm:$0xff]
  %v511 = vld [vmem:[%s4 + $0xc8] sm:$0xff]
  %v512 = vld [vmem:[%s4 + $0xd0] sm:$0xff]
  %v513 = vld [vmem:[%s4 + $0xd8] sm:$0xff]
  %v514 = vld [vmem:[%s4 + $0xe0] sm:$0xff]
  %v515 = vld [vmem:[%s4 + $0xe8] sm:$0xff]
  %v516 = vld [vmem:[%s4 + $0xf0] sm:$0xff]
  %v517 = vld [vmem:[%s4 + $0xf8] sm:$0xff]
  %518 = vmatprep.subr.mxu0 0.0
  %519 = vmatpush1.msra.mxu0 %v501
  %520 = vmatprep.subr.mxu0 0.0
  %521 = vmatpush1.msra.mxu0 %v500
  %522 = vmatprep.subr.mxu0 0.0
  %523 = vmatpush1.msra.mxu0 %v499
  %524 = vmatprep.subr.mxu0 0.0
  %525 = vmatpush1.msra.mxu0 %v498
  %526 = vmatprep.subr.mxu0 0.0
  %527 = vmatpush1.msra.mxu0 %v497
  %528 = vmatprep.subr.mxu0 0.0
  %529 = vmatpush1.msra.mxu0 %v496
  %530 = vmatprep.subr.mxu0 0.0
  %531 = vmatpush1.msra.mxu0 %v495
  %532 = vmatprep.subr.mxu0 0.0
  %533 = vmatpush1.msra.mxu0 %v494
  %534 = vmatprep.subr.mxu0 0.0
  %535 = vmatpush1.msra.mxu0 %v493
  %536 = vmatprep.subr.mxu0 0.0
  %537 = vmatpush1.msra.mxu0 %v492
  %538 = vmatprep.subr.mxu0 0.0
  %539 = vmatpush1.msra.mxu0 %v491
  %540 = vmatprep.subr.mxu0 0.0
  %541 = vmatpush1.msra.mxu0 %v490
  %542 = vmatprep.subr.mxu0 0.0
  %543 = vmatpush1.msra.mxu0 %v489
  %544 = vmatprep.subr.mxu0 0.0
  %545 = vmatpush1.msra.mxu0 %v488
  %546 = vmatprep.subr.mxu0 0.0
  %547 = vmatpush1.msra.mxu0 %v487
  %548 = vmatprep.subr.mxu0 0.0
  %549 = vmatpush1.msra.mxu0 %v486
  %550 = vmatprep.subr.mxu0 0.0
  %551 = vmatpush2.msra.mxu0 %v517
  %552 = vmatprep.subr.mxu0 0.0
  %553 = vmatpush2.msra.mxu0 %v516
  %554 = vmatprep.subr.mxu0 0.0
  %555 = vmatpush2.msra.mxu0 %v515
  %556 = vmatprep.subr.mxu0 0.0
  %557 = vmatpush2.msra.mxu0 %v514
  %558 = vmatprep.subr.mxu0 0.0
  %559 = vmatpush2.msra.mxu0 %v513
  %560 = vmatprep.subr.mxu0 0.0
  %561 = vmatpush2.msra.mxu0 %v512
  %562 = vmatprep.subr.mxu0 0.0
  %563 = vmatpush2.msra.mxu0 %v511
  %564 = vmatprep.subr.mxu0 0.0
  %565 = vmatpush2.msra.mxu0 %v510
  %566 = vmatprep.subr.mxu0 0.0
  %567 = vmatpush2.msra.mxu0 %v509
  %568 = vmatprep.subr.mxu0 0.0
  %569 = vmatpush2.msra.mxu0 %v508
  %570 = vmatprep.subr.mxu0 0.0
  %571 = vmatpush2.msra.mxu0 %v507
  %572 = vmatprep.subr.mxu0 0.0
  %573 = vmatpush2.msra.mxu0 %v506
  %574 = vmatprep.subr.mxu0 0.0
  %575 = vmatpush2.msra.mxu0 %v505
  %576 = vmatprep.subr.mxu0 0.0
  %577 = vmatpush2.msra.mxu0 %v504
  %578 = vmatprep.subr.mxu0 0.0
  %579 = vmatpush2.msra.mxu0 %v503
  %580 = vmatprep.subr.mxu0 0.0
  %581 = vmatpush2.msra.mxu0 %v502
  %582 = vmatprep.mubr.f32.mxu0 0.0
  %583 = vmatmul.mubr.f32.gmra.mxu0 %v485
  %v584 = vpop.f32.mrf.mxu0
  %v585 = vadd.f32 %v395, %v584
  %v586 = vpop.f32.mrf.mxu0
  %587 = vdwg.mxu0
  %v588 = vtanh.pop %v585
  %s589 = scalar_lea.vmem [#allocation2], 8
  %v590 = vld [vmem:[%s589] sm:$0xff]
  %591 = vmatprep.subr.mxu0 0.0
  %592 = vmatpush1.msra.mxu0 %v413
  %593 = vmatprep.subr.mxu0 0.0
  %594 = vmatpush1.msra.mxu0 %v412
  %595 = vmatprep.subr.mxu0 0.0
  %596 = vmatpush1.msra.mxu0 %v411
  %597 = vmatprep.subr.mxu0 0.0
  %598 = vmatpush1.msra.mxu0 %v410
  %599 = vmatprep.subr.mxu0 0.0
  %600 = vmatpush1.msra.mxu0 %v409
  %601 = vmatprep.subr.mxu0 0.0
  %602 = vmatpush1.msra.mxu0 %v408
  %603 = vmatprep.subr.mxu0 0.0
  %604 = vmatpush1.msra.mxu0 %v407
  %605 = vmatprep.subr.mxu0 0.0
  %606 = vmatpush1.msra.mxu0 %v406
  %607 = vmatprep.subr.mxu0 0.0
  %608 = vmatpush1.msra.mxu0 %v405
  %609 = vmatprep.subr.mxu0 0.0
  %610 = vmatpush1.msra.mxu0 %v404
  %611 = vmatprep.subr.mxu0 0.0
  %612 = vmatpush1.msra.mxu0 %v403
  %613 = vmatprep.subr.mxu0 0.0
  %614 = vmatpush1.msra.mxu0 %v402
  %615 = vmatprep.subr.mxu0 0.0
  %616 = vmatpush1.msra.mxu0 %v401
  %617 = vmatprep.subr.mxu0 0.0
  %618 = vmatpush1.msra.mxu0 %v400
  %619 = vmatprep.subr.mxu0 0.0
  %620 = vmatpush1.msra.mxu0 %v399
  %621 = vmatprep.subr.mxu0 0.0
  %622 = vmatpush1.msra.mxu0 %v398
  %623 = vmatprep.subr.mxu0 0.0
  %624 = vmatpush2.msra.mxu0 0.0
  %625 = vmatprep.subr.mxu0 0.0
  %626 = vmatpush2.msra.mxu0 0.0
  %627 = vmatprep.subr.mxu0 0.0
  %628 = vmatpush2.msra.mxu0 0.0
  %629 = vmatprep.subr.mxu0 0.0
  %630 = vmatpush2.msra.mxu0 0.0
  %631 = vmatprep.subr.mxu0 0.0
  %632 = vmatpush2.msra.mxu0 0.0
  %633 = vmatprep.subr.mxu0 0.0
  %634 = vmatpush2.msra.mxu0 0.0
  %635 = vmatprep.subr.mxu0 0.0
  %636 = vmatpush2.msra.mxu0 0.0
  %637 = vmatprep.subr.mxu0 0.0
  %638 = vmatpush2.msra.mxu0 0.0
  %639 = vmatprep.subr.mxu0 0.0
  %640 = vmatpush2.msra.mxu0 0.0
  %641 = vmatprep.subr.mxu0 0.0
  %642 = vmatpush2.msra.mxu0 0.0
  %643 = vmatprep.subr.mxu0 0.0
  %644 = vmatpush2.msra.mxu0 0.0
  %645 = vmatprep.subr.mxu0 0.0
  %646 = vmatpush2.msra.mxu0 0.0
  %647 = vmatprep.subr.mxu0 0.0
  %648 = vmatpush2.msra.mxu0 0.0
  %649 = vmatprep.subr.mxu0 0.0
  %650 = vmatpush2.msra.mxu0 0.0
  %651 = vmatprep.subr.mxu0 0.0
  %652 = vmatpush2.msra.mxu0 0.0
  %653 = vmatprep.subr.mxu0 0.0
  %654 = vmatpush2.msra.mxu0 0.0
  %655 = vmatprep.mubr.f32.mxu0 0.0
  %656 = vmatmul.mubr.f32.gmra.mxu0 %v485
  %v657 = vpop.f32.mrf.mxu0
  %v658 = vadd.f32 0.0, %v657
  %v659 = vpop.f32.mrf.mxu0
  %660 = vdwg.mxu0
  %v661 = vadd.f32 %v590, %v658
  %v662 = vtanh.pop %v661
  %663 = vmatprep.subr.mxu0 0.0
  %664 = vmatpush1.msra.mxu0 %v501
  %665 = vmatprep.subr.mxu0 0.0
  %666 = vmatpush1.msra.mxu0 %v500
  %667 = vmatprep.subr.mxu0 0.0
  %668 = vmatpush1.msra.mxu0 %v499
  %669 = vmatprep.subr.mxu0 0.0
  %670 = vmatpush1.msra.mxu0 %v498
  %671 = vmatprep.subr.mxu0 0.0
  %672 = vmatpush1.msra.mxu0 %v497
  %673 = vmatprep.subr.mxu0 0.0
  %674 = vmatpush1.msra.mxu0 %v496
  %675 = vmatprep.subr.mxu0 0.0
  %676 = vmatpush1.msra.mxu0 %v495
  %677 = vmatprep.subr.mxu0 0.0
  %678 = vmatpush1.msra.mxu0 %v494
  %679 = vmatprep.subr.mxu0 0.0
  %680 = vmatpush1.msra.mxu0 %v493
  %681 = vmatprep.subr.mxu0 0.0
  %682 = vmatpush1.msra.mxu0 %v492
  %683 = vmatprep.subr.mxu0 0.0
  %684 = vmatpush1.msra.mxu0 %v491
  %685 = vmatprep.subr.mxu0 0.0
  %686 = vmatpush1.msra.mxu0 %v490
  %687 = vmatprep.subr.mxu0 0.0
  %688 = vmatpush1.msra.mxu0 %v489
  %689 = vmatprep.subr.mxu0 0.0
  %690 = vmatpush1.msra.mxu0 %v488
  %691 = vmatprep.subr.mxu0 0.0
  %692 = vmatpush1.msra.mxu0 %v487
  %693 = vmatprep.subr.mxu0 0.0
  %694 = vmatpush1.msra.mxu0 %v486
  %695 = vmatprep.subr.mxu0 0.0
  %696 = vmatpush2.msra.mxu0 %v517
  %697 = vmatprep.subr.mxu0 0.0
  %698 = vmatpush2.msra.mxu0 %v516
  %699 = vmatprep.subr.mxu0 0.0
  %700 = vmatpush2.msra.mxu0 %v515
  %701 = vmatprep.subr.mxu0 0.0
  %702 = vmatpush2.msra.mxu0 %v514
  %703 = vmatprep.subr.mxu0 0.0
  %704 = vmatpush2.msra.mxu0 %v513
  %705 = vmatprep.subr.mxu0 0.0
  %706 = vmatpush2.msra.mxu0 %v512
  %707 = vmatprep.subr.mxu0 0.0
  %708 = vmatpush2.msra.mxu0 %v511
  %709 = vmatprep.subr.mxu0 0.0
  %710 = vmatpush2.msra.mxu0 %v510
  %711 = vmatprep.subr.mxu0 0.0
  %712 = vmatpush2.msra.mxu0 %v509
  %713 = vmatprep.subr.mxu0 0.0
  %714 = vmatpush2.msra.mxu0 %v508
  %715 = vmatprep.subr.mxu0 0.0
  %716 = vmatpush2.msra.mxu0 %v507
  %717 = vmatprep.subr.mxu0 0.0
  %718 = vmatpush2.msra.mxu0 %v506
  %719 = vmatprep.subr.mxu0 0.0
  %720 = vmatpush2.msra.mxu0 %v505
  %721 = vmatprep.subr.mxu0 0.0
  %722 = vmatpush2.msra.mxu0 %v504
  %723 = vmatprep.subr.mxu0 0.0
  %724 = vmatpush2.msra.mxu0 %v503
  %725 = vmatprep.subr.mxu0 0.0
  %726 = vmatpush2.msra.mxu0 %v502
  %727 = vmatprep.mubr.f32.mxu0 %v588
  %728 = vmatmul.mubr.f32.gmra.mxu0 %v662
  %v729 = vpop.f32.mrf.mxu0
  %v730 = vadd.f32 %v395, %v729
  %v731 = vpop.f32.mrf.mxu0
  %732 = vdwg.mxu0
  %v733 = vtanh.pop %v730
  %s734 = scalar_lea.vmem [#allocation2], 16
  %v735 = vld [vmem:[%s734] sm:$0xff]
  %736 = vmatprep.subr.mxu0 0.0
  %737 = vmatpush1.msra.mxu0 %v413
  %738 = vmatprep.subr.mxu0 0.0
  %739 = vmatpush1.msra.mxu0 %v412
  %740 = vmatprep.subr.mxu0 0.0
  %741 = vmatpush1.msra.mxu0 %v411
  %742 = vmatprep.subr.mxu0 0.0
  %743 = vmatpush1.msra.mxu0 %v410
  %744 = vmatprep.subr.mxu0 0.0
  %745 = vmatpush1.msra.mxu0 %v409
  %746 = vmatprep.subr.mxu0 0.0
  %747 = vmatpush1.msra.mxu0 %v408
  %748 = vmatprep.subr.mxu0 0.0
  %749 = vmatpush1.msra.mxu0 %v407
  %750 = vmatprep.subr.mxu0 0.0
  %751 = vmatpush1.msra.mxu0 %v406
  %752 = vmatprep.subr.mxu0 0.0
  %753 = vmatpush1.msra.mxu0 %v405
  %754 = vmatprep.subr.mxu0 0.0
  %755 = vmatpush1.msra.mxu0 %v404
  %756 = vmatprep.subr.mxu0 0.0
  %757 = vmatpush1.msra.mxu0 %v403
  %758 = vmatprep.subr.mxu0 0.0
  %759 = vmatpush1.msra.mxu0 %v402
  %760 = vmatprep.subr.mxu0 0.0
  %761 = vmatpush1.msra.mxu0 %v401
  %762 = vmatprep.subr.mxu0 0.0
  %763 = vmatpush1.msra.mxu0 %v400
  %764 = vmatprep.subr.mxu0 0.0
  %765 = vmatpush1.msra.mxu0 %v399
  %766 = vmatprep.subr.mxu0 0.0
  %767 = vmatpush1.msra.mxu0 %v398
  %768 = vmatprep.subr.mxu0 0.0
  %769 = vmatpush2.msra.mxu0 0.0
  %770 = vmatprep.subr.mxu0 0.0
  %771 = vmatpush2.msra.mxu0 0.0
  %772 = vmatprep.subr.mxu0 0.0
  %773 = vmatpush2.msra.mxu0 0.0
  %774 = vmatprep.subr.mxu0 0.0
  %775 = vmatpush2.msra.mxu0 0.0
  %776 = vmatprep.subr.mxu0 0.0
  %777 = vmatpush2.msra.mxu0 0.0
  %778 = vmatprep.subr.mxu0 0.0
  %779 = vmatpush2.msra.mxu0 0.0
  %780 = vmatprep.subr.mxu0 0.0
  %781 = vmatpush2.msra.mxu0 0.0
  %782 = vmatprep.subr.mxu0 0.0
  %783 = vmatpush2.msra.mxu0 0.0
  %784 = vmatprep.subr.mxu0 0.0
  %785 = vmatpush2.msra.mxu0 0.0
  %786 = vmatprep.subr.mxu0 0.0
  %787 = vmatpush2.msra.mxu0 0.0
  %788 = vmatprep.subr.mxu0 0.0
  %789 = vmatpush2.msra.mxu0 0.0
  %790 = vmatprep.subr.mxu0 0.0
  %791 = vmatpush2.msra.mxu0 0.0
  %792 = vmatprep.subr.mxu0 0.0
  %793 = vmatpush2.msra.mxu0 0.0
  %794 = vmatprep.subr.mxu0 0.0
  %795 = vmatpush2.msra.mxu0 0.0
  %796 = vmatprep.subr.mxu0 0.0
  %797 = vmatpush2.msra.mxu0 0.0
  %798 = vmatprep.subr.mxu0 0.0
  %799 = vmatpush2.msra.mxu0 0.0
  %800 = vmatprep.mubr.f32.mxu0 0.0
  %801 = vmatmul.mubr.f32.gmra.mxu0 %v662
  %v802 = vpop.f32.mrf.mxu0
  %v803 = vadd.f32 0.0, %v802
  %v804 = vpop.f32.mrf.mxu0
  %805 = vdwg.mxu0
  %v806 = vadd.f32 %v735, %v803
  %v807 = vtanh.pop %v806
  %808 = vmatprep.subr.mxu0 0.0
  %809 = vmatpush1.msra.mxu0 %v501
  %810 = vmatprep.subr.mxu0 0.0
  %811 = vmatpush1.msra.mxu0 %v500
  %812 = vmatprep.subr.mxu0 0.0
  %813 = vmatpush1.msra.mxu0 %v499
  %814 = vmatprep.subr.mxu0 0.0
  %815 = vmatpush1.msra.mxu0 %v498
  %816 = vmatprep.subr.mxu0 0.0
  %817 = vmatpush1.msra.mxu0 %v497
  %818 = vmatprep.subr.mxu0 0.0
  %819 = vmatpush1.msra.mxu0 %v496
  %820 = vmatprep.subr.mxu0 0.0
  %821 = vmatpush1.msra.mxu0 %v495
  %822 = vmatprep.subr.mxu0 0.0
  %823 = vmatpush1.msra.mxu0 %v494
  %824 = vmatprep.subr.mxu0 0.0
  %825 = vmatpush1.msra.mxu0 %v493
  %826 = vmatprep.subr.mxu0 0.0
  %827 = vmatpush1.msra.mxu0 %v492
  %828 = vmatprep.subr.mxu0 0.0
  %829 = vmatpush1.msra.mxu0 %v491
  %830 = vmatprep.subr.mxu0 0.0
  %831 = vmatpush1.msra.mxu0 %v490
  %832 = vmatprep.subr.mxu0 0.0
  %833 = vmatpush1.msra.mxu0 %v489
  %834 = vmatprep.subr.mxu0 0.0
  %835 = vmatpush1.msra.mxu0 %v488
  %836 = vmatprep.subr.mxu0 0.0
  %837 = vmatpush1.msra.mxu0 %v487
  %838 = vmatprep.subr.mxu0 0.0
  %839 = vmatpush1.msra.mxu0 %v486
  %840 = vmatprep.subr.mxu0 0.0
  %841 = vmatpush2.msra.mxu0 %v517
  %842 = vmatprep.subr.mxu0 0.0
  %843 = vmatpush2.msra.mxu0 %v516
  %844 = vmatprep.subr.mxu0 0.0
  %845 = vmatpush2.msra.mxu0 %v515
  %846 = vmatprep.subr.mxu0 0.0
  %847 = vmatpush2.msra.mxu0 %v514
  %848 = vmatprep.subr.mxu0 0.0
  %849 = vmatpush2.msra.mxu0 %v513
  %850 = vmatprep.subr.mxu0 0.0
  %851 = vmatpush2.msra.mxu0 %v512
  %852 = vmatprep.subr.mxu0 0.0
  %853 = vmatpush2.msra.mxu0 %v511
  %854 = vmatprep.subr.mxu0 0.0
  %855 = vmatpush2.msra.mxu0 %v510
  %856 = vmatprep.subr.mxu0 0.0
  %857 = vmatpush2.msra.mxu0 %v509
  %858 = vmatprep.subr.mxu0 0.0
  %859 = vmatpush2.msra.mxu0 %v508
  %860 = vmatprep.subr.mxu0 0.0
  %861 = vmatpush2.msra.mxu0 %v507
  %862 = vmatprep.subr.mxu0 0.0
  %863 = vmatpush2.msra.mxu0 %v506
  %864 = vmatprep.subr.mxu0 0.0
  %865 = vmatpush2.msra.mxu0 %v505
  %866 = vmatprep.subr.mxu0 0.0
  %867 = vmatpush2.msra.mxu0 %v504
  %868 = vmatprep.subr.mxu0 0.0
  %869 = vmatpush2.msra.mxu0 %v503
  %870 = vmatprep.subr.mxu0 0.0
  %871 = vmatpush2.msra.mxu0 %v502
  %872 = vmatprep.mubr.f32.mxu0 %v733
  %873 = vmatmul.mubr.f32.gmra.mxu0 %v807
  %v874 = vpop.f32.mrf.mxu0
  %v875 = vadd.f32 %v395, %v874
  %v876 = vpop.f32.mrf.mxu0
  %877 = vdwg.mxu0
  %v878 = vtanh.pop %v875
  %s879 = scalar_lea.vmem [#allocation2], 24
  %v880 = vld [vmem:[%s879] sm:$0xff]
  %881 = vmatprep.subr.mxu0 0.0
  %882 = vmatpush1.msra.mxu0 %v413
  %883 = vmatprep.subr.mxu0 0.0
  %884 = vmatpush1.msra.mxu0 %v412
  %885 = vmatprep.subr.mxu0 0.0
  %886 = vmatpush1.msra.mxu0 %v411
  %887 = vmatprep.subr.mxu0 0.0
  %888 = vmatpush1.msra.mxu0 %v410
  %889 = vmatprep.subr.mxu0 0.0
  %890 = vmatpush1.msra.mxu0 %v409
  %891 = vmatprep.subr.mxu0 0.0
  %892 = vmatpush1.msra.mxu0 %v408
  %893 = vmatprep.subr.mxu0 0.0
  %894 = vmatpush1.msra.mxu0 %v407
  %895 = vmatprep.subr.mxu0 0.0
  %896 = vmatpush1.msra.mxu0 %v406
  %897 = vmatprep.subr.mxu0 0.0
  %898 = vmatpush1.msra.mxu0 %v405
  %899 = vmatprep.subr.mxu0 0.0
  %900 = vmatpush1.msra.mxu0 %v404
  %901 = vmatprep.subr.mxu0 0.0
  %902 = vmatpush1.msra.mxu0 %v403
  %903 = vmatprep.subr.mxu0 0.0
  %904 = vmatpush1.msra.mxu0 %v402
  %905 = vmatprep.subr.mxu0 0.0
  %906 = vmatpush1.msra.mxu0 %v401
  %907 = vmatprep.subr.mxu0 0.0
  %908 = vmatpush1.msra.mxu0 %v400
  %909 = vmatprep.subr.mxu0 0.0
  %910 = vmatpush1.msra.mxu0 %v399
  %911 = vmatprep.subr.mxu0 0.0
  %912 = vmatpush1.msra.mxu0 %v398
  %913 = vmatprep.subr.mxu0 0.0
  %914 = vmatpush2.msra.mxu0 0.0
  %915 = vmatprep.subr.mxu0 0.0
  %916 = vmatpush2.msra.mxu0 0.0
  %917 = vmatprep.subr.mxu0 0.0
  %918 = vmatpush2.msra.mxu0 0.0
  %919 = vmatprep.subr.mxu0 0.0
  %920 = vmatpush2.msra.mxu0 0.0
  %921 = vmatprep.subr.mxu0 0.0
  %922 = vmatpush2.msra.mxu0 0.0
  %923 = vmatprep.subr.mxu0 0.0
  %924 = vmatpush2.msra.mxu0 0.0
  %925 = vmatprep.subr.mxu0 0.0
  %926 = vmatpush2.msra.mxu0 0.0
  %927 = vmatprep.subr.mxu0 0.0
  %928 = vmatpush2.msra.mxu0 0.0
  %929 = vmatprep.subr.mxu0 0.0
  %930 = vmatpush2.msra.mxu0 0.0
  %931 = vmatprep.subr.mxu0 0.0
  %932 = vmatpush2.msra.mxu0 0.0
  %933 = vmatprep.subr.mxu0 0.0
  %934 = vmatpush2.msra.mxu0 0.0
  %935 = vmatprep.subr.mxu0 0.0
  %936 = vmatpush2.msra.mxu0 0.0
  %937 = vmatprep.subr.mxu0 0.0
  %938 = vmatpush2.msra.mxu0 0.0
  %939 = vmatprep.subr.mxu0 0.0
  %940 = vmatpush2.msra.mxu0 0.0
  %941 = vmatprep.subr.mxu0 0.0
  %942 = vmatpush2.msra.mxu0 0.0
  %943 = vmatprep.subr.mxu0 0.0
  %944 = vmatpush2.msra.mxu0 0.0
  %945 = vmatprep.mubr.f32.mxu0 0.0
  %946 = vmatmul.mubr.f32.gmra.mxu0 %v807
  %v947 = vpop.f32.mrf.mxu0
  %v948 = vadd.f32 0.0, %v947
  %v949 = vpop.f32.mrf.mxu0
  %950 = vdwg.mxu0
  %v951 = vadd.f32 %v880, %v948
  %v952 = vtanh.pop %v951
  %953 = vmatprep.subr.mxu0 0.0
  %954 = vmatpush1.msra.mxu0 %v501
  %955 = vmatprep.subr.mxu0 0.0
  %956 = vmatpush1.msra.mxu0 %v500
  %957 = vmatprep.subr.mxu0 0.0
  %958 = vmatpush1.msra.mxu0 %v499
  %959 = vmatprep.subr.mxu0 0.0
  %960 = vmatpush1.msra.mxu0 %v498
  %961 = vmatprep.subr.mxu0 0.0
  %962 = vmatpush1.msra.mxu0 %v497
  %963 = vmatprep.subr.mxu0 0.0
  %964 = vmatpush1.msra.mxu0 %v496
  %965 = vmatprep.subr.mxu0 0.0
  %966 = vmatpush1.msra.mxu0 %v495
  %967 = vmatprep.subr.mxu0 0.0
  %968 = vmatpush1.msra.mxu0 %v494
  %969 = vmatprep.subr.mxu0 0.0
  %970 = vmatpush1.msra.mxu0 %v493
  %971 = vmatprep.subr.mxu0 0.0
  %972 = vmatpush1.msra.mxu0 %v492
  %973 = vmatprep.subr.mxu0 0.0
  %974 = vmatpush1.msra.mxu0 %v491
  %975 = vmatprep.subr.mxu0 0.0
  %976 = vmatpush1.msra.mxu0 %v490
  %977 = vmatprep.subr.mxu0 0.0
  %978 = vmatpush1.msra.mxu0 %v489
  %979 = vmatprep.subr.mxu0 0.0
  %980 = vmatpush1.msra.mxu0 %v488
  %981 = vmatprep.subr.mxu0 0.0
  %982 = vmatpush1.msra.mxu0 %v487
  %983 = vmatprep.subr.mxu0 0.0
  %984 = vmatpush1.msra.mxu0 %v486
  %985 = vmatprep.subr.mxu0 0.0
  %986 = vmatpush2.msra.mxu0 %v517
  %987 = vmatprep.subr.mxu0 0.0
  %988 = vmatpush2.msra.mxu0 %v516
  %989 = vmatprep.subr.mxu0 0.0
  %990 = vmatpush2.msra.mxu0 %v515
  %991 = vmatprep.subr.mxu0 0.0
  %992 = vmatpush2.msra.mxu0 %v514
  %993 = vmatprep.subr.mxu0 0.0
  %994 = vmatpush2.msra.mxu0 %v513
  %995 = vmatprep.subr.mxu0 0.0
  %996 = vmatpush2.msra.mxu0 %v512
  %997 = vmatprep.subr.mxu0 0.0
  %998 = vmatpush2.msra.mxu0 %v511
  %999 = vmatprep.subr.mxu0 0.0
  %1000 = vmatpush2.msra.mxu0 %v510
  %1001 = vmatprep.subr.mxu0 0.0
  %1002 = vmatpush2.msra.mxu0 %v509
  %1003 = vmatprep.subr.mxu0 0.0
  %1004 = vmatpush2.msra.mxu0 %v508
  %1005 = vmatprep.subr.mxu0 0.0
  %1006 = vmatpush2.msra.mxu0 %v507
  %1007 = vmatprep.subr.mxu0 0.0
  %1008 = vmatpush2.msra.mxu0 %v506
  %1009 = vmatprep.subr.mxu0 0.0
  %1010 = vmatpush2.msra.mxu0 %v505
  %1011 = vmatprep.subr.mxu0 0.0
  %1012 = vmatpush2.msra.mxu0 %v504
  %1013 = vmatprep.subr.mxu0 0.0
  %1014 = vmatpush2.msra.mxu0 %v503
  %1015 = vmatprep.subr.mxu0 0.0
  %1016 = vmatpush2.msra.mxu0 %v502
  %1017 = vmatprep.mubr.f32.mxu0 %v878
  %1018 = vmatmul.mubr.f32.gmra.mxu0 %v952
  %v1019 = vpop.f32.mrf.mxu0
  %v1020 = vadd.f32 %v395, %v1019
  %v1021 = vpop.f32.mrf.mxu0
  %1022 = vdwg.mxu0
  %v1023 = vtanh.pop %v1020
  %s1024 = scalar_lea.vmem [#allocation2], 32
  %v1025 = vld [vmem:[%s1024] sm:$0xff]
  %1026 = vmatprep.subr.mxu0 0.0
  %1027 = vmatpush1.msra.mxu0 %v413
  %1028 = vmatprep.subr.mxu0 0.0
  %1029 = vmatpush1.msra.mxu0 %v412
  %1030 = vmatprep.subr.mxu0 0.0
  %1031 = vmatpush1.msra.mxu0 %v411
  %1032 = vmatprep.subr.mxu0 0.0
  %1033 = vmatpush1.msra.mxu0 %v410
  %1034 = vmatprep.subr.mxu0 0.0
  %1035 = vmatpush1.msra.mxu0 %v409
  %1036 = vmatprep.subr.mxu0 0.0
  %1037 = vmatpush1.msra.mxu0 %v408
  %1038 = vmatprep.subr.mxu0 0.0
  %1039 = vmatpush1.msra.mxu0 %v407
  %1040 = vmatprep.subr.mxu0 0.0
  %1041 = vmatpush1.msra.mxu0 %v406
  %1042 = vmatprep.subr.mxu0 0.0
  %1043 = vmatpush1.msra.mxu0 %v405
  %1044 = vmatprep.subr.mxu0 0.0
  %1045 = vmatpush1.msra.mxu0 %v404
  %1046 = vmatprep.subr.mxu0 0.0
  %1047 = vmatpush1.msra.mxu0 %v403
  %1048 = vmatprep.subr.mxu0 0.0
  %1049 = vmatpush1.msra.mxu0 %v402
  %1050 = vmatprep.subr.mxu0 0.0
  %1051 = vmatpush1.msra.mxu0 %v401
  %1052 = vmatprep.subr.mxu0 0.0
  %1053 = vmatpush1.msra.mxu0 %v400
  %1054 = vmatprep.subr.mxu0 0.0
  %1055 = vmatpush1.msra.mxu0 %v399
  %1056 = vmatprep.subr.mxu0 0.0
  %1057 = vmatpush1.msra.mxu0 %v398
  %1058 = vmatprep.subr.mxu0 0.0
  %1059 = vmatpush2.msra.mxu0 0.0
  %1060 = vmatprep.subr.mxu0 0.0
  %1061 = vmatpush2.msra.mxu0 0.0
  %1062 = vmatprep.subr.mxu0 0.0
  %1063 = vmatpush2.msra.mxu0 0.0
  %1064 = vmatprep.subr.mxu0 0.0
  %1065 = vmatpush2.msra.mxu0 0.0
  %1066 = vmatprep.subr.mxu0 0.0
  %1067 = vmatpush2.msra.mxu0 0.0
  %1068 = vmatprep.subr.mxu0 0.0
  %1069 = vmatpush2.msra.mxu0 0.0
  %1070 = vmatprep.subr.mxu0 0.0
  %1071 = vmatpush2.msra.mxu0 0.0
  %1072 = vmatprep.subr.mxu0 0.0
  %1073 = vmatpush2.msra.mxu0 0.0
  %1074 = vmatprep.subr.mxu0 0.0
  %1075 = vmatpush2.msra.mxu0 0.0
  %1076 = vmatprep.subr.mxu0 0.0
  %1077 = vmatpush2.msra.mxu0 0.0
  %1078 = vmatprep.subr.mxu0 0.0
  %1079 = vmatpush2.msra.mxu0 0.0
  %1080 = vmatprep.subr.mxu0 0.0
  %1081 = vmatpush2.msra.mxu0 0.0
  %1082 = vmatprep.subr.mxu0 0.0
  %1083 = vmatpush2.msra.mxu0 0.0
  %1084 = vmatprep.subr.mxu0 0.0
  %1085 = vmatpush2.msra.mxu0 0.0
  %1086 = vmatprep.subr.mxu0 0.0
  %1087 = vmatpush2.msra.mxu0 0.0
  %1088 = vmatprep.subr.mxu0 0.0
  %1089 = vmatpush2.msra.mxu0 0.0
  %1090 = vmatprep.mubr.f32.mxu0 0.0
  %1091 = vmatmul.mubr.f32.gmra.mxu0 %v952
  %v1092 = vpop.f32.mrf.mxu0
  %v1093 = vadd.f32 0.0, %v1092
  %v1094 = vpop.f32.mrf.mxu0
  %1095 = vdwg.mxu0
  %v1096 = vadd.f32 %v1025, %v1093
  %v1097 = vtanh.pop %v1096
  %1098 = vmatprep.subr.mxu0 0.0
  %1099 = vmatpush1.msra.mxu0 %v501
  %1100 = vmatprep.subr.mxu0 0.0
  %1101 = vmatpush1.msra.mxu0 %v500
  %1102 = vmatprep.subr.mxu0 0.0
  %1103 = vmatpush1.msra.mxu0 %v499
  %1104 = vmatprep.subr.mxu0 0.0
  %1105 = vmatpush1.msra.mxu0 %v498
  %1106 = vmatprep.subr.mxu0 0.0
  %1107 = vmatpush1.msra.mxu0 %v497
  %1108 = vmatprep.subr.mxu0 0.0
  %1109 = vmatpush1.msra.mxu0 %v496
  %1110 = vmatprep.subr.mxu0 0.0
  %1111 = vmatpush1.msra.mxu0 %v495
  %1112 = vmatprep.subr.mxu0 0.0
  %1113 = vmatpush1.msra.mxu0 %v494
  %1114 = vmatprep.subr.mxu0 0.0
  %1115 = vmatpush1.msra.mxu0 %v493
  %1116 = vmatprep.subr.mxu0 0.0
  %1117 = vmatpush1.msra.mxu0 %v492
  %1118 = vmatprep.subr.mxu0 0.0
  %1119 = vmatpush1.msra.mxu0 %v491
  %1120 = vmatprep.subr.mxu0 0.0
  %1121 = vmatpush1.msra.mxu0 %v490
  %1122 = vmatprep.subr.mxu0 0.0
  %1123 = vmatpush1.msra.mxu0 %v489
  %1124 = vmatprep.subr.mxu0 0.0
  %1125 = vmatpush1.msra.mxu0 %v488
  %1126 = vmatprep.subr.mxu0 0.0
  %1127 = vmatpush1.msra.mxu0 %v487
  %1128 = vmatprep.subr.mxu0 0.0
  %1129 = vmatpush1.msra.mxu0 %v486
  %1130 = vmatprep.subr.mxu0 0.0
  %1131 = vmatpush2.msra.mxu0 %v517
  %1132 = vmatprep.subr.mxu0 0.0
  %1133 = vmatpush2.msra.mxu0 %v516
  %1134 = vmatprep.subr.mxu0 0.0
  %1135 = vmatpush2.msra.mxu0 %v515
  %1136 = vmatprep.subr.mxu0 0.0
  %1137 = vmatpush2.msra.mxu0 %v514
  %1138 = vmatprep.subr.mxu0 0.0
  %1139 = vmatpush2.msra.mxu0 %v513
  %1140 = vmatprep.subr.mxu0 0.0
  %1141 = vmatpush2.msra.mxu0 %v512
  %1142 = vmatprep.subr.mxu0 0.0
  %1143 = vmatpush2.msra.mxu0 %v511
  %1144 = vmatprep.subr.mxu0 0.0
  %1145 = vmatpush2.msra.mxu0 %v510
  %1146 = vmatprep.subr.mxu0 0.0
  %1147 = vmatpush2.msra.mxu0 %v509
  %1148 = vmatprep.subr.mxu0 0.0
  %1149 = vmatpush2.msra.mxu0 %v508
  %1150 = vmatprep.subr.mxu0 0.0
  %1151 = vmatpush2.msra.mxu0 %v507
  %1152 = vmatprep.subr.mxu0 0.0
  %1153 = vmatpush2.msra.mxu0 %v506
  %1154 = vmatprep.subr.mxu0 0.0
  %1155 = vmatpush2.msra.mxu0 %v505
  %1156 = vmatprep.subr.mxu0 0.0
  %1157 = vmatpush2.msra.mxu0 %v504
  %1158 = vmatprep.subr.mxu0 0.0
  %1159 = vmatpush2.msra.mxu0 %v503
  %1160 = vmatprep.subr.mxu0 0.0
  %1161 = vmatpush2.msra.mxu0 %v502
  %1162 = vmatprep.mubr.f32.mxu0 %v1023
  %1163 = vmatmul.mubr.f32.gmra.mxu0 %v1097
  %v1164 = vpop.f32.mrf.mxu0
  %v1165 = vadd.f32 %v395, %v1164
  %v1166 = vpop.f32.mrf.mxu0
  %1167 = vdwg.mxu0
  %v1168 = vtanh.pop %v1165
  %s1169 = scalar_lea.vmem [#allocation2], 40
  %v1170 = vld [vmem:[%s1169] sm:$0xff]
  %1171 = vmatprep.subr.mxu0 0.0
  %1172 = vmatpush1.msra.mxu0 %v413
  %1173 = vmatprep.subr.mxu0 0.0
  %1174 = vmatpush1.msra.mxu0 %v412
  %1175 = vmatprep.subr.mxu0 0.0
  %1176 = vmatpush1.msra.mxu0 %v411
  %1177 = vmatprep.subr.mxu0 0.0
  %1178 = vmatpush1.msra.mxu0 %v410
  %1179 = vmatprep.subr.mxu0 0.0
  %1180 = vmatpush1.msra.mxu0 %v409
  %1181 = vmatprep.subr.mxu0 0.0
  %1182 = vmatpush1.msra.mxu0 %v408
  %1183 = vmatprep.subr.mxu0 0.0
  %1184 = vmatpush1.msra.mxu0 %v407
  %1185 = vmatprep.subr.mxu0 0.0
  %1186 = vmatpush1.msra.mxu0 %v406
  %1187 = vmatprep.subr.mxu0 0.0
  %1188 = vmatpush1.msra.mxu0 %v405
  %1189 = vmatprep.subr.mxu0 0.0
  %1190 = vmatpush1.msra.mxu0 %v404
  %1191 = vmatprep.subr.mxu0 0.0
  %1192 = vmatpush1.msra.mxu0 %v403
  %1193 = vmatprep.subr.mxu0 0.0
  %1194 = vmatpush1.msra.mxu0 %v402
  %1195 = vmatprep.subr.mxu0 0.0
  %1196 = vmatpush1.msra.mxu0 %v401
  %1197 = vmatprep.subr.mxu0 0.0
  %1198 = vmatpush1.msra.mxu0 %v400
  %1199 = vmatprep.subr.mxu0 0.0
  %1200 = vmatpush1.msra.mxu0 %v399
  %1201 = vmatprep.subr.mxu0 0.0
  %1202 = vmatpush1.msra.mxu0 %v398
  %1203 = vmatprep.subr.mxu0 0.0
  %1204 = vmatpush2.msra.mxu0 0.0
  %1205 = vmatprep.subr.mxu0 0.0
  %1206 = vmatpush2.msra.mxu0 0.0
  %1207 = vmatprep.subr.mxu0 0.0
  %1208 = vmatpush2.msra.mxu0 0.0
  %1209 = vmatprep.subr.mxu0 0.0
  %1210 = vmatpush2.msra.mxu0 0.0
  %1211 = vmatprep.subr.mxu0 0.0
  %1212 = vmatpush2.msra.mxu0 0.0
  %1213 = vmatprep.subr.mxu0 0.0
  %1214 = vmatpush2.msra.mxu0 0.0
  %1215 = vmatprep.subr.mxu0 0.0
  %1216 = vmatpush2.msra.mxu0 0.0
  %1217 = vmatprep.subr.mxu0 0.0
  %1218 = vmatpush2.msra.mxu0 0.0
  %1219 = vmatprep.subr.mxu0 0.0
  %1220 = vmatpush2.msra.mxu0 0.0
  %1221 = vmatprep.subr.mxu0 0.0
  %1222 = vmatpush2.msra.mxu0 0.0
  %1223 = vmatprep.subr.mxu0 0.0
  %1224 = vmatpush2.msra.mxu0 0.0
  %1225 = vmatprep.subr.mxu0 0.0
  %1226 = vmatpush2.msra.mxu0 0.0
  %1227 = vmatprep.subr.mxu0 0.0
  %1228 = vmatpush2.msra.mxu0 0.0
  %1229 = vmatprep.subr.mxu0 0.0
  %1230 = vmatpush2.msra.mxu0 0.0
  %1231 = vmatprep.subr.mxu0 0.0
  %1232 = vmatpush2.msra.mxu0 0.0
  %1233 = vmatprep.subr.mxu0 0.0
  %1234 = vmatpush2.msra.mxu0 0.0
  %1235 = vmatprep.mubr.f32.mxu0 0.0
  %1236 = vmatmul.mubr.f32.gmra.mxu0 %v1097
  %v1237 = vpop.f32.mrf.mxu0
  %v1238 = vadd.f32 0.0, %v1237
  %v1239 = vpop.f32.mrf.mxu0
  %1240 = vdwg.mxu0
  %v1241 = vadd.f32 %v1170, %v1238
  %v1242 = vtanh.pop %v1241
  %1243 = vmatprep.subr.mxu0 0.0
  %1244 = vmatpush1.msra.mxu0 %v501
  %1245 = vmatprep.subr.mxu0 0.0
  %1246 = vmatpush1.msra.mxu0 %v500
  %1247 = vmatprep.subr.mxu0 0.0
  %1248 = vmatpush1.msra.mxu0 %v499
  %1249 = vmatprep.subr.mxu0 0.0
  %1250 = vmatpush1.msra.mxu0 %v498
  %1251 = vmatprep.subr.mxu0 0.0
  %1252 = vmatpush1.msra.mxu0 %v497
  %1253 = vmatprep.subr.mxu0 0.0
  %1254 = vmatpush1.msra.mxu0 %v496
  %1255 = vmatprep.subr.mxu0 0.0
  %1256 = vmatpush1.msra.mxu0 %v495
  %1257 = vmatprep.subr.mxu0 0.0
  %1258 = vmatpush1.msra.mxu0 %v494
  %1259 = vmatprep.subr.mxu0 0.0
  %1260 = vmatpush1.msra.mxu0 %v493
  %1261 = vmatprep.subr.mxu0 0.0
  %1262 = vmatpush1.msra.mxu0 %v492
  %1263 = vmatprep.subr.mxu0 0.0
  %1264 = vmatpush1.msra.mxu0 %v491
  %1265 = vmatprep.subr.mxu0 0.0
  %1266 = vmatpush1.msra.mxu0 %v490
  %1267 = vmatprep.subr.mxu0 0.0
  %1268 = vmatpush1.msra.mxu0 %v489
  %1269 = vmatprep.subr.mxu0 0.0
  %1270 = vmatpush1.msra.mxu0 %v488
  %1271 = vmatprep.subr.mxu0 0.0
  %1272 = vmatpush1.msra.mxu0 %v487
  %1273 = vmatprep.subr.mxu0 0.0
  %1274 = vmatpush1.msra.mxu0 %v486
  %1275 = vmatprep.subr.mxu0 0.0
  %1276 = vmatpush2.msra.mxu0 %v517
  %1277 = vmatprep.subr.mxu0 0.0
  %1278 = vmatpush2.msra.mxu0 %v516
  %1279 = vmatprep.subr.mxu0 0.0
  %1280 = vmatpush2.msra.mxu0 %v515
  %1281 = vmatprep.subr.mxu0 0.0
  %1282 = vmatpush2.msra.mxu0 %v514
  %1283 = vmatprep.subr.mxu0 0.0
  %1284 = vmatpush2.msra.mxu0 %v513
  %1285 = vmatprep.subr.mxu0 0.0
  %1286 = vmatpush2.msra.mxu0 %v512
  %1287 = vmatprep.subr.mxu0 0.0
  %1288 = vmatpush2.msra.mxu0 %v511
  %1289 = vmatprep.subr.mxu0 0.0
  %1290 = vmatpush2.msra.mxu0 %v510
  %1291 = vmatprep.subr.mxu0 0.0
  %1292 = vmatpush2.msra.mxu0 %v509
  %1293 = vmatprep.subr.mxu0 0.0
  %1294 = vmatpush2.msra.mxu0 %v508
  %1295 = vmatprep.subr.mxu0 0.0
  %1296 = vmatpush2.msra.mxu0 %v507
  %1297 = vmatprep.subr.mxu0 0.0
  %1298 = vmatpush2.msra.mxu0 %v506
  %1299 = vmatprep.subr.mxu0 0.0
  %1300 = vmatpush2.msra.mxu0 %v505
  %1301 = vmatprep.subr.mxu0 0.0
  %1302 = vmatpush2.msra.mxu0 %v504
  %1303 = vmatprep.subr.mxu0 0.0
  %1304 = vmatpush2.msra.mxu0 %v503
  %1305 = vmatprep.subr.mxu0 0.0
  %1306 = vmatpush2.msra.mxu0 %v502
  %1307 = vmatprep.mubr.f32.mxu0 %v1168
  %1308 = vmatmul.mubr.f32.gmra.mxu0 %v1242
  %v1309 = vpop.f32.mrf.mxu0
  %v1310 = vadd.f32 %v395, %v1309
  %v1311 = vpop.f32.mrf.mxu0
  %1312 = vdwg.mxu0
  %v1313 = vtanh.pop %v1310
  %s1314 = scalar_lea.vmem [#allocation2], 48
  %v1315 = vld [vmem:[%s1314] sm:$0xff]
  %1316 = vmatprep.subr.mxu0 0.0
  %1317 = vmatpush1.msra.mxu0 %v413
  %1318 = vmatprep.subr.mxu0 0.0
  %1319 = vmatpush1.msra.mxu0 %v412
  %1320 = vmatprep.subr.mxu0 0.0
  %1321 = vmatpush1.msra.mxu0 %v411
  %1322 = vmatprep.subr.mxu0 0.0
  %1323 = vmatpush1.msra.mxu0 %v410
  %1324 = vmatprep.subr.mxu0 0.0
  %1325 = vmatpush1.msra.mxu0 %v409
  %1326 = vmatprep.subr.mxu0 0.0
  %1327 = vmatpush1.msra.mxu0 %v408
  %1328 = vmatprep.subr.mxu0 0.0
  %1329 = vmatpush1.msra.mxu0 %v407
  %1330 = vmatprep.subr.mxu0 0.0
  %1331 = vmatpush1.msra.mxu0 %v406
  %1332 = vmatprep.subr.mxu0 0.0
  %1333 = vmatpush1.msra.mxu0 %v405
  %1334 = vmatprep.subr.mxu0 0.0
  %1335 = vmatpush1.msra.mxu0 %v404
  %1336 = vmatprep.subr.mxu0 0.0
  %1337 = vmatpush1.msra.mxu0 %v403
  %1338 = vmatprep.subr.mxu0 0.0
  %1339 = vmatpush1.msra.mxu0 %v402
  %1340 = vmatprep.subr.mxu0 0.0
  %1341 = vmatpush1.msra.mxu0 %v401
  %1342 = vmatprep.subr.mxu0 0.0
  %1343 = vmatpush1.msra.mxu0 %v400
  %1344 = vmatprep.subr.mxu0 0.0
  %1345 = vmatpush1.msra.mxu0 %v399
  %1346 = vmatprep.subr.mxu0 0.0
  %1347 = vmatpush1.msra.mxu0 %v398
  %1348 = vmatprep.subr.mxu0 0.0
  %1349 = vmatpush2.msra.mxu0 0.0
  %1350 = vmatprep.subr.mxu0 0.0
  %1351 = vmatpush2.msra.mxu0 0.0
  %1352 = vmatprep.subr.mxu0 0.0
  %1353 = vmatpush2.msra.mxu0 0.0
  %1354 = vmatprep.subr.mxu0 0.0
  %1355 = vmatpush2.msra.mxu0 0.0
  %1356 = vmatprep.subr.mxu0 0.0
  %1357 = vmatpush2.msra.mxu0 0.0
  %1358 = vmatprep.subr.mxu0 0.0
  %1359 = vmatpush2.msra.mxu0 0.0
  %1360 = vmatprep.subr.mxu0 0.0
  %1361 = vmatpush2.msra.mxu0 0.0
  %1362 = vmatprep.subr.mxu0 0.0
  %1363 = vmatpush2.msra.mxu0 0.0
  %1364 = vmatprep.subr.mxu0 0.0
  %1365 = vmatpush2.msra.mxu0 0.0
  %1366 = vmatprep.subr.mxu0 0.0
  %1367 = vmatpush2.msra.mxu0 0.0
  %1368 = vmatprep.subr.mxu0 0.0
  %1369 = vmatpush2.msra.mxu0 0.0
  %1370 = vmatprep.subr.mxu0 0.0
  %1371 = vmatpush2.msra.mxu0 0.0
  %1372 = vmatprep.subr.mxu0 0.0
  %1373 = vmatpush2.msra.mxu0 0.0
  %1374 = vmatprep.subr.mxu0 0.0
  %1375 = vmatpush2.msra.mxu0 0.0
  %1376 = vmatprep.subr.mxu0 0.0
  %1377 = vmatpush2.msra.mxu0 0.0
  %1378 = vmatprep.subr.mxu0 0.0
  %1379 = vmatpush2.msra.mxu0 0.0
  %1380 = vmatprep.mubr.f32.mxu0 0.0
  %1381 = vmatmul.mubr.f32.gmra.mxu0 %v1242
  %v1382 = vpop.f32.mrf.mxu0
  %v1383 = vadd.f32 0.0, %v1382
  %v1384 = vpop.f32.mrf.mxu0
  %1385 = vdwg.mxu0
  %v1386 = vadd.f32 %v1315, %v1383
  %v1387 = vtanh.pop %v1386
  %1388 = vmatprep.subr.mxu0 0.0
  %1389 = vmatpush1.msra.mxu0 %v501
  %1390 = vmatprep.subr.mxu0 0.0
  %1391 = vmatpush1.msra.mxu0 %v500
  %1392 = vmatprep.subr.mxu0 0.0
  %1393 = vmatpush1.msra.mxu0 %v499
  %1394 = vmatprep.subr.mxu0 0.0
  %1395 = vmatpush1.msra.mxu0 %v498
  %1396 = vmatprep.subr.mxu0 0.0
  %1397 = vmatpush1.msra.mxu0 %v497
  %1398 = vmatprep.subr.mxu0 0.0
  %1399 = vmatpush1.msra.mxu0 %v496
  %1400 = vmatprep.subr.mxu0 0.0
  %1401 = vmatpush1.msra.mxu0 %v495
  %1402 = vmatprep.subr.mxu0 0.0
  %1403 = vmatpush1.msra.mxu0 %v494
  %1404 = vmatprep.subr.mxu0 0.0
  %1405 = vmatpush1.msra.mxu0 %v493
  %1406 = vmatprep.subr.mxu0 0.0
  %1407 = vmatpush1.msra.mxu0 %v492
  %1408 = vmatprep.subr.mxu0 0.0
  %1409 = vmatpush1.msra.mxu0 %v491
  %1410 = vmatprep.subr.mxu0 0.0
  %1411 = vmatpush1.msra.mxu0 %v490
  %1412 = vmatprep.subr.mxu0 0.0
  %1413 = vmatpush1.msra.mxu0 %v489
  %1414 = vmatprep.subr.mxu0 0.0
  %1415 = vmatpush1.msra.mxu0 %v488
  %1416 = vmatprep.subr.mxu0 0.0
  %1417 = vmatpush1.msra.mxu0 %v487
  %1418 = vmatprep.subr.mxu0 0.0
  %1419 = vmatpush1.msra.mxu0 %v486
  %1420 = vmatprep.subr.mxu0 0.0
  %1421 = vmatpush2.msra.mxu0 %v517
  %1422 = vmatprep.subr.mxu0 0.0
  %1423 = vmatpush2.msra.mxu0 %v516
  %1424 = vmatprep.subr.mxu0 0.0
  %1425 = vmatpush2.msra.mxu0 %v515
  %1426 = vmatprep.subr.mxu0 0.0
  %1427 = vmatpush2.msra.mxu0 %v514
  %1428 = vmatprep.subr.mxu0 0.0
  %1429 = vmatpush2.msra.mxu0 %v513
  %1430 = vmatprep.subr.mxu0 0.0
  %1431 = vmatpush2.msra.mxu0 %v512
  %1432 = vmatprep.subr.mxu0 0.0
  %1433 = vmatpush2.msra.mxu0 %v511
  %1434 = vmatprep.subr.mxu0 0.0
  %1435 = vmatpush2.msra.mxu0 %v510
  %1436 = vmatprep.subr.mxu0 0.0
  %1437 = vmatpush2.msra.mxu0 %v509
  %1438 = vmatprep.subr.mxu0 0.0
  %1439 = vmatpush2.msra.mxu0 %v508
  %1440 = vmatprep.subr.mxu0 0.0
  %1441 = vmatpush2.msra.mxu0 %v507
  %1442 = vmatprep.subr.mxu0 0.0
  %1443 = vmatpush2.msra.mxu0 %v506
  %1444 = vmatprep.subr.mxu0 0.0
  %1445 = vmatpush2.msra.mxu0 %v505
  %1446 = vmatprep.subr.mxu0 0.0
  %1447 = vmatpush2.msra.mxu0 %v504
  %1448 = vmatprep.subr.mxu0 0.0
  %1449 = vmatpush2.msra.mxu0 %v503
  %1450 = vmatprep.subr.mxu0 0.0
  %1451 = vmatpush2.msra.mxu0 %v502
  %1452 = vmatprep.mubr.f32.mxu0 %v1313
  %1453 = vmatmul.mubr.f32.gmra.mxu0 %v1387
  %v1454 = vpop.f32.mrf.mxu0
  %v1455 = vadd.f32 %v395, %v1454
  %v1456 = vpop.f32.mrf.mxu0
  %1457 = vdwg.mxu0
  %v1458 = vtanh.pop %v1455
  %s1459 = scalar_lea.vmem [#allocation2], 56
  %v1460 = vld [vmem:[%s1459] sm:$0xff]
  %1461 = vmatprep.subr.mxu0 0.0
  %1462 = vmatpush1.msra.mxu0 %v413
  %1463 = vmatprep.subr.mxu0 0.0
  %1464 = vmatpush1.msra.mxu0 %v412
  %1465 = vmatprep.subr.mxu0 0.0
  %1466 = vmatpush1.msra.mxu0 %v411
  %1467 = vmatprep.subr.mxu0 0.0
  %1468 = vmatpush1.msra.mxu0 %v410
  %1469 = vmatprep.subr.mxu0 0.0
  %1470 = vmatpush1.msra.mxu0 %v409
  %1471 = vmatprep.subr.mxu0 0.0
  %1472 = vmatpush1.msra.mxu0 %v408
  %1473 = vmatprep.subr.mxu0 0.0
  %1474 = vmatpush1.msra.mxu0 %v407
  %1475 = vmatprep.subr.mxu0 0.0
  %1476 = vmatpush1.msra.mxu0 %v406
  %1477 = vmatprep.subr.mxu0 0.0
  %1478 = vmatpush1.msra.mxu0 %v405
  %1479 = vmatprep.subr.mxu0 0.0
  %1480 = vmatpush1.msra.mxu0 %v404
  %1481 = vmatprep.subr.mxu0 0.0
  %1482 = vmatpush1.msra.mxu0 %v403
  %1483 = vmatprep.subr.mxu0 0.0
  %1484 = vmatpush1.msra.mxu0 %v402
  %1485 = vmatprep.subr.mxu0 0.0
  %1486 = vmatpush1.msra.mxu0 %v401
  %1487 = vmatprep.subr.mxu0 0.0
  %1488 = vmatpush1.msra.mxu0 %v400
  %1489 = vmatprep.subr.mxu0 0.0
  %1490 = vmatpush1.msra.mxu0 %v399
  %1491 = vmatprep.subr.mxu0 0.0
  %1492 = vmatpush1.msra.mxu0 %v398
  %1493 = vmatprep.subr.mxu0 0.0
  %1494 = vmatpush2.msra.mxu0 0.0
  %1495 = vmatprep.subr.mxu0 0.0
  %1496 = vmatpush2.msra.mxu0 0.0
  %1497 = vmatprep.subr.mxu0 0.0
  %1498 = vmatpush2.msra.mxu0 0.0
  %1499 = vmatprep.subr.mxu0 0.0
  %1500 = vmatpush2.msra.mxu0 0.0
  %1501 = vmatprep.subr.mxu0 0.0
  %1502 = vmatpush2.msra.mxu0 0.0
  %1503 = vmatprep.subr.mxu0 0.0
  %1504 = vmatpush2.msra.mxu0 0.0
  %1505 = vmatprep.subr.mxu0 0.0
  %1506 = vmatpush2.msra.mxu0 0.0
  %1507 = vmatprep.subr.mxu0 0.0
  %1508 = vmatpush2.msra.mxu0 0.0
  %1509 = vmatprep.subr.mxu0 0.0
  %1510 = vmatpush2.msra.mxu0 0.0
  %1511 = vmatprep.subr.mxu0 0.0
  %1512 = vmatpush2.msra.mxu0 0.0
  %1513 = vmatprep.subr.mxu0 0.0
  %1514 = vmatpush2.msra.mxu0 0.0
  %1515 = vmatprep.subr.mxu0 0.0
  %1516 = vmatpush2.msra.mxu0 0.0
  %1517 = vmatprep.subr.mxu0 0.0
  %1518 = vmatpush2.msra.mxu0 0.0
  %1519 = vmatprep.subr.mxu0 0.0
  %1520 = vmatpush2.msra.mxu0 0.0
  %1521 = vmatprep.subr.mxu0 0.0
  %1522 = vmatpush2.msra.mxu0 0.0
  %1523 = vmatprep.subr.mxu0 0.0
  %1524 = vmatpush2.msra.mxu0 0.0
  %1525 = vmatprep.mubr.f32.mxu0 0.0
  %1526 = vmatmul.mubr.f32.gmra.mxu0 %v1387
  %v1527 = vpop.f32.mrf.mxu0
  %v1528 = vadd.f32 0.0, %v1527
  %v1529 = vpop.f32.mrf.mxu0
  %1530 = vdwg.mxu0
  %v1531 = vadd.f32 %v1460, %v1528
  %v1532 = vtanh.pop %v1531
  %1533 = vmatprep.subr.mxu0 0.0
  %1534 = vmatpush1.msra.mxu0 %v501
  %1535 = vmatprep.subr.mxu0 0.0
  %1536 = vmatpush1.msra.mxu0 %v500
  %1537 = vmatprep.subr.mxu0 0.0
  %1538 = vmatpush1.msra.mxu0 %v499
  %1539 = vmatprep.subr.mxu0 0.0
  %1540 = vmatpush1.msra.mxu0 %v498
  %1541 = vmatprep.subr.mxu0 0.0
  %1542 = vmatpush1.msra.mxu0 %v497
  %1543 = vmatprep.subr.mxu0 0.0
  %1544 = vmatpush1.msra.mxu0 %v496
  %1545 = vmatprep.subr.mxu0 0.0
  %1546 = vmatpush1.msra.mxu0 %v495
  %1547 = vmatprep.subr.mxu0 0.0
  %1548 = vmatpush1.msra.mxu0 %v494
  %1549 = vmatprep.subr.mxu0 0.0
  %1550 = vmatpush1.msra.mxu0 %v493
  %1551 = vmatprep.subr.mxu0 0.0
  %1552 = vmatpush1.msra.mxu0 %v492
  %1553 = vmatprep.subr.mxu0 0.0
  %1554 = vmatpush1.msra.mxu0 %v491
  %1555 = vmatprep.subr.mxu0 0.0
  %1556 = vmatpush1.msra.mxu0 %v490
  %1557 = vmatprep.subr.mxu0 0.0
  %1558 = vmatpush1.msra.mxu0 %v489
  %1559 = vmatprep.subr.mxu0 0.0
  %1560 = vmatpush1.msra.mxu0 %v488
  %1561 = vmatprep.subr.mxu0 0.0
  %1562 = vmatpush1.msra.mxu0 %v487
  %1563 = vmatprep.subr.mxu0 0.0
  %1564 = vmatpush1.msra.mxu0 %v486
  %1565 = vmatprep.subr.mxu0 0.0
  %1566 = vmatpush2.msra.mxu0 %v517
  %1567 = vmatprep.subr.mxu0 0.0
  %1568 = vmatpush2.msra.mxu0 %v516
  %1569 = vmatprep.subr.mxu0 0.0
  %1570 = vmatpush2.msra.mxu0 %v515
  %1571 = vmatprep.subr.mxu0 0.0
  %1572 = vmatpush2.msra.mxu0 %v514
  %1573 = vmatprep.subr.mxu0 0.0
  %1574 = vmatpush2.msra.mxu0 %v513
  %1575 = vmatprep.subr.mxu0 0.0
  %1576 = vmatpush2.msra.mxu0 %v512
  %1577 = vmatprep.subr.mxu0 0.0
  %1578 = vmatpush2.msra.mxu0 %v511
  %1579 = vmatprep.subr.mxu0 0.0
  %1580 = vmatpush2.msra.mxu0 %v510
  %1581 = vmatprep.subr.mxu0 0.0
  %1582 = vmatpush2.msra.mxu0 %v509
  %1583 = vmatprep.subr.mxu0 0.0
  %1584 = vmatpush2.msra.mxu0 %v508
  %1585 = vmatprep.subr.mxu0 0.0
  %1586 = vmatpush2.msra.mxu0 %v507
  %1587 = vmatprep.subr.mxu0 0.0
  %1588 = vmatpush2.msra.mxu0 %v506
  %1589 = vmatprep.subr.mxu0 0.0
  %1590 = vmatpush2.msra.mxu0 %v505
  %1591 = vmatprep.subr.mxu0 0.0
  %1592 = vmatpush2.msra.mxu0 %v504
  %1593 = vmatprep.subr.mxu0 0.0
  %1594 = vmatpush2.msra.mxu0 %v503
  %1595 = vmatprep.subr.mxu0 0.0
  %1596 = vmatpush2.msra.mxu0 %v502
  %1597 = vmatprep.mubr.f32.mxu0 %v1458
  %1598 = vmatmul.mubr.f32.gmra.mxu0 %v1532
  %v1599 = vpop.f32.mrf.mxu0
  %v1600 = vadd.f32 %v395, %v1599
  %v1601 = vpop.f32.mrf.mxu0
  %1602 = vdwg.mxu0
  %v1603 = vtanh.pop %v1600
  %s1604 = scalar_lea.vmem [#allocation2], 64
  %v1605 = vld [vmem:[%s1604] sm:$0xff]
  %1606 = vmatprep.subr.mxu0 0.0
  %1607 = vmatpush1.msra.mxu0 %v413
  %1608 = vmatprep.subr.mxu0 0.0
  %1609 = vmatpush1.msra.mxu0 %v412
  %1610 = vmatprep.subr.mxu0 0.0
  %1611 = vmatpush1.msra.mxu0 %v411
  %1612 = vmatprep.subr.mxu0 0.0
  %1613 = vmatpush1.msra.mxu0 %v410
  %1614 = vmatprep.subr.mxu0 0.0
  %1615 = vmatpush1.msra.mxu0 %v409
  %1616 = vmatprep.subr.mxu0 0.0
  %1617 = vmatpush1.msra.mxu0 %v408
  %1618 = vmatprep.subr.mxu0 0.0
  %1619 = vmatpush1.msra.mxu0 %v407
  %1620 = vmatprep.subr.mxu0 0.0
  %1621 = vmatpush1.msra.mxu0 %v406
  %1622 = vmatprep.subr.mxu0 0.0
  %1623 = vmatpush1.msra.mxu0 %v405
  %1624 = vmatprep.subr.mxu0 0.0
  %1625 = vmatpush1.msra.mxu0 %v404
  %1626 = vmatprep.subr.mxu0 0.0
  %1627 = vmatpush1.msra.mxu0 %v403
  %1628 = vmatprep.subr.mxu0 0.0
  %1629 = vmatpush1.msra.mxu0 %v402
  %1630 = vmatprep.subr.mxu0 0.0
  %1631 = vmatpush1.msra.mxu0 %v401
  %1632 = vmatprep.subr.mxu0 0.0
  %1633 = vmatpush1.msra.mxu0 %v400
  %1634 = vmatprep.subr.mxu0 0.0
  %1635 = vmatpush1.msra.mxu0 %v399
  %1636 = vmatprep.subr.mxu0 0.0
  %1637 = vmatpush1.msra.mxu0 %v398
  %1638 = vmatprep.subr.mxu0 0.0
  %1639 = vmatpush2.msra.mxu0 0.0
  %1640 = vmatprep.subr.mxu0 0.0
  %1641 = vmatpush2.msra.mxu0 0.0
  %1642 = vmatprep.subr.mxu0 0.0
  %1643 = vmatpush2.msra.mxu0 0.0
  %1644 = vmatprep.subr.mxu0 0.0
  %1645 = vmatpush2.msra.mxu0 0.0
  %1646 = vmatprep.subr.mxu0 0.0
  %1647 = vmatpush2.msra.mxu0 0.0
  %1648 = vmatprep.subr.mxu0 0.0
  %1649 = vmatpush2.msra.mxu0 0.0
  %1650 = vmatprep.subr.mxu0 0.0
  %1651 = vmatpush2.msra.mxu0 0.0
  %1652 = vmatprep.subr.mxu0 0.0
  %1653 = vmatpush2.msra.mxu0 0.0
  %1654 = vmatprep.subr.mxu0 0.0
  %1655 = vmatpush2.msra.mxu0 0.0
  %1656 = vmatprep.subr.mxu0 0.0
  %1657 = vmatpush2.msra.mxu0 0.0
  %1658 = vmatprep.subr.mxu0 0.0
  %1659 = vmatpush2.msra.mxu0 0.0
  %1660 = vmatprep.subr.mxu0 0.0
  %1661 = vmatpush2.msra.mxu0 0.0
  %1662 = vmatprep.subr.mxu0 0.0
  %1663 = vmatpush2.msra.mxu0 0.0
  %1664 = vmatprep.subr.mxu0 0.0
  %1665 = vmatpush2.msra.mxu0 0.0
  %1666 = vmatprep.subr.mxu0 0.0
  %1667 = vmatpush2.msra.mxu0 0.0
  %1668 = vmatprep.subr.mxu0 0.0
  %1669 = vmatpush2.msra.mxu0 0.0
  %1670 = vmatprep.mubr.f32.mxu0 0.0
  %1671 = vmatmul.mubr.f32.gmra.mxu0 %v1532
  %v1672 = vpop.f32.mrf.mxu0
  %v1673 = vadd.f32 0.0, %v1672
  %v1674 = vpop.f32.mrf.mxu0
  %1675 = vdwg.mxu0
  %v1676 = vadd.f32 %v1605, %v1673
  %v1677 = vtanh.pop %v1676
  %1678 = vmatprep.subr.mxu0 0.0
  %1679 = vmatpush1.msra.mxu0 %v501
  %1680 = vmatprep.subr.mxu0 0.0
  %1681 = vmatpush1.msra.mxu0 %v500
  %1682 = vmatprep.subr.mxu0 0.0
  %1683 = vmatpush1.msra.mxu0 %v499
  %1684 = vmatprep.subr.mxu0 0.0
  %1685 = vmatpush1.msra.mxu0 %v498
  %1686 = vmatprep.subr.mxu0 0.0
  %1687 = vmatpush1.msra.mxu0 %v497
  %1688 = vmatprep.subr.mxu0 0.0
  %1689 = vmatpush1.msra.mxu0 %v496
  %1690 = vmatprep.subr.mxu0 0.0
  %1691 = vmatpush1.msra.mxu0 %v495
  %1692 = vmatprep.subr.mxu0 0.0
  %1693 = vmatpush1.msra.mxu0 %v494
  %1694 = vmatprep.subr.mxu0 0.0
  %1695 = vmatpush1.msra.mxu0 %v493
  %1696 = vmatprep.subr.mxu0 0.0
  %1697 = vmatpush1.msra.mxu0 %v492
  %1698 = vmatprep.subr.mxu0 0.0
  %1699 = vmatpush1.msra.mxu0 %v491
  %1700 = vmatprep.subr.mxu0 0.0
  %1701 = vmatpush1.msra.mxu0 %v490
  %1702 = vmatprep.subr.mxu0 0.0
  %1703 = vmatpush1.msra.mxu0 %v489
  %1704 = vmatprep.subr.mxu0 0.0
  %1705 = vmatpush1.msra.mxu0 %v488
  %1706 = vmatprep.subr.mxu0 0.0
  %1707 = vmatpush1.msra.mxu0 %v487
  %1708 = vmatprep.subr.mxu0 0.0
  %1709 = vmatpush1.msra.mxu0 %v486
  %1710 = vmatprep.subr.mxu0 0.0
  %1711 = vmatpush2.msra.mxu0 %v517
  %1712 = vmatprep.subr.mxu0 0.0
  %1713 = vmatpush2.msra.mxu0 %v516
  %1714 = vmatprep.subr.mxu0 0.0
  %1715 = vmatpush2.msra.mxu0 %v515
  %1716 = vmatprep.subr.mxu0 0.0
  %1717 = vmatpush2.msra.mxu0 %v514
  %1718 = vmatprep.subr.mxu0 0.0
  %1719 = vmatpush2.msra.mxu0 %v513
  %1720 = vmatprep.subr.mxu0 0.0
  %1721 = vmatpush2.msra.mxu0 %v512
  %1722 = vmatprep.subr.mxu0 0.0
  %1723 = vmatpush2.msra.mxu0 %v511
  %1724 = vmatprep.subr.mxu0 0.0
  %1725 = vmatpush2.msra.mxu0 %v510
  %1726 = vmatprep.subr.mxu0 0.0
  %1727 = vmatpush2.msra.mxu0 %v509
  %1728 = vmatprep.subr.mxu0 0.0
  %1729 = vmatpush2.msra.mxu0 %v508
  %1730 = vmatprep.subr.mxu0 0.0
  %1731 = vmatpush2.msra.mxu0 %v507
  %1732 = vmatprep.subr.mxu0 0.0
  %1733 = vmatpush2.msra.mxu0 %v506
  %1734 = vmatprep.subr.mxu0 0.0
  %1735 = vmatpush2.msra.mxu0 %v505
  %1736 = vmatprep.subr.mxu0 0.0
  %1737 = vmatpush2.msra.mxu0 %v504
  %1738 = vmatprep.subr.mxu0 0.0
  %1739 = vmatpush2.msra.mxu0 %v503
  %1740 = vmatprep.subr.mxu0 0.0
  %1741 = vmatpush2.msra.mxu0 %v502
  %1742 = vmatprep.mubr.f32.mxu0 %v1603
  %1743 = vmatmul.mubr.f32.gmra.mxu0 %v1677
  %v1744 = vpop.f32.mrf.mxu0
  %v1745 = vadd.f32 %v395, %v1744
  %v1746 = vpop.f32.mrf.mxu0
  %1747 = vdwg.mxu0
  %v1748 = vtanh.pop %v1745
  %s1749 = scalar_lea.vmem [#allocation2], 72
  %v1750 = vld [vmem:[%s1749] sm:$0xff]
  %1751 = vmatprep.subr.mxu0 0.0
  %1752 = vmatpush1.msra.mxu0 %v413
  %1753 = vmatprep.subr.mxu0 0.0
  %1754 = vmatpush1.msra.mxu0 %v412
  %1755 = vmatprep.subr.mxu0 0.0
  %1756 = vmatpush1.msra.mxu0 %v411
  %1757 = vmatprep.subr.mxu0 0.0
  %1758 = vmatpush1.msra.mxu0 %v410
  %1759 = vmatprep.subr.mxu0 0.0
  %1760 = vmatpush1.msra.mxu0 %v409
  %1761 = vmatprep.subr.mxu0 0.0
  %1762 = vmatpush1.msra.mxu0 %v408
  %1763 = vmatprep.subr.mxu0 0.0
  %1764 = vmatpush1.msra.mxu0 %v407
  %1765 = vmatprep.subr.mxu0 0.0
  %1766 = vmatpush1.msra.mxu0 %v406
  %1767 = vmatprep.subr.mxu0 0.0
  %1768 = vmatpush1.msra.mxu0 %v405
  %1769 = vmatprep.subr.mxu0 0.0
  %1770 = vmatpush1.msra.mxu0 %v404
  %1771 = vmatprep.subr.mxu0 0.0
  %1772 = vmatpush1.msra.mxu0 %v403
  %1773 = vmatprep.subr.mxu0 0.0
  %1774 = vmatpush1.msra.mxu0 %v402
  %1775 = vmatprep.subr.mxu0 0.0
  %1776 = vmatpush1.msra.mxu0 %v401
  %1777 = vmatprep.subr.mxu0 0.0
  %1778 = vmatpush1.msra.mxu0 %v400
  %1779 = vmatprep.subr.mxu0 0.0
  %1780 = vmatpush1.msra.mxu0 %v399
  %1781 = vmatprep.subr.mxu0 0.0
  %1782 = vmatpush1.msra.mxu0 %v398
  %1783 = vmatprep.subr.mxu0 0.0
  %1784 = vmatpush2.msra.mxu0 0.0
  %1785 = vmatprep.subr.mxu0 0.0
  %1786 = vmatpush2.msra.mxu0 0.0
  %1787 = vmatprep.subr.mxu0 0.0
  %1788 = vmatpush2.msra.mxu0 0.0
  %1789 = vmatprep.subr.mxu0 0.0
  %1790 = vmatpush2.msra.mxu0 0.0
  %1791 = vmatprep.subr.mxu0 0.0
  %1792 = vmatpush2.msra.mxu0 0.0
  %1793 = vmatprep.subr.mxu0 0.0
  %1794 = vmatpush2.msra.mxu0 0.0
  %1795 = vmatprep.subr.mxu0 0.0
  %1796 = vmatpush2.msra.mxu0 0.0
  %1797 = vmatprep.subr.mxu0 0.0
  %1798 = vmatpush2.msra.mxu0 0.0
  %1799 = vmatprep.subr.mxu0 0.0
  %1800 = vmatpush2.msra.mxu0 0.0
  %1801 = vmatprep.subr.mxu0 0.0
  %1802 = vmatpush2.msra.mxu0 0.0
  %1803 = vmatprep.subr.mxu0 0.0
  %1804 = vmatpush2.msra.mxu0 0.0
  %1805 = vmatprep.subr.mxu0 0.0
  %1806 = vmatpush2.msra.mxu0 0.0
  %1807 = vmatprep.subr.mxu0 0.0
  %1808 = vmatpush2.msra.mxu0 0.0
  %1809 = vmatprep.subr.mxu0 0.0
  %1810 = vmatpush2.msra.mxu0 0.0
  %1811 = vmatprep.subr.mxu0 0.0
  %1812 = vmatpush2.msra.mxu0 0.0
  %1813 = vmatprep.subr.mxu0 0.0
  %1814 = vmatpush2.msra.mxu0 0.0
  %1815 = vmatprep.mubr.f32.mxu0 0.0
  %1816 = vmatmul.mubr.f32.gmra.mxu0 %v1677
  %v1817 = vpop.f32.mrf.mxu0
  %v1818 = vadd.f32 0.0, %v1817
  %v1819 = vpop.f32.mrf.mxu0
  %1820 = vdwg.mxu0
  %v1821 = vadd.f32 %v1750, %v1818
  %v1822 = vtanh.pop %v1821
  %1823 = vmatprep.subr.mxu0 0.0
  %1824 = vmatpush1.msra.mxu0 %v501
  %1825 = vmatprep.subr.mxu0 0.0
  %1826 = vmatpush1.msra.mxu0 %v500
  %1827 = vmatprep.subr.mxu0 0.0
  %1828 = vmatpush1.msra.mxu0 %v499
  %1829 = vmatprep.subr.mxu0 0.0
  %1830 = vmatpush1.msra.mxu0 %v498
  %1831 = vmatprep.subr.mxu0 0.0
  %1832 = vmatpush1.msra.mxu0 %v497
  %1833 = vmatprep.subr.mxu0 0.0
  %1834 = vmatpush1.msra.mxu0 %v496
  %1835 = vmatprep.subr.mxu0 0.0
  %1836 = vmatpush1.msra.mxu0 %v495
  %1837 = vmatprep.subr.mxu0 0.0
  %1838 = vmatpush1.msra.mxu0 %v494
  %1839 = vmatprep.subr.mxu0 0.0
  %1840 = vmatpush1.msra.mxu0 %v493
  %1841 = vmatprep.subr.mxu0 0.0
  %1842 = vmatpush1.msra.mxu0 %v492
  %1843 = vmatprep.subr.mxu0 0.0
  %1844 = vmatpush1.msra.mxu0 %v491
  %1845 = vmatprep.subr.mxu0 0.0
  %1846 = vmatpush1.msra.mxu0 %v490
  %1847 = vmatprep.subr.mxu0 0.0
  %1848 = vmatpush1.msra.mxu0 %v489
  %1849 = vmatprep.subr.mxu0 0.0
  %1850 = vmatpush1.msra.mxu0 %v488
  %1851 = vmatprep.subr.mxu0 0.0
  %1852 = vmatpush1.msra.mxu0 %v487
  %1853 = vmatprep.subr.mxu0 0.0
  %1854 = vmatpush1.msra.mxu0 %v486
  %1855 = vmatprep.subr.mxu0 0.0
  %1856 = vmatpush2.msra.mxu0 %v517
  %1857 = vmatprep.subr.mxu0 0.0
  %1858 = vmatpush2.msra.mxu0 %v516
  %1859 = vmatprep.subr.mxu0 0.0
  %1860 = vmatpush2.msra.mxu0 %v515
  %1861 = vmatprep.subr.mxu0 0.0
  %1862 = vmatpush2.msra.mxu0 %v514
  %1863 = vmatprep.subr.mxu0 0.0
  %1864 = vmatpush2.msra.mxu0 %v513
  %1865 = vmatprep.subr.mxu0 0.0
  %1866 = vmatpush2.msra.mxu0 %v512
  %1867 = vmatprep.subr.mxu0 0.0
  %1868 = vmatpush2.msra.mxu0 %v511
  %1869 = vmatprep.subr.mxu0 0.0
  %1870 = vmatpush2.msra.mxu0 %v510
  %1871 = vmatprep.subr.mxu0 0.0
  %1872 = vmatpush2.msra.mxu0 %v509
  %1873 = vmatprep.subr.mxu0 0.0
  %1874 = vmatpush2.msra.mxu0 %v508
  %1875 = vmatprep.subr.mxu0 0.0
  %1876 = vmatpush2.msra.mxu0 %v507
  %1877 = vmatprep.subr.mxu0 0.0
  %1878 = vmatpush2.msra.mxu0 %v506
  %1879 = vmatprep.subr.mxu0 0.0
  %1880 = vmatpush2.msra.mxu0 %v505
  %1881 = vmatprep.subr.mxu0 0.0
  %1882 = vmatpush2.msra.mxu0 %v504
  %1883 = vmatprep.subr.mxu0 0.0
  %1884 = vmatpush2.msra.mxu0 %v503
  %1885 = vmatprep.subr.mxu0 0.0
  %1886 = vmatpush2.msra.mxu0 %v502
  %1887 = vmatprep.mubr.f32.mxu0 %v1748
  %1888 = vmatmul.mubr.f32.gmra.mxu0 %v1822
  %v1889 = vpop.f32.mrf.mxu0
  %v1890 = vadd.f32 %v395, %v1889
  %v1891 = vpop.f32.mrf.mxu0
  %1892 = vdwg.mxu0
  %v1893 = vtanh.pop %v1890
  %s1894 = scalar_lea.vmem [#allocation2], 80
  %v1895 = vld [vmem:[%s1894] sm:$0xff]
  %1896 = vmatprep.subr.mxu0 0.0
  %1897 = vmatpush1.msra.mxu0 %v413
  %1898 = vmatprep.subr.mxu0 0.0
  %1899 = vmatpush1.msra.mxu0 %v412
  %1900 = vmatprep.subr.mxu0 0.0
  %1901 = vmatpush1.msra.mxu0 %v411
  %1902 = vmatprep.subr.mxu0 0.0
  %1903 = vmatpush1.msra.mxu0 %v410
  %1904 = vmatprep.subr.mxu0 0.0
  %1905 = vmatpush1.msra.mxu0 %v409
  %1906 = vmatprep.subr.mxu0 0.0
  %1907 = vmatpush1.msra.mxu0 %v408
  %1908 = vmatprep.subr.mxu0 0.0
  %1909 = vmatpush1.msra.mxu0 %v407
  %1910 = vmatprep.subr.mxu0 0.0
  %1911 = vmatpush1.msra.mxu0 %v406
  %1912 = vmatprep.subr.mxu0 0.0
  %1913 = vmatpush1.msra.mxu0 %v405
  %1914 = vmatprep.subr.mxu0 0.0
  %1915 = vmatpush1.msra.mxu0 %v404
  %1916 = vmatprep.subr.mxu0 0.0
  %1917 = vmatpush1.msra.mxu0 %v403
  %1918 = vmatprep.subr.mxu0 0.0
  %1919 = vmatpush1.msra.mxu0 %v402
  %1920 = vmatprep.subr.mxu0 0.0
  %1921 = vmatpush1.msra.mxu0 %v401
  %1922 = vmatprep.subr.mxu0 0.0
  %1923 = vmatpush1.msra.mxu0 %v400
  %1924 = vmatprep.subr.mxu0 0.0
  %1925 = vmatpush1.msra.mxu0 %v399
  %1926 = vmatprep.subr.mxu0 0.0
  %1927 = vmatpush1.msra.mxu0 %v398
  %1928 = vmatprep.subr.mxu0 0.0
  %1929 = vmatpush2.msra.mxu0 0.0
  %1930 = vmatprep.subr.mxu0 0.0
  %1931 = vmatpush2.msra.mxu0 0.0
  %1932 = vmatprep.subr.mxu0 0.0
  %1933 = vmatpush2.msra.mxu0 0.0
  %1934 = vmatprep.subr.mxu0 0.0
  %1935 = vmatpush2.msra.mxu0 0.0
  %1936 = vmatprep.subr.mxu0 0.0
  %1937 = vmatpush2.msra.mxu0 0.0
  %1938 = vmatprep.subr.mxu0 0.0
  %1939 = vmatpush2.msra.mxu0 0.0
  %1940 = vmatprep.subr.mxu0 0.0
  %1941 = vmatpush2.msra.mxu0 0.0
  %1942 = vmatprep.subr.mxu0 0.0
  %1943 = vmatpush2.msra.mxu0 0.0
  %1944 = vmatprep.subr.mxu0 0.0
  %1945 = vmatpush2.msra.mxu0 0.0
  %1946 = vmatprep.subr.mxu0 0.0
  %1947 = vmatpush2.msra.mxu0 0.0
  %1948 = vmatprep.subr.mxu0 0.0
  %1949 = vmatpush2.msra.mxu0 0.0
  %1950 = vmatprep.subr.mxu0 0.0
  %1951 = vmatpush2.msra.mxu0 0.0
  %1952 = vmatprep.subr.mxu0 0.0
  %1953 = vmatpush2.msra.mxu0 0.0
  %1954 = vmatprep.subr.mxu0 0.0
  %1955 = vmatpush2.msra.mxu0 0.0
  %1956 = vmatprep.subr.mxu0 0.0
  %1957 = vmatpush2.msra.mxu0 0.0
  %1958 = vmatprep.subr.mxu0 0.0
  %1959 = vmatpush2.msra.mxu0 0.0
  %1960 = vmatprep.mubr.f32.mxu0 0.0
  %1961 = vmatmul.mubr.f32.gmra.mxu0 %v1822
  %v1962 = vpop.f32.mrf.mxu0
  %v1963 = vadd.f32 0.0, %v1962
  %v1964 = vpop.f32.mrf.mxu0
  %1965 = vdwg.mxu0
  %v1966 = vadd.f32 %v1895, %v1963
  %v1967 = vtanh.pop %v1966
  %1968 = vmatprep.subr.mxu0 0.0
  %1969 = vmatpush1.msra.mxu0 %v501
  %1970 = vmatprep.subr.mxu0 0.0
  %1971 = vmatpush1.msra.mxu0 %v500
  %1972 = vmatprep.subr.mxu0 0.0
  %1973 = vmatpush1.msra.mxu0 %v499
  %1974 = vmatprep.subr.mxu0 0.0
  %1975 = vmatpush1.msra.mxu0 %v498
  %1976 = vmatprep.subr.mxu0 0.0
  %1977 = vmatpush1.msra.mxu0 %v497
  %1978 = vmatprep.subr.mxu0 0.0
  %1979 = vmatpush1.msra.mxu0 %v496
  %1980 = vmatprep.subr.mxu0 0.0
  %1981 = vmatpush1.msra.mxu0 %v495
  %1982 = vmatprep.subr.mxu0 0.0
  %1983 = vmatpush1.msra.mxu0 %v494
  %1984 = vmatprep.subr.mxu0 0.0
  %1985 = vmatpush1.msra.mxu0 %v493
  %1986 = vmatprep.subr.mxu0 0.0
  %1987 = vmatpush1.msra.mxu0 %v492
  %1988 = vmatprep.subr.mxu0 0.0
  %1989 = vmatpush1.msra.mxu0 %v491
  %1990 = vmatprep.subr.mxu0 0.0
  %1991 = vmatpush1.msra.mxu0 %v490
  %1992 = vmatprep.subr.mxu0 0.0
  %1993 = vmatpush1.msra.mxu0 %v489
  %1994 = vmatprep.subr.mxu0 0.0
  %1995 = vmatpush1.msra.mxu0 %v488
  %1996 = vmatprep.subr.mxu0 0.0
  %1997 = vmatpush1.msra.mxu0 %v487
  %1998 = vmatprep.subr.mxu0 0.0
  %1999 = vmatpush1.msra.mxu0 %v486
  %2000 = vmatprep.subr.mxu0 0.0
  %2001 = vmatpush2.msra.mxu0 %v517
  %2002 = vmatprep.subr.mxu0 0.0
  %2003 = vmatpush2.msra.mxu0 %v516
  %2004 = vmatprep.subr.mxu0 0.0
  %2005 = vmatpush2.msra.mxu0 %v515
  %2006 = vmatprep.subr.mxu0 0.0
  %2007 = vmatpush2.msra.mxu0 %v514
  %2008 = vmatprep.subr.mxu0 0.0
  %2009 = vmatpush2.msra.mxu0 %v513
  %2010 = vmatprep.subr.mxu0 0.0
  %2011 = vmatpush2.msra.mxu0 %v512
  %2012 = vmatprep.subr.mxu0 0.0
  %2013 = vmatpush2.msra.mxu0 %v511
  %2014 = vmatprep.subr.mxu0 0.0
  %2015 = vmatpush2.msra.mxu0 %v510
  %2016 = vmatprep.subr.mxu0 0.0
  %2017 = vmatpush2.msra.mxu0 %v509
  %2018 = vmatprep.subr.mxu0 0.0
  %2019 = vmatpush2.msra.mxu0 %v508
  %2020 = vmatprep.subr.mxu0 0.0
  %2021 = vmatpush2.msra.mxu0 %v507
  %2022 = vmatprep.subr.mxu0 0.0
  %2023 = vmatpush2.msra.mxu0 %v506
  %2024 = vmatprep.subr.mxu0 0.0
  %2025 = vmatpush2.msra.mxu0 %v505
  %2026 = vmatprep.subr.mxu0 0.0
  %2027 = vmatpush2.msra.mxu0 %v504
  %2028 = vmatprep.subr.mxu0 0.0
  %2029 = vmatpush2.msra.mxu0 %v503
  %2030 = vmatprep.subr.mxu0 0.0
  %2031 = vmatpush2.msra.mxu0 %v502
  %2032 = vmatprep.mubr.f32.mxu0 %v1893
  %2033 = vmatmul.mubr.f32.gmra.mxu0 %v1967
  %v2034 = vpop.f32.mrf.mxu0
  %v2035 = vadd.f32 %v395, %v2034
  %v2036 = vpop.f32.mrf.mxu0
  %2037 = vdwg.mxu0
  %v2038 = vtanh.pop %v2035
  %s2039 = scalar_lea.vmem [#allocation2], 88
  %v2040 = vld [vmem:[%s2039] sm:$0xff]
  %2041 = vmatprep.subr.mxu0 0.0
  %2042 = vmatpush1.msra.mxu0 %v413
  %2043 = vmatprep.subr.mxu0 0.0
  %2044 = vmatpush1.msra.mxu0 %v412
  %2045 = vmatprep.subr.mxu0 0.0
  %2046 = vmatpush1.msra.mxu0 %v411
  %2047 = vmatprep.subr.mxu0 0.0
  %2048 = vmatpush1.msra.mxu0 %v410
  %2049 = vmatprep.subr.mxu0 0.0
  %2050 = vmatpush1.msra.mxu0 %v409
  %2051 = vmatprep.subr.mxu0 0.0
  %2052 = vmatpush1.msra.mxu0 %v408
  %2053 = vmatprep.subr.mxu0 0.0
  %2054 = vmatpush1.msra.mxu0 %v407
  %2055 = vmatprep.subr.mxu0 0.0
  %2056 = vmatpush1.msra.mxu0 %v406
  %2057 = vmatprep.subr.mxu0 0.0
  %2058 = vmatpush1.msra.mxu0 %v405
  %2059 = vmatprep.subr.mxu0 0.0
  %2060 = vmatpush1.msra.mxu0 %v404
  %2061 = vmatprep.subr.mxu0 0.0
  %2062 = vmatpush1.msra.mxu0 %v403
  %2063 = vmatprep.subr.mxu0 0.0
  %2064 = vmatpush1.msra.mxu0 %v402
  %2065 = vmatprep.subr.mxu0 0.0
  %2066 = vmatpush1.msra.mxu0 %v401
  %2067 = vmatprep.subr.mxu0 0.0
  %2068 = vmatpush1.msra.mxu0 %v400
  %2069 = vmatprep.subr.mxu0 0.0
  %2070 = vmatpush1.msra.mxu0 %v399
  %2071 = vmatprep.subr.mxu0 0.0
  %2072 = vmatpush1.msra.mxu0 %v398
  %2073 = vmatprep.subr.mxu0 0.0
  %2074 = vmatpush2.msra.mxu0 0.0
  %2075 = vmatprep.subr.mxu0 0.0
  %2076 = vmatpush2.msra.mxu0 0.0
  %2077 = vmatprep.subr.mxu0 0.0
  %2078 = vmatpush2.msra.mxu0 0.0
  %2079 = vmatprep.subr.mxu0 0.0
  %2080 = vmatpush2.msra.mxu0 0.0
  %2081 = vmatprep.subr.mxu0 0.0
  %2082 = vmatpush2.msra.mxu0 0.0
  %2083 = vmatprep.subr.mxu0 0.0
  %2084 = vmatpush2.msra.mxu0 0.0
  %2085 = vmatprep.subr.mxu0 0.0
  %2086 = vmatpush2.msra.mxu0 0.0
  %2087 = vmatprep.subr.mxu0 0.0
  %2088 = vmatpush2.msra.mxu0 0.0
  %2089 = vmatprep.subr.mxu0 0.0
  %2090 = vmatpush2.msra.mxu0 0.0
  %2091 = vmatprep.subr.mxu0 0.0
  %2092 = vmatpush2.msra.mxu0 0.0
  %2093 = vmatprep.subr.mxu0 0.0
  %2094 = vmatpush2.msra.mxu0 0.0
  %2095 = vmatprep.subr.mxu0 0.0
  %2096 = vmatpush2.msra.mxu0 0.0
  %2097 = vmatprep.subr.mxu0 0.0
  %2098 = vmatpush2.msra.mxu0 0.0
  %2099 = vmatprep.subr.mxu0 0.0
  %2100 = vmatpush2.msra.mxu0 0.0
  %2101 = vmatprep.subr.mxu0 0.0
  %2102 = vmatpush2.msra.mxu0 0.0
  %2103 = vmatprep.subr.mxu0 0.0
  %2104 = vmatpush2.msra.mxu0 0.0
  %2105 = vmatprep.mubr.f32.mxu0 0.0
  %2106 = vmatmul.mubr.f32.gmra.mxu0 %v1967
  %v2107 = vpop.f32.mrf.mxu0
  %v2108 = vadd.f32 0.0, %v2107
  %v2109 = vpop.f32.mrf.mxu0
  %2110 = vdwg.mxu0
  %v2111 = vadd.f32 %v2040, %v2108
  %v2112 = vtanh.pop %v2111
  %2113 = vmatprep.subr.mxu0 0.0
  %2114 = vmatpush1.msra.mxu0 %v501
  %2115 = vmatprep.subr.mxu0 0.0
  %2116 = vmatpush1.msra.mxu0 %v500
  %2117 = vmatprep.subr.mxu0 0.0
  %2118 = vmatpush1.msra.mxu0 %v499
  %2119 = vmatprep.subr.mxu0 0.0
  %2120 = vmatpush1.msra.mxu0 %v498
  %2121 = vmatprep.subr.mxu0 0.0
  %2122 = vmatpush1.msra.mxu0 %v497
  %2123 = vmatprep.subr.mxu0 0.0
  %2124 = vmatpush1.msra.mxu0 %v496
  %2125 = vmatprep.subr.mxu0 0.0
  %2126 = vmatpush1.msra.mxu0 %v495
  %2127 = vmatprep.subr.mxu0 0.0
  %2128 = vmatpush1.msra.mxu0 %v494
  %2129 = vmatprep.subr.mxu0 0.0
  %2130 = vmatpush1.msra.mxu0 %v493
  %2131 = vmatprep.subr.mxu0 0.0
  %2132 = vmatpush1.msra.mxu0 %v492
  %2133 = vmatprep.subr.mxu0 0.0
  %2134 = vmatpush1.msra.mxu0 %v491
  %2135 = vmatprep.subr.mxu0 0.0
  %2136 = vmatpush1.msra.mxu0 %v490
  %2137 = vmatprep.subr.mxu0 0.0
  %2138 = vmatpush1.msra.mxu0 %v489
  %2139 = vmatprep.subr.mxu0 0.0
  %2140 = vmatpush1.msra.mxu0 %v488
  %2141 = vmatprep.subr.mxu0 0.0
  %2142 = vmatpush1.msra.mxu0 %v487
  %2143 = vmatprep.subr.mxu0 0.0
  %2144 = vmatpush1.msra.mxu0 %v486
  %2145 = vmatprep.subr.mxu0 0.0
  %2146 = vmatpush2.msra.mxu0 %v517
  %2147 = vmatprep.subr.mxu0 0.0
  %2148 = vmatpush2.msra.mxu0 %v516
  %2149 = vmatprep.subr.mxu0 0.0
  %2150 = vmatpush2.msra.mxu0 %v515
  %2151 = vmatprep.subr.mxu0 0.0
  %2152 = vmatpush2.msra.mxu0 %v514
  %2153 = vmatprep.subr.mxu0 0.0
  %2154 = vmatpush2.msra.mxu0 %v513
  %2155 = vmatprep.subr.mxu0 0.0
  %2156 = vmatpush2.msra.mxu0 %v512
  %2157 = vmatprep.subr.mxu0 0.0
  %2158 = vmatpush2.msra.mxu0 %v511
  %2159 = vmatprep.subr.mxu0 0.0
  %2160 = vmatpush2.msra.mxu0 %v510
  %2161 = vmatprep.subr.mxu0 0.0
  %2162 = vmatpush2.msra.mxu0 %v509
  %2163 = vmatprep.subr.mxu0 0.0
  %2164 = vmatpush2.msra.mxu0 %v508
  %2165 = vmatprep.subr.mxu0 0.0
  %2166 = vmatpush2.msra.mxu0 %v507
  %2167 = vmatprep.subr.mxu0 0.0
  %2168 = vmatpush2.msra.mxu0 %v506
  %2169 = vmatprep.subr.mxu0 0.0
  %2170 = vmatpush2.msra.mxu0 %v505
  %2171 = vmatprep.subr.mxu0 0.0
  %2172 = vmatpush2.msra.mxu0 %v504
  %2173 = vmatprep.subr.mxu0 0.0
  %2174 = vmatpush2.msra.mxu0 %v503
  %2175 = vmatprep.subr.mxu0 0.0
  %2176 = vmatpush2.msra.mxu0 %v502
  %2177 = vmatprep.mubr.f32.mxu0 %v2038
  %2178 = vmatmul.mubr.f32.gmra.mxu0 %v2112
  %v2179 = vpop.f32.mrf.mxu0
  %v2180 = vadd.f32 %v395, %v2179
  %v2181 = vpop.f32.mrf.mxu0
  %2182 = vdwg.mxu0
  %v2183 = vtanh.pop %v2180
  %s2184 = scalar_lea.vmem [#allocation2], 96
  %v2185 = vld [vmem:[%s2184] sm:$0xff]
  %2186 = vmatprep.subr.mxu0 0.0
  %2187 = vmatpush1.msra.mxu0 %v413
  %2188 = vmatprep.subr.mxu0 0.0
  %2189 = vmatpush1.msra.mxu0 %v412
  %2190 = vmatprep.subr.mxu0 0.0
  %2191 = vmatpush1.msra.mxu0 %v411
  %2192 = vmatprep.subr.mxu0 0.0
  %2193 = vmatpush1.msra.mxu0 %v410
  %2194 = vmatprep.subr.mxu0 0.0
  %2195 = vmatpush1.msra.mxu0 %v409
  %2196 = vmatprep.subr.mxu0 0.0
  %2197 = vmatpush1.msra.mxu0 %v408
  %2198 = vmatprep.subr.mxu0 0.0
  %2199 = vmatpush1.msra.mxu0 %v407
  %2200 = vmatprep.subr.mxu0 0.0
  %2201 = vmatpush1.msra.mxu0 %v406
  %2202 = vmatprep.subr.mxu0 0.0
  %2203 = vmatpush1.msra.mxu0 %v405
  %2204 = vmatprep.subr.mxu0 0.0
  %2205 = vmatpush1.msra.mxu0 %v404
  %2206 = vmatprep.subr.mxu0 0.0
  %2207 = vmatpush1.msra.mxu0 %v403
  %2208 = vmatprep.subr.mxu0 0.0
  %2209 = vmatpush1.msra.mxu0 %v402
  %2210 = vmatprep.subr.mxu0 0.0
  %2211 = vmatpush1.msra.mxu0 %v401
  %2212 = vmatprep.subr.mxu0 0.0
  %2213 = vmatpush1.msra.mxu0 %v400
  %2214 = vmatprep.subr.mxu0 0.0
  %2215 = vmatpush1.msra.mxu0 %v399
  %2216 = vmatprep.subr.mxu0 0.0
  %2217 = vmatpush1.msra.mxu0 %v398
  %2218 = vmatprep.subr.mxu0 0.0
  %2219 = vmatpush2.msra.mxu0 0.0
  %2220 = vmatprep.subr.mxu0 0.0
  %2221 = vmatpush2.msra.mxu0 0.0
  %2222 = vmatprep.subr.mxu0 0.0
  %2223 = vmatpush2.msra.mxu0 0.0
  %2224 = vmatprep.subr.mxu0 0.0
  %2225 = vmatpush2.msra.mxu0 0.0
  %2226 = vmatprep.subr.mxu0 0.0
  %2227 = vmatpush2.msra.mxu0 0.0
  %2228 = vmatprep.subr.mxu0 0.0
  %2229 = vmatpush2.msra.mxu0 0.0
  %2230 = vmatprep.subr.mxu0 0.0
  %2231 = vmatpush2.msra.mxu0 0.0
  %2232 = vmatprep.subr.mxu0 0.0
  %2233 = vmatpush2.msra.mxu0 0.0
  %2234 = vmatprep.subr.mxu0 0.0
  %2235 = vmatpush2.msra.mxu0 0.0
  %2236 = vmatprep.subr.mxu0 0.0
  %2237 = vmatpush2.msra.mxu0 0.0
  %2238 = vmatprep.subr.mxu0 0.0
  %2239 = vmatpush2.msra.mxu0 0.0
  %2240 = vmatprep.subr.mxu0 0.0
  %2241 = vmatpush2.msra.mxu0 0.0
  %2242 = vmatprep.subr.mxu0 0.0
  %2243 = vmatpush2.msra.mxu0 0.0
  %2244 = vmatprep.subr.mxu0 0.0
  %2245 = vmatpush2.msra.mxu0 0.0
  %2246 = vmatprep.subr.mxu0 0.0
  %2247 = vmatpush2.msra.mxu0 0.0
  %2248 = vmatprep.subr.mxu0 0.0
  %2249 = vmatpush2.msra.mxu0 0.0
  %2250 = vmatprep.mubr.f32.mxu0 0.0
  %2251 = vmatmul.mubr.f32.gmra.mxu0 %v2112
  %v2252 = vpop.f32.mrf.mxu0
  %v2253 = vadd.f32 0.0, %v2252
  %v2254 = vpop.f32.mrf.mxu0
  %2255 = vdwg.mxu0
  %v2256 = vadd.f32 %v2185, %v2253
  %v2257 = vtanh.pop %v2256
  %2258 = vmatprep.subr.mxu0 0.0
  %2259 = vmatpush1.msra.mxu0 %v501
  %2260 = vmatprep.subr.mxu0 0.0
  %2261 = vmatpush1.msra.mxu0 %v500
  %2262 = vmatprep.subr.mxu0 0.0
  %2263 = vmatpush1.msra.mxu0 %v499
  %2264 = vmatprep.subr.mxu0 0.0
  %2265 = vmatpush1.msra.mxu0 %v498
  %2266 = vmatprep.subr.mxu0 0.0
  %2267 = vmatpush1.msra.mxu0 %v497
  %2268 = vmatprep.subr.mxu0 0.0
  %2269 = vmatpush1.msra.mxu0 %v496
  %2270 = vmatprep.subr.mxu0 0.0
  %2271 = vmatpush1.msra.mxu0 %v495
  %2272 = vmatprep.subr.mxu0 0.0
  %2273 = vmatpush1.msra.mxu0 %v494
  %2274 = vmatprep.subr.mxu0 0.0
  %2275 = vmatpush1.msra.mxu0 %v493
  %2276 = vmatprep.subr.mxu0 0.0
  %2277 = vmatpush1.msra.mxu0 %v492
  %2278 = vmatprep.subr.mxu0 0.0
  %2279 = vmatpush1.msra.mxu0 %v491
  %2280 = vmatprep.subr.mxu0 0.0
  %2281 = vmatpush1.msra.mxu0 %v490
  %2282 = vmatprep.subr.mxu0 0.0
  %2283 = vmatpush1.msra.mxu0 %v489
  %2284 = vmatprep.subr.mxu0 0.0
  %2285 = vmatpush1.msra.mxu0 %v488
  %2286 = vmatprep.subr.mxu0 0.0
  %2287 = vmatpush1.msra.mxu0 %v487
  %2288 = vmatprep.subr.mxu0 0.0
  %2289 = vmatpush1.msra.mxu0 %v486
  %2290 = vmatprep.subr.mxu0 0.0
  %2291 = vmatpush2.msra.mxu0 %v517
  %2292 = vmatprep.subr.mxu0 0.0
  %2293 = vmatpush2.msra.mxu0 %v516
  %2294 = vmatprep.subr.mxu0 0.0
  %2295 = vmatpush2.msra.mxu0 %v515
  %2296 = vmatprep.subr.mxu0 0.0
  %2297 = vmatpush2.msra.mxu0 %v514
  %2298 = vmatprep.subr.mxu0 0.0
  %2299 = vmatpush2.msra.mxu0 %v513
  %2300 = vmatprep.subr.mxu0 0.0
  %2301 = vmatpush2.msra.mxu0 %v512
  %2302 = vmatprep.subr.mxu0 0.0
  %2303 = vmatpush2.msra.mxu0 %v511
  %2304 = vmatprep.subr.mxu0 0.0
  %2305 = vmatpush2.msra.mxu0 %v510
  %2306 = vmatprep.subr.mxu0 0.0
  %2307 = vmatpush2.msra.mxu0 %v509
  %2308 = vmatprep.subr.mxu0 0.0
  %2309 = vmatpush2.msra.mxu0 %v508
  %2310 = vmatprep.subr.mxu0 0.0
  %2311 = vmatpush2.msra.mxu0 %v507
  %2312 = vmatprep.subr.mxu0 0.0
  %2313 = vmatpush2.msra.mxu0 %v506
  %2314 = vmatprep.subr.mxu0 0.0
  %2315 = vmatpush2.msra.mxu0 %v505
  %2316 = vmatprep.subr.mxu0 0.0
  %2317 = vmatpush2.msra.mxu0 %v504
  %2318 = vmatprep.subr.mxu0 0.0
  %2319 = vmatpush2.msra.mxu0 %v503
  %2320 = vmatprep.subr.mxu0 0.0
  %2321 = vmatpush2.msra.mxu0 %v502
  %2322 = vmatprep.mubr.f32.mxu0 %v2183
  %2323 = vmatmul.mubr.f32.gmra.mxu0 %v2257
  %v2324 = vpop.f32.mrf.mxu0
  %v2325 = vadd.f32 %v395, %v2324
  %v2326 = vpop.f32.mrf.mxu0
  %2327 = vdwg.mxu0
  %v2328 = vtanh.pop %v2325
  %s2329 = scalar_lea.vmem [#allocation2], 104
  %v2330 = vld [vmem:[%s2329] sm:$0xff]
  %2331 = vmatprep.subr.mxu0 0.0
  %2332 = vmatpush1.msra.mxu0 %v413
  %2333 = vmatprep.subr.mxu0 0.0
  %2334 = vmatpush1.msra.mxu0 %v412
  %2335 = vmatprep.subr.mxu0 0.0
  %2336 = vmatpush1.msra.mxu0 %v411
  %2337 = vmatprep.subr.mxu0 0.0
  %2338 = vmatpush1.msra.mxu0 %v410
  %2339 = vmatprep.subr.mxu0 0.0
  %2340 = vmatpush1.msra.mxu0 %v409
  %2341 = vmatprep.subr.mxu0 0.0
  %2342 = vmatpush1.msra.mxu0 %v408
  %2343 = vmatprep.subr.mxu0 0.0
  %2344 = vmatpush1.msra.mxu0 %v407
  %2345 = vmatprep.subr.mxu0 0.0
  %2346 = vmatpush1.msra.mxu0 %v406
  %2347 = vmatprep.subr.mxu0 0.0
  %2348 = vmatpush1.msra.mxu0 %v405
  %2349 = vmatprep.subr.mxu0 0.0
  %2350 = vmatpush1.msra.mxu0 %v404
  %2351 = vmatprep.subr.mxu0 0.0
  %2352 = vmatpush1.msra.mxu0 %v403
  %2353 = vmatprep.subr.mxu0 0.0
  %2354 = vmatpush1.msra.mxu0 %v402
  %2355 = vmatprep.subr.mxu0 0.0
  %2356 = vmatpush1.msra.mxu0 %v401
  %2357 = vmatprep.subr.mxu0 0.0
  %2358 = vmatpush1.msra.mxu0 %v400
  %2359 = vmatprep.subr.mxu0 0.0
  %2360 = vmatpush1.msra.mxu0 %v399
  %2361 = vmatprep.subr.mxu0 0.0
  %2362 = vmatpush1.msra.mxu0 %v398
  %2363 = vmatprep.subr.mxu0 0.0
  %2364 = vmatpush2.msra.mxu0 0.0
  %2365 = vmatprep.subr.mxu0 0.0
  %2366 = vmatpush2.msra.mxu0 0.0
  %2367 = vmatprep.subr.mxu0 0.0
  %2368 = vmatpush2.msra.mxu0 0.0
  %2369 = vmatprep.subr.mxu0 0.0
  %2370 = vmatpush2.msra.mxu0 0.0
  %2371 = vmatprep.subr.mxu0 0.0
  %2372 = vmatpush2.msra.mxu0 0.0
  %2373 = vmatprep.subr.mxu0 0.0
  %2374 = vmatpush2.msra.mxu0 0.0
  %2375 = vmatprep.subr.mxu0 0.0
  %2376 = vmatpush2.msra.mxu0 0.0
  %2377 = vmatprep.subr.mxu0 0.0
  %2378 = vmatpush2.msra.mxu0 0.0
  %2379 = vmatprep.subr.mxu0 0.0
  %2380 = vmatpush2.msra.mxu0 0.0
  %2381 = vmatprep.subr.mxu0 0.0
  %2382 = vmatpush2.msra.mxu0 0.0
  %2383 = vmatprep.subr.mxu0 0.0
  %2384 = vmatpush2.msra.mxu0 0.0
  %2385 = vmatprep.subr.mxu0 0.0
  %2386 = vmatpush2.msra.mxu0 0.0
  %2387 = vmatprep.subr.mxu0 0.0
  %2388 = vmatpush2.msra.mxu0 0.0
  %2389 = vmatprep.subr.mxu0 0.0
  %2390 = vmatpush2.msra.mxu0 0.0
  %2391 = vmatprep.subr.mxu0 0.0
  %2392 = vmatpush2.msra.mxu0 0.0
  %2393 = vmatprep.subr.mxu0 0.0
  %2394 = vmatpush2.msra.mxu0 0.0
  %2395 = vmatprep.mubr.f32.mxu0 0.0
  %2396 = vmatmul.mubr.f32.gmra.mxu0 %v2257
  %v2397 = vpop.f32.mrf.mxu0
  %v2398 = vadd.f32 0.0, %v2397
  %v2399 = vpop.f32.mrf.mxu0
  %2400 = vdwg.mxu0
  %v2401 = vadd.f32 %v2330, %v2398
  %v2402 = vtanh.pop %v2401
  %2403 = vmatprep.subr.mxu0 0.0
  %2404 = vmatpush1.msra.mxu0 %v501
  %2405 = vmatprep.subr.mxu0 0.0
  %2406 = vmatpush1.msra.mxu0 %v500
  %2407 = vmatprep.subr.mxu0 0.0
  %2408 = vmatpush1.msra.mxu0 %v499
  %2409 = vmatprep.subr.mxu0 0.0
  %2410 = vmatpush1.msra.mxu0 %v498
  %2411 = vmatprep.subr.mxu0 0.0
  %2412 = vmatpush1.msra.mxu0 %v497
  %2413 = vmatprep.subr.mxu0 0.0
  %2414 = vmatpush1.msra.mxu0 %v496
  %2415 = vmatprep.subr.mxu0 0.0
  %2416 = vmatpush1.msra.mxu0 %v495
  %2417 = vmatprep.subr.mxu0 0.0
  %2418 = vmatpush1.msra.mxu0 %v494
  %2419 = vmatprep.subr.mxu0 0.0
  %2420 = vmatpush1.msra.mxu0 %v493
  %2421 = vmatprep.subr.mxu0 0.0
  %2422 = vmatpush1.msra.mxu0 %v492
  %2423 = vmatprep.subr.mxu0 0.0
  %2424 = vmatpush1.msra.mxu0 %v491
  %2425 = vmatprep.subr.mxu0 0.0
  %2426 = vmatpush1.msra.mxu0 %v490
  %2427 = vmatprep.subr.mxu0 0.0
  %2428 = vmatpush1.msra.mxu0 %v489
  %2429 = vmatprep.subr.mxu0 0.0
  %2430 = vmatpush1.msra.mxu0 %v488
  %2431 = vmatprep.subr.mxu0 0.0
  %2432 = vmatpush1.msra.mxu0 %v487
  %2433 = vmatprep.subr.mxu0 0.0
  %2434 = vmatpush1.msra.mxu0 %v486
  %2435 = vmatprep.subr.mxu0 0.0
  %2436 = vmatpush2.msra.mxu0 %v517
  %2437 = vmatprep.subr.mxu0 0.0
  %2438 = vmatpush2.msra.mxu0 %v516
  %2439 = vmatprep.subr.mxu0 0.0
  %2440 = vmatpush2.msra.mxu0 %v515
  %2441 = vmatprep.subr.mxu0 0.0
  %2442 = vmatpush2.msra.mxu0 %v514
  %2443 = vmatprep.subr.mxu0 0.0
  %2444 = vmatpush2.msra.mxu0 %v513
  %2445 = vmatprep.subr.mxu0 0.0
  %2446 = vmatpush2.msra.mxu0 %v512
  %2447 = vmatprep.subr.mxu0 0.0
  %2448 = vmatpush2.msra.mxu0 %v511
  %2449 = vmatprep.subr.mxu0 0.0
  %2450 = vmatpush2.msra.mxu0 %v510
  %2451 = vmatprep.subr.mxu0 0.0
  %2452 = vmatpush2.msra.mxu0 %v509
  %2453 = vmatprep.subr.mxu0 0.0
  %2454 = vmatpush2.msra.mxu0 %v508
  %2455 = vmatprep.subr.mxu0 0.0
  %2456 = vmatpush2.msra.mxu0 %v507
  %2457 = vmatprep.subr.mxu0 0.0
  %2458 = vmatpush2.msra.mxu0 %v506
  %2459 = vmatprep.subr.mxu0 0.0
  %2460 = vmatpush2.msra.mxu0 %v505
  %2461 = vmatprep.subr.mxu0 0.0
  %2462 = vmatpush2.msra.mxu0 %v504
  %2463 = vmatprep.subr.mxu0 0.0
  %2464 = vmatpush2.msra.mxu0 %v503
  %2465 = vmatprep.subr.mxu0 0.0
  %2466 = vmatpush2.msra.mxu0 %v502
  %2467 = vmatprep.mubr.f32.mxu0 %v2328
  %2468 = vmatmul.mubr.f32.gmra.mxu0 %v2402
  %v2469 = vpop.f32.mrf.mxu0
  %v2470 = vadd.f32 %v395, %v2469
  %v2471 = vpop.f32.mrf.mxu0
  %2472 = vdwg.mxu0
  %v2473 = vtanh.pop %v2470
  %s2474 = scalar_lea.vmem [#allocation2], 112
  %v2475 = vld [vmem:[%s2474] sm:$0xff]
  %2476 = vmatprep.subr.mxu0 0.0
  %2477 = vmatpush1.msra.mxu0 %v413
  %2478 = vmatprep.subr.mxu0 0.0
  %2479 = vmatpush1.msra.mxu0 %v412
  %2480 = vmatprep.subr.mxu0 0.0
  %2481 = vmatpush1.msra.mxu0 %v411
  %2482 = vmatprep.subr.mxu0 0.0
  %2483 = vmatpush1.msra.mxu0 %v410
  %2484 = vmatprep.subr.mxu0 0.0
  %2485 = vmatpush1.msra.mxu0 %v409
  %2486 = vmatprep.subr.mxu0 0.0
  %2487 = vmatpush1.msra.mxu0 %v408
  %2488 = vmatprep.subr.mxu0 0.0
  %2489 = vmatpush1.msra.mxu0 %v407
  %2490 = vmatprep.subr.mxu0 0.0
  %2491 = vmatpush1.msra.mxu0 %v406
  %2492 = vmatprep.subr.mxu0 0.0
  %2493 = vmatpush1.msra.mxu0 %v405
  %2494 = vmatprep.subr.mxu0 0.0
  %2495 = vmatpush1.msra.mxu0 %v404
  %2496 = vmatprep.subr.mxu0 0.0
  %2497 = vmatpush1.msra.mxu0 %v403
  %2498 = vmatprep.subr.mxu0 0.0
  %2499 = vmatpush1.msra.mxu0 %v402
  %2500 = vmatprep.subr.mxu0 0.0
  %2501 = vmatpush1.msra.mxu0 %v401
  %2502 = vmatprep.subr.mxu0 0.0
  %2503 = vmatpush1.msra.mxu0 %v400
  %2504 = vmatprep.subr.mxu0 0.0
  %2505 = vmatpush1.msra.mxu0 %v399
  %2506 = vmatprep.subr.mxu0 0.0
  %2507 = vmatpush1.msra.mxu0 %v398
  %2508 = vmatprep.subr.mxu0 0.0
  %2509 = vmatpush2.msra.mxu0 0.0
  %2510 = vmatprep.subr.mxu0 0.0
  %2511 = vmatpush2.msra.mxu0 0.0
  %2512 = vmatprep.subr.mxu0 0.0
  %2513 = vmatpush2.msra.mxu0 0.0
  %2514 = vmatprep.subr.mxu0 0.0
  %2515 = vmatpush2.msra.mxu0 0.0
  %2516 = vmatprep.subr.mxu0 0.0
  %2517 = vmatpush2.msra.mxu0 0.0
  %2518 = vmatprep.subr.mxu0 0.0
  %2519 = vmatpush2.msra.mxu0 0.0
  %2520 = vmatprep.subr.mxu0 0.0
  %2521 = vmatpush2.msra.mxu0 0.0
  %2522 = vmatprep.subr.mxu0 0.0
  %2523 = vmatpush2.msra.mxu0 0.0
  %2524 = vmatprep.subr.mxu0 0.0
  %2525 = vmatpush2.msra.mxu0 0.0
  %2526 = vmatprep.subr.mxu0 0.0
  %2527 = vmatpush2.msra.mxu0 0.0
  %2528 = vmatprep.subr.mxu0 0.0
  %2529 = vmatpush2.msra.mxu0 0.0
  %2530 = vmatprep.subr.mxu0 0.0
  %2531 = vmatpush2.msra.mxu0 0.0
  %2532 = vmatprep.subr.mxu0 0.0
  %2533 = vmatpush2.msra.mxu0 0.0
  %2534 = vmatprep.subr.mxu0 0.0
  %2535 = vmatpush2.msra.mxu0 0.0
  %2536 = vmatprep.subr.mxu0 0.0
  %2537 = vmatpush2.msra.mxu0 0.0
  %2538 = vmatprep.subr.mxu0 0.0
  %2539 = vmatpush2.msra.mxu0 0.0
  %2540 = vmatprep.mubr.f32.mxu0 0.0
  %2541 = vmatmul.mubr.f32.gmra.mxu0 %v2402
  %v2542 = vpop.f32.mrf.mxu0
  %v2543 = vadd.f32 0.0, %v2542
  %v2544 = vpop.f32.mrf.mxu0
  %2545 = vdwg.mxu0
  %v2546 = vadd.f32 %v2475, %v2543
  %v2547 = vtanh.pop %v2546
  %2548 = vmatprep.subr.mxu0 0.0
  %2549 = vmatpush1.msra.mxu0 %v501
  %2550 = vmatprep.subr.mxu0 0.0
  %2551 = vmatpush1.msra.mxu0 %v500
  %2552 = vmatprep.subr.mxu0 0.0
  %2553 = vmatpush1.msra.mxu0 %v499
  %2554 = vmatprep.subr.mxu0 0.0
  %2555 = vmatpush1.msra.mxu0 %v498
  %2556 = vmatprep.subr.mxu0 0.0
  %2557 = vmatpush1.msra.mxu0 %v497
  %2558 = vmatprep.subr.mxu0 0.0
  %2559 = vmatpush1.msra.mxu0 %v496
  %2560 = vmatprep.subr.mxu0 0.0
  %2561 = vmatpush1.msra.mxu0 %v495
  %2562 = vmatprep.subr.mxu0 0.0
  %2563 = vmatpush1.msra.mxu0 %v494
  %2564 = vmatprep.subr.mxu0 0.0
  %2565 = vmatpush1.msra.mxu0 %v493
  %2566 = vmatprep.subr.mxu0 0.0
  %2567 = vmatpush1.msra.mxu0 %v492
  %2568 = vmatprep.subr.mxu0 0.0
  %2569 = vmatpush1.msra.mxu0 %v491
  %2570 = vmatprep.subr.mxu0 0.0
  %2571 = vmatpush1.msra.mxu0 %v490
  %2572 = vmatprep.subr.mxu0 0.0
  %2573 = vmatpush1.msra.mxu0 %v489
  %2574 = vmatprep.subr.mxu0 0.0
  %2575 = vmatpush1.msra.mxu0 %v488
  %2576 = vmatprep.subr.mxu0 0.0
  %2577 = vmatpush1.msra.mxu0 %v487
  %2578 = vmatprep.subr.mxu0 0.0
  %2579 = vmatpush1.msra.mxu0 %v486
  %2580 = vmatprep.subr.mxu0 0.0
  %2581 = vmatpush2.msra.mxu0 %v517
  %2582 = vmatprep.subr.mxu0 0.0
  %2583 = vmatpush2.msra.mxu0 %v516
  %2584 = vmatprep.subr.mxu0 0.0
  %2585 = vmatpush2.msra.mxu0 %v515
  %2586 = vmatprep.subr.mxu0 0.0
  %2587 = vmatpush2.msra.mxu0 %v514
  %2588 = vmatprep.subr.mxu0 0.0
  %2589 = vmatpush2.msra.mxu0 %v513
  %2590 = vmatprep.subr.mxu0 0.0
  %2591 = vmatpush2.msra.mxu0 %v512
  %2592 = vmatprep.subr.mxu0 0.0
  %2593 = vmatpush2.msra.mxu0 %v511
  %2594 = vmatprep.subr.mxu0 0.0
  %2595 = vmatpush2.msra.mxu0 %v510
  %2596 = vmatprep.subr.mxu0 0.0
  %2597 = vmatpush2.msra.mxu0 %v509
  %2598 = vmatprep.subr.mxu0 0.0
  %2599 = vmatpush2.msra.mxu0 %v508
  %2600 = vmatprep.subr.mxu0 0.0
  %2601 = vmatpush2.msra.mxu0 %v507
  %2602 = vmatprep.subr.mxu0 0.0
  %2603 = vmatpush2.msra.mxu0 %v506
  %2604 = vmatprep.subr.mxu0 0.0
  %2605 = vmatpush2.msra.mxu0 %v505
  %2606 = vmatprep.subr.mxu0 0.0
  %2607 = vmatpush2.msra.mxu0 %v504
  %2608 = vmatprep.subr.mxu0 0.0
  %2609 = vmatpush2.msra.mxu0 %v503
  %2610 = vmatprep.subr.mxu0 0.0
  %2611 = vmatpush2.msra.mxu0 %v502
  %2612 = vmatprep.mubr.f32.mxu0 %v2473
  %2613 = vmatmul.mubr.f32.gmra.mxu0 %v2547
  %v2614 = vpop.f32.mrf.mxu0
  %v2615 = vadd.f32 %v395, %v2614
  %v2616 = vpop.f32.mrf.mxu0
  %2617 = vdwg.mxu0
  %v2618 = vtanh.pop %v2615
  %s2619 = scalar_lea.vmem [#allocation2], 120
  %v2620 = vld [vmem:[%s2619] sm:$0xff]
  %2621 = vmatprep.subr.mxu0 0.0
  %2622 = vmatpush1.msra.mxu0 %v413
  %2623 = vmatprep.subr.mxu0 0.0
  %2624 = vmatpush1.msra.mxu0 %v412
  %2625 = vmatprep.subr.mxu0 0.0
  %2626 = vmatpush1.msra.mxu0 %v411
  %2627 = vmatprep.subr.mxu0 0.0
  %2628 = vmatpush1.msra.mxu0 %v410
  %2629 = vmatprep.subr.mxu0 0.0
  %2630 = vmatpush1.msra.mxu0 %v409
  %2631 = vmatprep.subr.mxu0 0.0
  %2632 = vmatpush1.msra.mxu0 %v408
  %2633 = vmatprep.subr.mxu0 0.0
  %2634 = vmatpush1.msra.mxu0 %v407
  %2635 = vmatprep.subr.mxu0 0.0
  %2636 = vmatpush1.msra.mxu0 %v406
  %2637 = vmatprep.subr.mxu0 0.0
  %2638 = vmatpush1.msra.mxu0 %v405
  %2639 = vmatprep.subr.mxu0 0.0
  %2640 = vmatpush1.msra.mxu0 %v404
  %2641 = vmatprep.subr.mxu0 0.0
  %2642 = vmatpush1.msra.mxu0 %v403
  %2643 = vmatprep.subr.mxu0 0.0
  %2644 = vmatpush1.msra.mxu0 %v402
  %2645 = vmatprep.subr.mxu0 0.0
  %2646 = vmatpush1.msra.mxu0 %v401
  %2647 = vmatprep.subr.mxu0 0.0
  %2648 = vmatpush1.msra.mxu0 %v400
  %2649 = vmatprep.subr.mxu0 0.0
  %2650 = vmatpush1.msra.mxu0 %v399
  %2651 = vmatprep.subr.mxu0 0.0
  %2652 = vmatpush1.msra.mxu0 %v398
  %2653 = vmatprep.subr.mxu0 0.0
  %2654 = vmatpush2.msra.mxu0 0.0
  %2655 = vmatprep.subr.mxu0 0.0
  %2656 = vmatpush2.msra.mxu0 0.0
  %2657 = vmatprep.subr.mxu0 0.0
  %2658 = vmatpush2.msra.mxu0 0.0
  %2659 = vmatprep.subr.mxu0 0.0
  %2660 = vmatpush2.msra.mxu0 0.0
  %2661 = vmatprep.subr.mxu0 0.0
  %2662 = vmatpush2.msra.mxu0 0.0
  %2663 = vmatprep.subr.mxu0 0.0
  %2664 = vmatpush2.msra.mxu0 0.0
  %2665 = vmatprep.subr.mxu0 0.0
  %2666 = vmatpush2.msra.mxu0 0.0
  %2667 = vmatprep.subr.mxu0 0.0
  %2668 = vmatpush2.msra.mxu0 0.0
  %2669 = vmatprep.subr.mxu0 0.0
  %2670 = vmatpush2.msra.mxu0 0.0
  %2671 = vmatprep.subr.mxu0 0.0
  %2672 = vmatpush2.msra.mxu0 0.0
  %2673 = vmatprep.subr.mxu0 0.0
  %2674 = vmatpush2.msra.mxu0 0.0
  %2675 = vmatprep.subr.mxu0 0.0
  %2676 = vmatpush2.msra.mxu0 0.0
  %2677 = vmatprep.subr.mxu0 0.0
  %2678 = vmatpush2.msra.mxu0 0.0
  %2679 = vmatprep.subr.mxu0 0.0
  %2680 = vmatpush2.msra.mxu0 0.0
  %2681 = vmatprep.subr.mxu0 0.0
  %2682 = vmatpush2.msra.mxu0 0.0
  %2683 = vmatprep.subr.mxu0 0.0
  %2684 = vmatpush2.msra.mxu0 0.0
  %2685 = vmatprep.mubr.f32.mxu0 0.0
  %2686 = vmatmul.mubr.f32.gmra.mxu0 %v2547
  %v2687 = vpop.f32.mrf.mxu0
  %v2688 = vadd.f32 0.0, %v2687
  %v2689 = vpop.f32.mrf.mxu0
  %2690 = vdwg.mxu0
  %v2691 = vadd.f32 %v2620, %v2688
  %v2692 = vtanh.pop %v2691
  %2693 = vmatprep.subr.mxu0 0.0
  %2694 = vmatpush1.msra.mxu0 %v501
  %2695 = vmatprep.subr.mxu0 0.0
  %2696 = vmatpush1.msra.mxu0 %v500
  %2697 = vmatprep.subr.mxu0 0.0
  %2698 = vmatpush1.msra.mxu0 %v499
  %2699 = vmatprep.subr.mxu0 0.0
  %2700 = vmatpush1.msra.mxu0 %v498
  %2701 = vmatprep.subr.mxu0 0.0
  %2702 = vmatpush1.msra.mxu0 %v497
  %2703 = vmatprep.subr.mxu0 0.0
  %2704 = vmatpush1.msra.mxu0 %v496
  %2705 = vmatprep.subr.mxu0 0.0
  %2706 = vmatpush1.msra.mxu0 %v495
  %2707 = vmatprep.subr.mxu0 0.0
  %2708 = vmatpush1.msra.mxu0 %v494
  %2709 = vmatprep.subr.mxu0 0.0
  %2710 = vmatpush1.msra.mxu0 %v493
  %2711 = vmatprep.subr.mxu0 0.0
  %2712 = vmatpush1.msra.mxu0 %v492
  %2713 = vmatprep.subr.mxu0 0.0
  %2714 = vmatpush1.msra.mxu0 %v491
  %2715 = vmatprep.subr.mxu0 0.0
  %2716 = vmatpush1.msra.mxu0 %v490
  %2717 = vmatprep.subr.mxu0 0.0
  %2718 = vmatpush1.msra.mxu0 %v489
  %2719 = vmatprep.subr.mxu0 0.0
  %2720 = vmatpush1.msra.mxu0 %v488
  %2721 = vmatprep.subr.mxu0 0.0
  %2722 = vmatpush1.msra.mxu0 %v487
  %2723 = vmatprep.subr.mxu0 0.0
  %2724 = vmatpush1.msra.mxu0 %v486
  %2725 = vmatprep.subr.mxu0 0.0
  %2726 = vmatpush2.msra.mxu0 %v517
  %2727 = vmatprep.subr.mxu0 0.0
  %2728 = vmatpush2.msra.mxu0 %v516
  %2729 = vmatprep.subr.mxu0 0.0
  %2730 = vmatpush2.msra.mxu0 %v515
  %2731 = vmatprep.subr.mxu0 0.0
  %2732 = vmatpush2.msra.mxu0 %v514
  %2733 = vmatprep.subr.mxu0 0.0
  %2734 = vmatpush2.msra.mxu0 %v513
  %2735 = vmatprep.subr.mxu0 0.0
  %2736 = vmatpush2.msra.mxu0 %v512
  %2737 = vmatprep.subr.mxu0 0.0
  %2738 = vmatpush2.msra.mxu0 %v511
  %2739 = vmatprep.subr.mxu0 0.0
  %2740 = vmatpush2.msra.mxu0 %v510
  %2741 = vmatprep.subr.mxu0 0.0
  %2742 = vmatpush2.msra.mxu0 %v509
  %2743 = vmatprep.subr.mxu0 0.0
  %2744 = vmatpush2.msra.mxu0 %v508
  %2745 = vmatprep.subr.mxu0 0.0
  %2746 = vmatpush2.msra.mxu0 %v507
  %2747 = vmatprep.subr.mxu0 0.0
  %2748 = vmatpush2.msra.mxu0 %v506
  %2749 = vmatprep.subr.mxu0 0.0
  %2750 = vmatpush2.msra.mxu0 %v505
  %2751 = vmatprep.subr.mxu0 0.0
  %2752 = vmatpush2.msra.mxu0 %v504
  %2753 = vmatprep.subr.mxu0 0.0
  %2754 = vmatpush2.msra.mxu0 %v503
  %2755 = vmatprep.subr.mxu0 0.0
  %2756 = vmatpush2.msra.mxu0 %v502
  %2757 = vmatprep.mubr.f32.mxu0 %v2618
  %2758 = vmatmul.mubr.f32.gmra.mxu0 %v2692
  %v2759 = vpop.f32.mrf.mxu0
  %v2760 = vadd.f32 %v395, %v2759
  %v2761 = vpop.f32.mrf.mxu0
  %2762 = vdwg.mxu0
  %v2763 = vtanh.pop %v2760
  %s2764 = scalar_lea.vmem [#allocation2], 128
  %v2765 = vld [vmem:[%s2764] sm:$0xff]
  %2766 = vmatprep.subr.mxu0 0.0
  %2767 = vmatpush1.msra.mxu0 %v413
  %2768 = vmatprep.subr.mxu0 0.0
  %2769 = vmatpush1.msra.mxu0 %v412
  %2770 = vmatprep.subr.mxu0 0.0
  %2771 = vmatpush1.msra.mxu0 %v411
  %2772 = vmatprep.subr.mxu0 0.0
  %2773 = vmatpush1.msra.mxu0 %v410
  %2774 = vmatprep.subr.mxu0 0.0
  %2775 = vmatpush1.msra.mxu0 %v409
  %2776 = vmatprep.subr.mxu0 0.0
  %2777 = vmatpush1.msra.mxu0 %v408
  %2778 = vmatprep.subr.mxu0 0.0
  %2779 = vmatpush1.msra.mxu0 %v407
  %2780 = vmatprep.subr.mxu0 0.0
  %2781 = vmatpush1.msra.mxu0 %v406
  %2782 = vmatprep.subr.mxu0 0.0
  %2783 = vmatpush1.msra.mxu0 %v405
  %2784 = vmatprep.subr.mxu0 0.0
  %2785 = vmatpush1.msra.mxu0 %v404
  %2786 = vmatprep.subr.mxu0 0.0
  %2787 = vmatpush1.msra.mxu0 %v403
  %2788 = vmatprep.subr.mxu0 0.0
  %2789 = vmatpush1.msra.mxu0 %v402
  %2790 = vmatprep.subr.mxu0 0.0
  %2791 = vmatpush1.msra.mxu0 %v401
  %2792 = vmatprep.subr.mxu0 0.0
  %2793 = vmatpush1.msra.mxu0 %v400
  %2794 = vmatprep.subr.mxu0 0.0
  %2795 = vmatpush1.msra.mxu0 %v399
  %2796 = vmatprep.subr.mxu0 0.0
  %2797 = vmatpush1.msra.mxu0 %v398
  %2798 = vmatprep.subr.mxu0 0.0
  %2799 = vmatpush2.msra.mxu0 0.0
  %2800 = vmatprep.subr.mxu0 0.0
  %2801 = vmatpush2.msra.mxu0 0.0
  %2802 = vmatprep.subr.mxu0 0.0
  %2803 = vmatpush2.msra.mxu0 0.0
  %2804 = vmatprep.subr.mxu0 0.0
  %2805 = vmatpush2.msra.mxu0 0.0
  %2806 = vmatprep.subr.mxu0 0.0
  %2807 = vmatpush2.msra.mxu0 0.0
  %2808 = vmatprep.subr.mxu0 0.0
  %2809 = vmatpush2.msra.mxu0 0.0
  %2810 = vmatprep.subr.mxu0 0.0
  %2811 = vmatpush2.msra.mxu0 0.0
  %2812 = vmatprep.subr.mxu0 0.0
  %2813 = vmatpush2.msra.mxu0 0.0
  %2814 = vmatprep.subr.mxu0 0.0
  %2815 = vmatpush2.msra.mxu0 0.0
  %2816 = vmatprep.subr.mxu0 0.0
  %2817 = vmatpush2.msra.mxu0 0.0
  %2818 = vmatprep.subr.mxu0 0.0
  %2819 = vmatpush2.msra.mxu0 0.0
  %2820 = vmatprep.subr.mxu0 0.0
  %2821 = vmatpush2.msra.mxu0 0.0
  %2822 = vmatprep.subr.mxu0 0.0
  %2823 = vmatpush2.msra.mxu0 0.0
  %2824 = vmatprep.subr.mxu0 0.0
  %2825 = vmatpush2.msra.mxu0 0.0
  %2826 = vmatprep.subr.mxu0 0.0
  %2827 = vmatpush2.msra.mxu0 0.0
  %2828 = vmatprep.subr.mxu0 0.0
  %2829 = vmatpush2.msra.mxu0 0.0
  %2830 = vmatprep.mubr.f32.mxu0 0.0
  %2831 = vmatmul.mubr.f32.gmra.mxu0 %v2692
  %v2832 = vpop.f32.mrf.mxu0
  %v2833 = vadd.f32 0.0, %v2832
  %v2834 = vpop.f32.mrf.mxu0
  %2835 = vdwg.mxu0
  %v2836 = vadd.f32 %v2765, %v2833
  %v2837 = vtanh.pop %v2836
  %2838 = vmatprep.subr.mxu0 0.0
  %2839 = vmatpush1.msra.mxu0 %v501
  %2840 = vmatprep.subr.mxu0 0.0
  %2841 = vmatpush1.msra.mxu0 %v500
  %2842 = vmatprep.subr.mxu0 0.0
  %2843 = vmatpush1.msra.mxu0 %v499
  %2844 = vmatprep.subr.mxu0 0.0
  %2845 = vmatpush1.msra.mxu0 %v498
  %2846 = vmatprep.subr.mxu0 0.0
  %2847 = vmatpush1.msra.mxu0 %v497
  %2848 = vmatprep.subr.mxu0 0.0
  %2849 = vmatpush1.msra.mxu0 %v496
  %2850 = vmatprep.subr.mxu0 0.0
  %2851 = vmatpush1.msra.mxu0 %v495
  %2852 = vmatprep.subr.mxu0 0.0
  %2853 = vmatpush1.msra.mxu0 %v494
  %2854 = vmatprep.subr.mxu0 0.0
  %2855 = vmatpush1.msra.mxu0 %v493
  %2856 = vmatprep.subr.mxu0 0.0
  %2857 = vmatpush1.msra.mxu0 %v492
  %2858 = vmatprep.subr.mxu0 0.0
  %2859 = vmatpush1.msra.mxu0 %v491
  %2860 = vmatprep.subr.mxu0 0.0
  %2861 = vmatpush1.msra.mxu0 %v490
  %2862 = vmatprep.subr.mxu0 0.0
  %2863 = vmatpush1.msra.mxu0 %v489
  %2864 = vmatprep.subr.mxu0 0.0
  %2865 = vmatpush1.msra.mxu0 %v488
  %2866 = vmatprep.subr.mxu0 0.0
  %2867 = vmatpush1.msra.mxu0 %v487
  %2868 = vmatprep.subr.mxu0 0.0
  %2869 = vmatpush1.msra.mxu0 %v486
  %2870 = vmatprep.subr.mxu0 0.0
  %2871 = vmatpush2.msra.mxu0 %v517
  %2872 = vmatprep.subr.mxu0 0.0
  %2873 = vmatpush2.msra.mxu0 %v516
  %2874 = vmatprep.subr.mxu0 0.0
  %2875 = vmatpush2.msra.mxu0 %v515
  %2876 = vmatprep.subr.mxu0 0.0
  %2877 = vmatpush2.msra.mxu0 %v514
  %2878 = vmatprep.subr.mxu0 0.0
  %2879 = vmatpush2.msra.mxu0 %v513
  %2880 = vmatprep.subr.mxu0 0.0
  %2881 = vmatpush2.msra.mxu0 %v512
  %2882 = vmatprep.subr.mxu0 0.0
  %2883 = vmatpush2.msra.mxu0 %v511
  %2884 = vmatprep.subr.mxu0 0.0
  %2885 = vmatpush2.msra.mxu0 %v510
  %2886 = vmatprep.subr.mxu0 0.0
  %2887 = vmatpush2.msra.mxu0 %v509
  %2888 = vmatprep.subr.mxu0 0.0
  %2889 = vmatpush2.msra.mxu0 %v508
  %2890 = vmatprep.subr.mxu0 0.0
  %2891 = vmatpush2.msra.mxu0 %v507
  %2892 = vmatprep.subr.mxu0 0.0
  %2893 = vmatpush2.msra.mxu0 %v506
  %2894 = vmatprep.subr.mxu0 0.0
  %2895 = vmatpush2.msra.mxu0 %v505
  %2896 = vmatprep.subr.mxu0 0.0
  %2897 = vmatpush2.msra.mxu0 %v504
  %2898 = vmatprep.subr.mxu0 0.0
  %2899 = vmatpush2.msra.mxu0 %v503
  %2900 = vmatprep.subr.mxu0 0.0
  %2901 = vmatpush2.msra.mxu0 %v502
  %2902 = vmatprep.mubr.f32.mxu0 %v2763
  %2903 = vmatmul.mubr.f32.gmra.mxu0 %v2837
  %v2904 = vpop.f32.mrf.mxu0
  %v2905 = vadd.f32 %v395, %v2904
  %v2906 = vpop.f32.mrf.mxu0
  %2907 = vdwg.mxu0
  %v2908 = vtanh.pop %v2905
  %s2909 = scalar_lea.vmem [#allocation2], 136
  %v2910 = vld [vmem:[%s2909] sm:$0xff]
  %2911 = vmatprep.subr.mxu0 0.0
  %2912 = vmatpush1.msra.mxu0 %v413
  %2913 = vmatprep.subr.mxu0 0.0
  %2914 = vmatpush1.msra.mxu0 %v412
  %2915 = vmatprep.subr.mxu0 0.0
  %2916 = vmatpush1.msra.mxu0 %v411
  %2917 = vmatprep.subr.mxu0 0.0
  %2918 = vmatpush1.msra.mxu0 %v410
  %2919 = vmatprep.subr.mxu0 0.0
  %2920 = vmatpush1.msra.mxu0 %v409
  %2921 = vmatprep.subr.mxu0 0.0
  %2922 = vmatpush1.msra.mxu0 %v408
  %2923 = vmatprep.subr.mxu0 0.0
  %2924 = vmatpush1.msra.mxu0 %v407
  %2925 = vmatprep.subr.mxu0 0.0
  %2926 = vmatpush1.msra.mxu0 %v406
  %2927 = vmatprep.subr.mxu0 0.0
  %2928 = vmatpush1.msra.mxu0 %v405
  %2929 = vmatprep.subr.mxu0 0.0
  %2930 = vmatpush1.msra.mxu0 %v404
  %2931 = vmatprep.subr.mxu0 0.0
  %2932 = vmatpush1.msra.mxu0 %v403
  %2933 = vmatprep.subr.mxu0 0.0
  %2934 = vmatpush1.msra.mxu0 %v402
  %2935 = vmatprep.subr.mxu0 0.0
  %2936 = vmatpush1.msra.mxu0 %v401
  %2937 = vmatprep.subr.mxu0 0.0
  %2938 = vmatpush1.msra.mxu0 %v400
  %2939 = vmatprep.subr.mxu0 0.0
  %2940 = vmatpush1.msra.mxu0 %v399
  %2941 = vmatprep.subr.mxu0 0.0
  %2942 = vmatpush1.msra.mxu0 %v398
  %2943 = vmatprep.subr.mxu0 0.0
  %2944 = vmatpush2.msra.mxu0 0.0
  %2945 = vmatprep.subr.mxu0 0.0
  %2946 = vmatpush2.msra.mxu0 0.0
  %2947 = vmatprep.subr.mxu0 0.0
  %2948 = vmatpush2.msra.mxu0 0.0
  %2949 = vmatprep.subr.mxu0 0.0
  %2950 = vmatpush2.msra.mxu0 0.0
  %2951 = vmatprep.subr.mxu0 0.0
  %2952 = vmatpush2.msra.mxu0 0.0
  %2953 = vmatprep.subr.mxu0 0.0
  %2954 = vmatpush2.msra.mxu0 0.0
  %2955 = vmatprep.subr.mxu0 0.0
  %2956 = vmatpush2.msra.mxu0 0.0
  %2957 = vmatprep.subr.mxu0 0.0
  %2958 = vmatpush2.msra.mxu0 0.0
  %2959 = vmatprep.subr.mxu0 0.0
  %2960 = vmatpush2.msra.mxu0 0.0
  %2961 = vmatprep.subr.mxu0 0.0
  %2962 = vmatpush2.msra.mxu0 0.0
  %2963 = vmatprep.subr.mxu0 0.0
  %2964 = vmatpush2.msra.mxu0 0.0
  %2965 = vmatprep.subr.mxu0 0.0
  %2966 = vmatpush2.msra.mxu0 0.0
  %2967 = vmatprep.subr.mxu0 0.0
  %2968 = vmatpush2.msra.mxu0 0.0
  %2969 = vmatprep.subr.mxu0 0.0
  %2970 = vmatpush2.msra.mxu0 0.0
  %2971 = vmatprep.subr.mxu0 0.0
  %2972 = vmatpush2.msra.mxu0 0.0
  %2973 = vmatprep.subr.mxu0 0.0
  %2974 = vmatpush2.msra.mxu0 0.0
  %2975 = vmatprep.mubr.f32.mxu0 0.0
  %2976 = vmatmul.mubr.f32.gmra.mxu0 %v2837
  %v2977 = vpop.f32.mrf.mxu0
  %v2978 = vadd.f32 0.0, %v2977
  %v2979 = vpop.f32.mrf.mxu0
  %2980 = vdwg.mxu0
  %v2981 = vadd.f32 %v2910, %v2978
  %v2982 = vtanh.pop %v2981
  %2983 = vmatprep.subr.mxu0 0.0
  %2984 = vmatpush1.msra.mxu0 %v501
  %2985 = vmatprep.subr.mxu0 0.0
  %2986 = vmatpush1.msra.mxu0 %v500
  %2987 = vmatprep.subr.mxu0 0.0
  %2988 = vmatpush1.msra.mxu0 %v499
  %2989 = vmatprep.subr.mxu0 0.0
  %2990 = vmatpush1.msra.mxu0 %v498
  %2991 = vmatprep.subr.mxu0 0.0
  %2992 = vmatpush1.msra.mxu0 %v497
  %2993 = vmatprep.subr.mxu0 0.0
  %2994 = vmatpush1.msra.mxu0 %v496
  %2995 = vmatprep.subr.mxu0 0.0
  %2996 = vmatpush1.msra.mxu0 %v495
  %2997 = vmatprep.subr.mxu0 0.0
  %2998 = vmatpush1.msra.mxu0 %v494
  %2999 = vmatprep.subr.mxu0 0.0
  %3000 = vmatpush1.msra.mxu0 %v493
  %3001 = vmatprep.subr.mxu0 0.0
  %3002 = vmatpush1.msra.mxu0 %v492
  %3003 = vmatprep.subr.mxu0 0.0
  %3004 = vmatpush1.msra.mxu0 %v491
  %3005 = vmatprep.subr.mxu0 0.0
  %3006 = vmatpush1.msra.mxu0 %v490
  %3007 = vmatprep.subr.mxu0 0.0
  %3008 = vmatpush1.msra.mxu0 %v489
  %3009 = vmatprep.subr.mxu0 0.0
  %3010 = vmatpush1.msra.mxu0 %v488
  %3011 = vmatprep.subr.mxu0 0.0
  %3012 = vmatpush1.msra.mxu0 %v487
  %3013 = vmatprep.subr.mxu0 0.0
  %3014 = vmatpush1.msra.mxu0 %v486
  %3015 = vmatprep.subr.mxu0 0.0
  %3016 = vmatpush2.msra.mxu0 %v517
  %3017 = vmatprep.subr.mxu0 0.0
  %3018 = vmatpush2.msra.mxu0 %v516
  %3019 = vmatprep.subr.mxu0 0.0
  %3020 = vmatpush2.msra.mxu0 %v515
  %3021 = vmatprep.subr.mxu0 0.0
  %3022 = vmatpush2.msra.mxu0 %v514
  %3023 = vmatprep.subr.mxu0 0.0
  %3024 = vmatpush2.msra.mxu0 %v513
  %3025 = vmatprep.subr.mxu0 0.0
  %3026 = vmatpush2.msra.mxu0 %v512
  %3027 = vmatprep.subr.mxu0 0.0
  %3028 = vmatpush2.msra.mxu0 %v511
  %3029 = vmatprep.subr.mxu0 0.0
  %3030 = vmatpush2.msra.mxu0 %v510
  %3031 = vmatprep.subr.mxu0 0.0
  %3032 = vmatpush2.msra.mxu0 %v509
  %3033 = vmatprep.subr.mxu0 0.0
  %3034 = vmatpush2.msra.mxu0 %v508
  %3035 = vmatprep.subr.mxu0 0.0
  %3036 = vmatpush2.msra.mxu0 %v507
  %3037 = vmatprep.subr.mxu0 0.0
  %3038 = vmatpush2.msra.mxu0 %v506
  %3039 = vmatprep.subr.mxu0 0.0
  %3040 = vmatpush2.msra.mxu0 %v505
  %3041 = vmatprep.subr.mxu0 0.0
  %3042 = vmatpush2.msra.mxu0 %v504
  %3043 = vmatprep.subr.mxu0 0.0
  %3044 = vmatpush2.msra.mxu0 %v503
  %3045 = vmatprep.subr.mxu0 0.0
  %3046 = vmatpush2.msra.mxu0 %v502
  %3047 = vmatprep.mubr.f32.mxu0 %v2908
  %3048 = vmatmul.mubr.f32.gmra.mxu0 %v2982
  %v3049 = vpop.f32.mrf.mxu0
  %v3050 = vadd.f32 %v395, %v3049
  %v3051 = vpop.f32.mrf.mxu0
  %3052 = vdwg.mxu0
  %v3053 = vtanh.pop %v3050
  %s3054 = scalar_lea.vmem [#allocation2], 144
  %v3055 = vld [vmem:[%s3054] sm:$0xff]
  %3056 = vmatprep.subr.mxu0 0.0
  %3057 = vmatpush1.msra.mxu0 %v413
  %3058 = vmatprep.subr.mxu0 0.0
  %3059 = vmatpush1.msra.mxu0 %v412
  %3060 = vmatprep.subr.mxu0 0.0
  %3061 = vmatpush1.msra.mxu0 %v411
  %3062 = vmatprep.subr.mxu0 0.0
  %3063 = vmatpush1.msra.mxu0 %v410
  %3064 = vmatprep.subr.mxu0 0.0
  %3065 = vmatpush1.msra.mxu0 %v409
  %3066 = vmatprep.subr.mxu0 0.0
  %3067 = vmatpush1.msra.mxu0 %v408
  %3068 = vmatprep.subr.mxu0 0.0
  %3069 = vmatpush1.msra.mxu0 %v407
  %3070 = vmatprep.subr.mxu0 0.0
  %3071 = vmatpush1.msra.mxu0 %v406
  %3072 = vmatprep.subr.mxu0 0.0
  %3073 = vmatpush1.msra.mxu0 %v405
  %3074 = vmatprep.subr.mxu0 0.0
  %3075 = vmatpush1.msra.mxu0 %v404
  %3076 = vmatprep.subr.mxu0 0.0
  %3077 = vmatpush1.msra.mxu0 %v403
  %3078 = vmatprep.subr.mxu0 0.0
  %3079 = vmatpush1.msra.mxu0 %v402
  %3080 = vmatprep.subr.mxu0 0.0
  %3081 = vmatpush1.msra.mxu0 %v401
  %3082 = vmatprep.subr.mxu0 0.0
  %3083 = vmatpush1.msra.mxu0 %v400
  %3084 = vmatprep.subr.mxu0 0.0
  %3085 = vmatpush1.msra.mxu0 %v399
  %3086 = vmatprep.subr.mxu0 0.0
  %3087 = vmatpush1.msra.mxu0 %v398
  %3088 = vmatprep.subr.mxu0 0.0
  %3089 = vmatpush2.msra.mxu0 0.0
  %3090 = vmatprep.subr.mxu0 0.0
  %3091 = vmatpush2.msra.mxu0 0.0
  %3092 = vmatprep.subr.mxu0 0.0
  %3093 = vmatpush2.msra.mxu0 0.0
  %3094 = vmatprep.subr.mxu0 0.0
  %3095 = vmatpush2.msra.mxu0 0.0
  %3096 = vmatprep.subr.mxu0 0.0
  %3097 = vmatpush2.msra.mxu0 0.0
  %3098 = vmatprep.subr.mxu0 0.0
  %3099 = vmatpush2.msra.mxu0 0.0
  %3100 = vmatprep.subr.mxu0 0.0
  %3101 = vmatpush2.msra.mxu0 0.0
  %3102 = vmatprep.subr.mxu0 0.0
  %3103 = vmatpush2.msra.mxu0 0.0
  %3104 = vmatprep.subr.mxu0 0.0
  %3105 = vmatpush2.msra.mxu0 0.0
  %3106 = vmatprep.subr.mxu0 0.0
  %3107 = vmatpush2.msra.mxu0 0.0
  %3108 = vmatprep.subr.mxu0 0.0
  %3109 = vmatpush2.msra.mxu0 0.0
  %3110 = vmatprep.subr.mxu0 0.0
  %3111 = vmatpush2.msra.mxu0 0.0
  %3112 = vmatprep.subr.mxu0 0.0
  %3113 = vmatpush2.msra.mxu0 0.0
  %3114 = vmatprep.subr.mxu0 0.0
  %3115 = vmatpush2.msra.mxu0 0.0
  %3116 = vmatprep.subr.mxu0 0.0
  %3117 = vmatpush2.msra.mxu0 0.0
  %3118 = vmatprep.subr.mxu0 0.0
  %3119 = vmatpush2.msra.mxu0 0.0
  %3120 = vmatprep.mubr.f32.mxu0 0.0
  %3121 = vmatmul.mubr.f32.gmra.mxu0 %v2982
  %v3122 = vpop.f32.mrf.mxu0
  %v3123 = vadd.f32 0.0, %v3122
  %v3124 = vpop.f32.mrf.mxu0
  %3125 = vdwg.mxu0
  %v3126 = vadd.f32 %v3055, %v3123
  %v3127 = vtanh.pop %v3126
  %3128 = vmatprep.subr.mxu0 0.0
  %3129 = vmatpush1.msra.mxu0 %v501
  %3130 = vmatprep.subr.mxu0 0.0
  %3131 = vmatpush1.msra.mxu0 %v500
  %3132 = vmatprep.subr.mxu0 0.0
  %3133 = vmatpush1.msra.mxu0 %v499
  %3134 = vmatprep.subr.mxu0 0.0
  %3135 = vmatpush1.msra.mxu0 %v498
  %3136 = vmatprep.subr.mxu0 0.0
  %3137 = vmatpush1.msra.mxu0 %v497
  %3138 = vmatprep.subr.mxu0 0.0
  %3139 = vmatpush1.msra.mxu0 %v496
  %3140 = vmatprep.subr.mxu0 0.0
  %3141 = vmatpush1.msra.mxu0 %v495
  %3142 = vmatprep.subr.mxu0 0.0
  %3143 = vmatpush1.msra.mxu0 %v494
  %3144 = vmatprep.subr.mxu0 0.0
  %3145 = vmatpush1.msra.mxu0 %v493
  %3146 = vmatprep.subr.mxu0 0.0
  %3147 = vmatpush1.msra.mxu0 %v492
  %3148 = vmatprep.subr.mxu0 0.0
  %3149 = vmatpush1.msra.mxu0 %v491
  %3150 = vmatprep.subr.mxu0 0.0
  %3151 = vmatpush1.msra.mxu0 %v490
  %3152 = vmatprep.subr.mxu0 0.0
  %3153 = vmatpush1.msra.mxu0 %v489
  %3154 = vmatprep.subr.mxu0 0.0
  %3155 = vmatpush1.msra.mxu0 %v488
  %3156 = vmatprep.subr.mxu0 0.0
  %3157 = vmatpush1.msra.mxu0 %v487
  %3158 = vmatprep.subr.mxu0 0.0
  %3159 = vmatpush1.msra.mxu0 %v486
  %3160 = vmatprep.subr.mxu0 0.0
  %3161 = vmatpush2.msra.mxu0 %v517
  %3162 = vmatprep.subr.mxu0 0.0
  %3163 = vmatpush2.msra.mxu0 %v516
  %3164 = vmatprep.subr.mxu0 0.0
  %3165 = vmatpush2.msra.mxu0 %v515
  %3166 = vmatprep.subr.mxu0 0.0
  %3167 = vmatpush2.msra.mxu0 %v514
  %3168 = vmatprep.subr.mxu0 0.0
  %3169 = vmatpush2.msra.mxu0 %v513
  %3170 = vmatprep.subr.mxu0 0.0
  %3171 = vmatpush2.msra.mxu0 %v512
  %3172 = vmatprep.subr.mxu0 0.0
  %3173 = vmatpush2.msra.mxu0 %v511
  %3174 = vmatprep.subr.mxu0 0.0
  %3175 = vmatpush2.msra.mxu0 %v510
  %3176 = vmatprep.subr.mxu0 0.0
  %3177 = vmatpush2.msra.mxu0 %v509
  %3178 = vmatprep.subr.mxu0 0.0
  %3179 = vmatpush2.msra.mxu0 %v508
  %3180 = vmatprep.subr.mxu0 0.0
  %3181 = vmatpush2.msra.mxu0 %v507
  %3182 = vmatprep.subr.mxu0 0.0
  %3183 = vmatpush2.msra.mxu0 %v506
  %3184 = vmatprep.subr.mxu0 0.0
  %3185 = vmatpush2.msra.mxu0 %v505
  %3186 = vmatprep.subr.mxu0 0.0
  %3187 = vmatpush2.msra.mxu0 %v504
  %3188 = vmatprep.subr.mxu0 0.0
  %3189 = vmatpush2.msra.mxu0 %v503
  %3190 = vmatprep.subr.mxu0 0.0
  %3191 = vmatpush2.msra.mxu0 %v502
  %3192 = vmatprep.mubr.f32.mxu0 %v3053
  %3193 = vmatmul.mubr.f32.gmra.mxu0 %v3127
  %v3194 = vpop.f32.mrf.mxu0
  %v3195 = vadd.f32 %v395, %v3194
  %v3196 = vpop.f32.mrf.mxu0
  %3197 = vdwg.mxu0
  %v3198 = vtanh.pop %v3195
  %s3199 = scalar_lea.vmem [#allocation2], 152
  %v3200 = vld [vmem:[%s3199] sm:$0xff]
  %3201 = vmatprep.subr.mxu0 0.0
  %3202 = vmatpush1.msra.mxu0 %v413
  %3203 = vmatprep.subr.mxu0 0.0
  %3204 = vmatpush1.msra.mxu0 %v412
  %3205 = vmatprep.subr.mxu0 0.0
  %3206 = vmatpush1.msra.mxu0 %v411
  %3207 = vmatprep.subr.mxu0 0.0
  %3208 = vmatpush1.msra.mxu0 %v410
  %3209 = vmatprep.subr.mxu0 0.0
  %3210 = vmatpush1.msra.mxu0 %v409
  %3211 = vmatprep.subr.mxu0 0.0
  %3212 = vmatpush1.msra.mxu0 %v408
  %3213 = vmatprep.subr.mxu0 0.0
  %3214 = vmatpush1.msra.mxu0 %v407
  %3215 = vmatprep.subr.mxu0 0.0
  %3216 = vmatpush1.msra.mxu0 %v406
  %3217 = vmatprep.subr.mxu0 0.0
  %3218 = vmatpush1.msra.mxu0 %v405
  %3219 = vmatprep.subr.mxu0 0.0
  %3220 = vmatpush1.msra.mxu0 %v404
  %3221 = vmatprep.subr.mxu0 0.0
  %3222 = vmatpush1.msra.mxu0 %v403
  %3223 = vmatprep.subr.mxu0 0.0
  %3224 = vmatpush1.msra.mxu0 %v402
  %3225 = vmatprep.subr.mxu0 0.0
  %3226 = vmatpush1.msra.mxu0 %v401
  %3227 = vmatprep.subr.mxu0 0.0
  %3228 = vmatpush1.msra.mxu0 %v400
  %3229 = vmatprep.subr.mxu0 0.0
  %3230 = vmatpush1.msra.mxu0 %v399
  %3231 = vmatprep.subr.mxu0 0.0
  %3232 = vmatpush1.msra.mxu0 %v398
  %3233 = vmatprep.subr.mxu0 0.0
  %3234 = vmatpush2.msra.mxu0 0.0
  %3235 = vmatprep.subr.mxu0 0.0
  %3236 = vmatpush2.msra.mxu0 0.0
  %3237 = vmatprep.subr.mxu0 0.0
  %3238 = vmatpush2.msra.mxu0 0.0
  %3239 = vmatprep.subr.mxu0 0.0
  %3240 = vmatpush2.msra.mxu0 0.0
  %3241 = vmatprep.subr.mxu0 0.0
  %3242 = vmatpush2.msra.mxu0 0.0
  %3243 = vmatprep.subr.mxu0 0.0
  %3244 = vmatpush2.msra.mxu0 0.0
  %3245 = vmatprep.subr.mxu0 0.0
  %3246 = vmatpush2.msra.mxu0 0.0
  %3247 = vmatprep.subr.mxu0 0.0
  %3248 = vmatpush2.msra.mxu0 0.0
  %3249 = vmatprep.subr.mxu0 0.0
  %3250 = vmatpush2.msra.mxu0 0.0
  %3251 = vmatprep.subr.mxu0 0.0
  %3252 = vmatpush2.msra.mxu0 0.0
  %3253 = vmatprep.subr.mxu0 0.0
  %3254 = vmatpush2.msra.mxu0 0.0
  %3255 = vmatprep.subr.mxu0 0.0
  %3256 = vmatpush2.msra.mxu0 0.0
  %3257 = vmatprep.subr.mxu0 0.0
  %3258 = vmatpush2.msra.mxu0 0.0
  %3259 = vmatprep.subr.mxu0 0.0
  %3260 = vmatpush2.msra.mxu0 0.0
  %3261 = vmatprep.subr.mxu0 0.0
  %3262 = vmatpush2.msra.mxu0 0.0
  %3263 = vmatprep.subr.mxu0 0.0
  %3264 = vmatpush2.msra.mxu0 0.0
  %3265 = vmatprep.mubr.f32.mxu0 0.0
  %3266 = vmatmul.mubr.f32.gmra.mxu0 %v3127
  %v3267 = vpop.f32.mrf.mxu0
  %v3268 = vadd.f32 0.0, %v3267
  %v3269 = vpop.f32.mrf.mxu0
  %3270 = vdwg.mxu0
  %v3271 = vadd.f32 %v3200, %v3268
  %v3272 = vtanh.pop %v3271
  %3273 = vmatprep.subr.mxu0 0.0
  %3274 = vmatpush1.msra.mxu0 %v501
  %3275 = vmatprep.subr.mxu0 0.0
  %3276 = vmatpush1.msra.mxu0 %v500
  %3277 = vmatprep.subr.mxu0 0.0
  %3278 = vmatpush1.msra.mxu0 %v499
  %3279 = vmatprep.subr.mxu0 0.0
  %3280 = vmatpush1.msra.mxu0 %v498
  %3281 = vmatprep.subr.mxu0 0.0
  %3282 = vmatpush1.msra.mxu0 %v497
  %3283 = vmatprep.subr.mxu0 0.0
  %3284 = vmatpush1.msra.mxu0 %v496
  %3285 = vmatprep.subr.mxu0 0.0
  %3286 = vmatpush1.msra.mxu0 %v495
  %3287 = vmatprep.subr.mxu0 0.0
  %3288 = vmatpush1.msra.mxu0 %v494
  %3289 = vmatprep.subr.mxu0 0.0
  %3290 = vmatpush1.msra.mxu0 %v493
  %3291 = vmatprep.subr.mxu0 0.0
  %3292 = vmatpush1.msra.mxu0 %v492
  %3293 = vmatprep.subr.mxu0 0.0
  %3294 = vmatpush1.msra.mxu0 %v491
  %3295 = vmatprep.subr.mxu0 0.0
  %3296 = vmatpush1.msra.mxu0 %v490
  %3297 = vmatprep.subr.mxu0 0.0
  %3298 = vmatpush1.msra.mxu0 %v489
  %3299 = vmatprep.subr.mxu0 0.0
  %3300 = vmatpush1.msra.mxu0 %v488
  %3301 = vmatprep.subr.mxu0 0.0
  %3302 = vmatpush1.msra.mxu0 %v487
  %3303 = vmatprep.subr.mxu0 0.0
  %3304 = vmatpush1.msra.mxu0 %v486
  %3305 = vmatprep.subr.mxu0 0.0
  %3306 = vmatpush2.msra.mxu0 %v517
  %3307 = vmatprep.subr.mxu0 0.0
  %3308 = vmatpush2.msra.mxu0 %v516
  %3309 = vmatprep.subr.mxu0 0.0
  %3310 = vmatpush2.msra.mxu0 %v515
  %3311 = vmatprep.subr.mxu0 0.0
  %3312 = vmatpush2.msra.mxu0 %v514
  %3313 = vmatprep.subr.mxu0 0.0
  %3314 = vmatpush2.msra.mxu0 %v513
  %3315 = vmatprep.subr.mxu0 0.0
  %3316 = vmatpush2.msra.mxu0 %v512
  %3317 = vmatprep.subr.mxu0 0.0
  %3318 = vmatpush2.msra.mxu0 %v511
  %3319 = vmatprep.subr.mxu0 0.0
  %3320 = vmatpush2.msra.mxu0 %v510
  %3321 = vmatprep.subr.mxu0 0.0
  %3322 = vmatpush2.msra.mxu0 %v509
  %3323 = vmatprep.subr.mxu0 0.0
  %3324 = vmatpush2.msra.mxu0 %v508
  %3325 = vmatprep.subr.mxu0 0.0
  %3326 = vmatpush2.msra.mxu0 %v507
  %3327 = vmatprep.subr.mxu0 0.0
  %3328 = vmatpush2.msra.mxu0 %v506
  %3329 = vmatprep.subr.mxu0 0.0
  %3330 = vmatpush2.msra.mxu0 %v505
  %3331 = vmatprep.subr.mxu0 0.0
  %3332 = vmatpush2.msra.mxu0 %v504
  %3333 = vmatprep.subr.mxu0 0.0
  %3334 = vmatpush2.msra.mxu0 %v503
  %3335 = vmatprep.subr.mxu0 0.0
  %3336 = vmatpush2.msra.mxu0 %v502
  %3337 = vmatprep.mubr.f32.mxu0 %v3198
  %3338 = vmatmul.mubr.f32.gmra.mxu0 %v3272
  %v3339 = vpop.f32.mrf.mxu0
  %v3340 = vadd.f32 %v395, %v3339
  %v3341 = vpop.f32.mrf.mxu0
  %3342 = vdwg.mxu0
  %v3343 = vtanh.pop %v3340
  %s3344 = scalar_lea.vmem [#allocation2], 160
  %v3345 = vld [vmem:[%s3344] sm:$0xff]
  %3346 = vmatprep.subr.mxu0 0.0
  %3347 = vmatpush1.msra.mxu0 %v413
  %3348 = vmatprep.subr.mxu0 0.0
  %3349 = vmatpush1.msra.mxu0 %v412
  %3350 = vmatprep.subr.mxu0 0.0
  %3351 = vmatpush1.msra.mxu0 %v411
  %3352 = vmatprep.subr.mxu0 0.0
  %3353 = vmatpush1.msra.mxu0 %v410
  %3354 = vmatprep.subr.mxu0 0.0
  %3355 = vmatpush1.msra.mxu0 %v409
  %3356 = vmatprep.subr.mxu0 0.0
  %3357 = vmatpush1.msra.mxu0 %v408
  %3358 = vmatprep.subr.mxu0 0.0
  %3359 = vmatpush1.msra.mxu0 %v407
  %3360 = vmatprep.subr.mxu0 0.0
  %3361 = vmatpush1.msra.mxu0 %v406
  %3362 = vmatprep.subr.mxu0 0.0
  %3363 = vmatpush1.msra.mxu0 %v405
  %3364 = vmatprep.subr.mxu0 0.0
  %3365 = vmatpush1.msra.mxu0 %v404
  %3366 = vmatprep.subr.mxu0 0.0
  %3367 = vmatpush1.msra.mxu0 %v403
  %3368 = vmatprep.subr.mxu0 0.0
  %3369 = vmatpush1.msra.mxu0 %v402
  %3370 = vmatprep.subr.mxu0 0.0
  %3371 = vmatpush1.msra.mxu0 %v401
  %3372 = vmatprep.subr.mxu0 0.0
  %3373 = vmatpush1.msra.mxu0 %v400
  %3374 = vmatprep.subr.mxu0 0.0
  %3375 = vmatpush1.msra.mxu0 %v399
  %3376 = vmatprep.subr.mxu0 0.0
  %3377 = vmatpush1.msra.mxu0 %v398
  %3378 = vmatprep.subr.mxu0 0.0
  %3379 = vmatpush2.msra.mxu0 0.0
  %3380 = vmatprep.subr.mxu0 0.0
  %3381 = vmatpush2.msra.mxu0 0.0
  %3382 = vmatprep.subr.mxu0 0.0
  %3383 = vmatpush2.msra.mxu0 0.0
  %3384 = vmatprep.subr.mxu0 0.0
  %3385 = vmatpush2.msra.mxu0 0.0
  %3386 = vmatprep.subr.mxu0 0.0
  %3387 = vmatpush2.msra.mxu0 0.0
  %3388 = vmatprep.subr.mxu0 0.0
  %3389 = vmatpush2.msra.mxu0 0.0
  %3390 = vmatprep.subr.mxu0 0.0
  %3391 = vmatpush2.msra.mxu0 0.0
  %3392 = vmatprep.subr.mxu0 0.0
  %3393 = vmatpush2.msra.mxu0 0.0
  %3394 = vmatprep.subr.mxu0 0.0
  %3395 = vmatpush2.msra.mxu0 0.0
  %3396 = vmatprep.subr.mxu0 0.0
  %3397 = vmatpush2.msra.mxu0 0.0
  %3398 = vmatprep.subr.mxu0 0.0
  %3399 = vmatpush2.msra.mxu0 0.0
  %3400 = vmatprep.subr.mxu0 0.0
  %3401 = vmatpush2.msra.mxu0 0.0
  %3402 = vmatprep.subr.mxu0 0.0
  %3403 = vmatpush2.msra.mxu0 0.0
  %3404 = vmatprep.subr.mxu0 0.0
  %3405 = vmatpush2.msra.mxu0 0.0
  %3406 = vmatprep.subr.mxu0 0.0
  %3407 = vmatpush2.msra.mxu0 0.0
  %3408 = vmatprep.subr.mxu0 0.0
  %3409 = vmatpush2.msra.mxu0 0.0
  %3410 = vmatprep.mubr.f32.mxu0 0.0
  %3411 = vmatmul.mubr.f32.gmra.mxu0 %v3272
  %v3412 = vpop.f32.mrf.mxu0
  %v3413 = vadd.f32 0.0, %v3412
  %v3414 = vpop.f32.mrf.mxu0
  %3415 = vdwg.mxu0
  %v3416 = vadd.f32 %v3345, %v3413
  %v3417 = vtanh.pop %v3416
  %3418 = vmatprep.subr.mxu0 0.0
  %3419 = vmatpush1.msra.mxu0 %v501
  %3420 = vmatprep.subr.mxu0 0.0
  %3421 = vmatpush1.msra.mxu0 %v500
  %3422 = vmatprep.subr.mxu0 0.0
  %3423 = vmatpush1.msra.mxu0 %v499
  %3424 = vmatprep.subr.mxu0 0.0
  %3425 = vmatpush1.msra.mxu0 %v498
  %3426 = vmatprep.subr.mxu0 0.0
  %3427 = vmatpush1.msra.mxu0 %v497
  %3428 = vmatprep.subr.mxu0 0.0
  %3429 = vmatpush1.msra.mxu0 %v496
  %3430 = vmatprep.subr.mxu0 0.0
  %3431 = vmatpush1.msra.mxu0 %v495
  %3432 = vmatprep.subr.mxu0 0.0
  %3433 = vmatpush1.msra.mxu0 %v494
  %3434 = vmatprep.subr.mxu0 0.0
  %3435 = vmatpush1.msra.mxu0 %v493
  %3436 = vmatprep.subr.mxu0 0.0
  %3437 = vmatpush1.msra.mxu0 %v492
  %3438 = vmatprep.subr.mxu0 0.0
  %3439 = vmatpush1.msra.mxu0 %v491
  %3440 = vmatprep.subr.mxu0 0.0
  %3441 = vmatpush1.msra.mxu0 %v490
  %3442 = vmatprep.subr.mxu0 0.0
  %3443 = vmatpush1.msra.mxu0 %v489
  %3444 = vmatprep.subr.mxu0 0.0
  %3445 = vmatpush1.msra.mxu0 %v488
  %3446 = vmatprep.subr.mxu0 0.0
  %3447 = vmatpush1.msra.mxu0 %v487
  %3448 = vmatprep.subr.mxu0 0.0
  %3449 = vmatpush1.msra.mxu0 %v486
  %3450 = vmatprep.subr.mxu0 0.0
  %3451 = vmatpush2.msra.mxu0 %v517
  %3452 = vmatprep.subr.mxu0 0.0
  %3453 = vmatpush2.msra.mxu0 %v516
  %3454 = vmatprep.subr.mxu0 0.0
  %3455 = vmatpush2.msra.mxu0 %v515
  %3456 = vmatprep.subr.mxu0 0.0
  %3457 = vmatpush2.msra.mxu0 %v514
  %3458 = vmatprep.subr.mxu0 0.0
  %3459 = vmatpush2.msra.mxu0 %v513
  %3460 = vmatprep.subr.mxu0 0.0
  %3461 = vmatpush2.msra.mxu0 %v512
  %3462 = vmatprep.subr.mxu0 0.0
  %3463 = vmatpush2.msra.mxu0 %v511
  %3464 = vmatprep.subr.mxu0 0.0
  %3465 = vmatpush2.msra.mxu0 %v510
  %3466 = vmatprep.subr.mxu0 0.0
  %3467 = vmatpush2.msra.mxu0 %v509
  %3468 = vmatprep.subr.mxu0 0.0
  %3469 = vmatpush2.msra.mxu0 %v508
  %3470 = vmatprep.subr.mxu0 0.0
  %3471 = vmatpush2.msra.mxu0 %v507
  %3472 = vmatprep.subr.mxu0 0.0
  %3473 = vmatpush2.msra.mxu0 %v506
  %3474 = vmatprep.subr.mxu0 0.0
  %3475 = vmatpush2.msra.mxu0 %v505
  %3476 = vmatprep.subr.mxu0 0.0
  %3477 = vmatpush2.msra.mxu0 %v504
  %3478 = vmatprep.subr.mxu0 0.0
  %3479 = vmatpush2.msra.mxu0 %v503
  %3480 = vmatprep.subr.mxu0 0.0
  %3481 = vmatpush2.msra.mxu0 %v502
  %3482 = vmatprep.mubr.f32.mxu0 %v3343
  %3483 = vmatmul.mubr.f32.gmra.mxu0 %v3417
  %v3484 = vpop.f32.mrf.mxu0
  %v3485 = vadd.f32 %v395, %v3484
  %v3486 = vpop.f32.mrf.mxu0
  %3487 = vdwg.mxu0
  %v3488 = vtanh.pop %v3485
  %s3489 = scalar_lea.vmem [#allocation2], 168
  %v3490 = vld [vmem:[%s3489] sm:$0xff]
  %3491 = vmatprep.subr.mxu0 0.0
  %3492 = vmatpush1.msra.mxu0 %v413
  %3493 = vmatprep.subr.mxu0 0.0
  %3494 = vmatpush1.msra.mxu0 %v412
  %3495 = vmatprep.subr.mxu0 0.0
  %3496 = vmatpush1.msra.mxu0 %v411
  %3497 = vmatprep.subr.mxu0 0.0
  %3498 = vmatpush1.msra.mxu0 %v410
  %3499 = vmatprep.subr.mxu0 0.0
  %3500 = vmatpush1.msra.mxu0 %v409
  %3501 = vmatprep.subr.mxu0 0.0
  %3502 = vmatpush1.msra.mxu0 %v408
  %3503 = vmatprep.subr.mxu0 0.0
  %3504 = vmatpush1.msra.mxu0 %v407
  %3505 = vmatprep.subr.mxu0 0.0
  %3506 = vmatpush1.msra.mxu0 %v406
  %3507 = vmatprep.subr.mxu0 0.0
  %3508 = vmatpush1.msra.mxu0 %v405
  %3509 = vmatprep.subr.mxu0 0.0
  %3510 = vmatpush1.msra.mxu0 %v404
  %3511 = vmatprep.subr.mxu0 0.0
  %3512 = vmatpush1.msra.mxu0 %v403
  %3513 = vmatprep.subr.mxu0 0.0
  %3514 = vmatpush1.msra.mxu0 %v402
  %3515 = vmatprep.subr.mxu0 0.0
  %3516 = vmatpush1.msra.mxu0 %v401
  %3517 = vmatprep.subr.mxu0 0.0
  %3518 = vmatpush1.msra.mxu0 %v400
  %3519 = vmatprep.subr.mxu0 0.0
  %3520 = vmatpush1.msra.mxu0 %v399
  %3521 = vmatprep.subr.mxu0 0.0
  %3522 = vmatpush1.msra.mxu0 %v398
  %3523 = vmatprep.subr.mxu0 0.0
  %3524 = vmatpush2.msra.mxu0 0.0
  %3525 = vmatprep.subr.mxu0 0.0
  %3526 = vmatpush2.msra.mxu0 0.0
  %3527 = vmatprep.subr.mxu0 0.0
  %3528 = vmatpush2.msra.mxu0 0.0
  %3529 = vmatprep.subr.mxu0 0.0
  %3530 = vmatpush2.msra.mxu0 0.0
  %3531 = vmatprep.subr.mxu0 0.0
  %3532 = vmatpush2.msra.mxu0 0.0
  %3533 = vmatprep.subr.mxu0 0.0
  %3534 = vmatpush2.msra.mxu0 0.0
  %3535 = vmatprep.subr.mxu0 0.0
  %3536 = vmatpush2.msra.mxu0 0.0
  %3537 = vmatprep.subr.mxu0 0.0
  %3538 = vmatpush2.msra.mxu0 0.0
  %3539 = vmatprep.subr.mxu0 0.0
  %3540 = vmatpush2.msra.mxu0 0.0
  %3541 = vmatprep.subr.mxu0 0.0
  %3542 = vmatpush2.msra.mxu0 0.0
  %3543 = vmatprep.subr.mxu0 0.0
  %3544 = vmatpush2.msra.mxu0 0.0
  %3545 = vmatprep.subr.mxu0 0.0
  %3546 = vmatpush2.msra.mxu0 0.0
  %3547 = vmatprep.subr.mxu0 0.0
  %3548 = vmatpush2.msra.mxu0 0.0
  %3549 = vmatprep.subr.mxu0 0.0
  %3550 = vmatpush2.msra.mxu0 0.0
  %3551 = vmatprep.subr.mxu0 0.0
  %3552 = vmatpush2.msra.mxu0 0.0
  %3553 = vmatprep.subr.mxu0 0.0
  %3554 = vmatpush2.msra.mxu0 0.0
  %3555 = vmatprep.mubr.f32.mxu0 0.0
  %3556 = vmatmul.mubr.f32.gmra.mxu0 %v3417
  %v3557 = vpop.f32.mrf.mxu0
  %v3558 = vadd.f32 0.0, %v3557
  %v3559 = vpop.f32.mrf.mxu0
  %3560 = vdwg.mxu0
  %v3561 = vadd.f32 %v3490, %v3558
  %v3562 = vtanh.pop %v3561
  %3563 = vmatprep.subr.mxu0 0.0
  %3564 = vmatpush1.msra.mxu0 %v501
  %3565 = vmatprep.subr.mxu0 0.0
  %3566 = vmatpush1.msra.mxu0 %v500
  %3567 = vmatprep.subr.mxu0 0.0
  %3568 = vmatpush1.msra.mxu0 %v499
  %3569 = vmatprep.subr.mxu0 0.0
  %3570 = vmatpush1.msra.mxu0 %v498
  %3571 = vmatprep.subr.mxu0 0.0
  %3572 = vmatpush1.msra.mxu0 %v497
  %3573 = vmatprep.subr.mxu0 0.0
  %3574 = vmatpush1.msra.mxu0 %v496
  %3575 = vmatprep.subr.mxu0 0.0
  %3576 = vmatpush1.msra.mxu0 %v495
  %3577 = vmatprep.subr.mxu0 0.0
  %3578 = vmatpush1.msra.mxu0 %v494
  %3579 = vmatprep.subr.mxu0 0.0
  %3580 = vmatpush1.msra.mxu0 %v493
  %3581 = vmatprep.subr.mxu0 0.0
  %3582 = vmatpush1.msra.mxu0 %v492
  %3583 = vmatprep.subr.mxu0 0.0
  %3584 = vmatpush1.msra.mxu0 %v491
  %3585 = vmatprep.subr.mxu0 0.0
  %3586 = vmatpush1.msra.mxu0 %v490
  %3587 = vmatprep.subr.mxu0 0.0
  %3588 = vmatpush1.msra.mxu0 %v489
  %3589 = vmatprep.subr.mxu0 0.0
  %3590 = vmatpush1.msra.mxu0 %v488
  %3591 = vmatprep.subr.mxu0 0.0
  %3592 = vmatpush1.msra.mxu0 %v487
  %3593 = vmatprep.subr.mxu0 0.0
  %3594 = vmatpush1.msra.mxu0 %v486
  %3595 = vmatprep.subr.mxu0 0.0
  %3596 = vmatpush2.msra.mxu0 %v517
  %3597 = vmatprep.subr.mxu0 0.0
  %3598 = vmatpush2.msra.mxu0 %v516
  %3599 = vmatprep.subr.mxu0 0.0
  %3600 = vmatpush2.msra.mxu0 %v515
  %3601 = vmatprep.subr.mxu0 0.0
  %3602 = vmatpush2.msra.mxu0 %v514
  %3603 = vmatprep.subr.mxu0 0.0
  %3604 = vmatpush2.msra.mxu0 %v513
  %3605 = vmatprep.subr.mxu0 0.0
  %3606 = vmatpush2.msra.mxu0 %v512
  %3607 = vmatprep.subr.mxu0 0.0
  %3608 = vmatpush2.msra.mxu0 %v511
  %3609 = vmatprep.subr.mxu0 0.0
  %3610 = vmatpush2.msra.mxu0 %v510
  %3611 = vmatprep.subr.mxu0 0.0
  %3612 = vmatpush2.msra.mxu0 %v509
  %3613 = vmatprep.subr.mxu0 0.0
  %3614 = vmatpush2.msra.mxu0 %v508
  %3615 = vmatprep.subr.mxu0 0.0
  %3616 = vmatpush2.msra.mxu0 %v507
  %3617 = vmatprep.subr.mxu0 0.0
  %3618 = vmatpush2.msra.mxu0 %v506
  %3619 = vmatprep.subr.mxu0 0.0
  %3620 = vmatpush2.msra.mxu0 %v505
  %3621 = vmatprep.subr.mxu0 0.0
  %3622 = vmatpush2.msra.mxu0 %v504
  %3623 = vmatprep.subr.mxu0 0.0
  %3624 = vmatpush2.msra.mxu0 %v503
  %3625 = vmatprep.subr.mxu0 0.0
  %3626 = vmatpush2.msra.mxu0 %v502
  %3627 = vmatprep.mubr.f32.mxu0 %v3488
  %3628 = vmatmul.mubr.f32.gmra.mxu0 %v3562
  %v3629 = vpop.f32.mrf.mxu0
  %v3630 = vadd.f32 %v395, %v3629
  %v3631 = vpop.f32.mrf.mxu0
  %3632 = vdwg.mxu0
  %v3633 = vtanh.pop %v3630
  %s3634 = scalar_lea.vmem [#allocation2], 176
  %v3635 = vld [vmem:[%s3634] sm:$0xff]
  %3636 = vmatprep.subr.mxu0 0.0
  %3637 = vmatpush1.msra.mxu0 %v413
  %3638 = vmatprep.subr.mxu0 0.0
  %3639 = vmatpush1.msra.mxu0 %v412
  %3640 = vmatprep.subr.mxu0 0.0
  %3641 = vmatpush1.msra.mxu0 %v411
  %3642 = vmatprep.subr.mxu0 0.0
  %3643 = vmatpush1.msra.mxu0 %v410
  %3644 = vmatprep.subr.mxu0 0.0
  %3645 = vmatpush1.msra.mxu0 %v409
  %3646 = vmatprep.subr.mxu0 0.0
  %3647 = vmatpush1.msra.mxu0 %v408
  %3648 = vmatprep.subr.mxu0 0.0
  %3649 = vmatpush1.msra.mxu0 %v407
  %3650 = vmatprep.subr.mxu0 0.0
  %3651 = vmatpush1.msra.mxu0 %v406
  %3652 = vmatprep.subr.mxu0 0.0
  %3653 = vmatpush1.msra.mxu0 %v405
  %3654 = vmatprep.subr.mxu0 0.0
  %3655 = vmatpush1.msra.mxu0 %v404
  %3656 = vmatprep.subr.mxu0 0.0
  %3657 = vmatpush1.msra.mxu0 %v403
  %3658 = vmatprep.subr.mxu0 0.0
  %3659 = vmatpush1.msra.mxu0 %v402
  %3660 = vmatprep.subr.mxu0 0.0
  %3661 = vmatpush1.msra.mxu0 %v401
  %3662 = vmatprep.subr.mxu0 0.0
  %3663 = vmatpush1.msra.mxu0 %v400
  %3664 = vmatprep.subr.mxu0 0.0
  %3665 = vmatpush1.msra.mxu0 %v399
  %3666 = vmatprep.subr.mxu0 0.0
  %3667 = vmatpush1.msra.mxu0 %v398
  %3668 = vmatprep.subr.mxu0 0.0
  %3669 = vmatpush2.msra.mxu0 0.0
  %3670 = vmatprep.subr.mxu0 0.0
  %3671 = vmatpush2.msra.mxu0 0.0
  %3672 = vmatprep.subr.mxu0 0.0
  %3673 = vmatpush2.msra.mxu0 0.0
  %3674 = vmatprep.subr.mxu0 0.0
  %3675 = vmatpush2.msra.mxu0 0.0
  %3676 = vmatprep.subr.mxu0 0.0
  %3677 = vmatpush2.msra.mxu0 0.0
  %3678 = vmatprep.subr.mxu0 0.0
  %3679 = vmatpush2.msra.mxu0 0.0
  %3680 = vmatprep.subr.mxu0 0.0
  %3681 = vmatpush2.msra.mxu0 0.0
  %3682 = vmatprep.subr.mxu0 0.0
  %3683 = vmatpush2.msra.mxu0 0.0
  %3684 = vmatprep.subr.mxu0 0.0
  %3685 = vmatpush2.msra.mxu0 0.0
  %3686 = vmatprep.subr.mxu0 0.0
  %3687 = vmatpush2.msra.mxu0 0.0
  %3688 = vmatprep.subr.mxu0 0.0
  %3689 = vmatpush2.msra.mxu0 0.0
  %3690 = vmatprep.subr.mxu0 0.0
  %3691 = vmatpush2.msra.mxu0 0.0
  %3692 = vmatprep.subr.mxu0 0.0
  %3693 = vmatpush2.msra.mxu0 0.0
  %3694 = vmatprep.subr.mxu0 0.0
  %3695 = vmatpush2.msra.mxu0 0.0
  %3696 = vmatprep.subr.mxu0 0.0
  %3697 = vmatpush2.msra.mxu0 0.0
  %3698 = vmatprep.subr.mxu0 0.0
  %3699 = vmatpush2.msra.mxu0 0.0
  %3700 = vmatprep.mubr.f32.mxu0 0.0
  %3701 = vmatmul.mubr.f32.gmra.mxu0 %v3562
  %v3702 = vpop.f32.mrf.mxu0
  %v3703 = vadd.f32 0.0, %v3702
  %v3704 = vpop.f32.mrf.mxu0
  %3705 = vdwg.mxu0
  %v3706 = vadd.f32 %v3635, %v3703
  %v3707 = vtanh.pop %v3706
  %3708 = vmatprep.subr.mxu0 0.0
  %3709 = vmatpush1.msra.mxu0 %v501
  %3710 = vmatprep.subr.mxu0 0.0
  %3711 = vmatpush1.msra.mxu0 %v500
  %3712 = vmatprep.subr.mxu0 0.0
  %3713 = vmatpush1.msra.mxu0 %v499
  %3714 = vmatprep.subr.mxu0 0.0
  %3715 = vmatpush1.msra.mxu0 %v498
  %3716 = vmatprep.subr.mxu0 0.0
  %3717 = vmatpush1.msra.mxu0 %v497
  %3718 = vmatprep.subr.mxu0 0.0
  %3719 = vmatpush1.msra.mxu0 %v496
  %3720 = vmatprep.subr.mxu0 0.0
  %3721 = vmatpush1.msra.mxu0 %v495
  %3722 = vmatprep.subr.mxu0 0.0
  %3723 = vmatpush1.msra.mxu0 %v494
  %3724 = vmatprep.subr.mxu0 0.0
  %3725 = vmatpush1.msra.mxu0 %v493
  %3726 = vmatprep.subr.mxu0 0.0
  %3727 = vmatpush1.msra.mxu0 %v492
  %3728 = vmatprep.subr.mxu0 0.0
  %3729 = vmatpush1.msra.mxu0 %v491
  %3730 = vmatprep.subr.mxu0 0.0
  %3731 = vmatpush1.msra.mxu0 %v490
  %3732 = vmatprep.subr.mxu0 0.0
  %3733 = vmatpush1.msra.mxu0 %v489
  %3734 = vmatprep.subr.mxu0 0.0
  %3735 = vmatpush1.msra.mxu0 %v488
  %3736 = vmatprep.subr.mxu0 0.0
  %3737 = vmatpush1.msra.mxu0 %v487
  %3738 = vmatprep.subr.mxu0 0.0
  %3739 = vmatpush1.msra.mxu0 %v486
  %3740 = vmatprep.subr.mxu0 0.0
  %3741 = vmatpush2.msra.mxu0 %v517
  %3742 = vmatprep.subr.mxu0 0.0
  %3743 = vmatpush2.msra.mxu0 %v516
  %3744 = vmatprep.subr.mxu0 0.0
  %3745 = vmatpush2.msra.mxu0 %v515
  %3746 = vmatprep.subr.mxu0 0.0
  %3747 = vmatpush2.msra.mxu0 %v514
  %3748 = vmatprep.subr.mxu0 0.0
  %3749 = vmatpush2.msra.mxu0 %v513
  %3750 = vmatprep.subr.mxu0 0.0
  %3751 = vmatpush2.msra.mxu0 %v512
  %3752 = vmatprep.subr.mxu0 0.0
  %3753 = vmatpush2.msra.mxu0 %v511
  %3754 = vmatprep.subr.mxu0 0.0
  %3755 = vmatpush2.msra.mxu0 %v510
  %3756 = vmatprep.subr.mxu0 0.0
  %3757 = vmatpush2.msra.mxu0 %v509
  %3758 = vmatprep.subr.mxu0 0.0
  %3759 = vmatpush2.msra.mxu0 %v508
  %3760 = vmatprep.subr.mxu0 0.0
  %3761 = vmatpush2.msra.mxu0 %v507
  %3762 = vmatprep.subr.mxu0 0.0
  %3763 = vmatpush2.msra.mxu0 %v506
  %3764 = vmatprep.subr.mxu0 0.0
  %3765 = vmatpush2.msra.mxu0 %v505
  %3766 = vmatprep.subr.mxu0 0.0
  %3767 = vmatpush2.msra.mxu0 %v504
  %3768 = vmatprep.subr.mxu0 0.0
  %3769 = vmatpush2.msra.mxu0 %v503
  %3770 = vmatprep.subr.mxu0 0.0
  %3771 = vmatpush2.msra.mxu0 %v502
  %3772 = vmatprep.mubr.f32.mxu0 %v3633
  %3773 = vmatmul.mubr.f32.gmra.mxu0 %v3707
  %v3774 = vpop.f32.mrf.mxu0
  %v3775 = vadd.f32 %v395, %v3774
  %v3776 = vpop.f32.mrf.mxu0
  %3777 = vdwg.mxu0
  %v3778 = vtanh.pop %v3775
  %s3779 = scalar_lea.vmem [#allocation2], 184
  %v3780 = vld [vmem:[%s3779] sm:$0xff]
  %3781 = vmatprep.subr.mxu0 0.0
  %3782 = vmatpush1.msra.mxu0 %v413
  %3783 = vmatprep.subr.mxu0 0.0
  %3784 = vmatpush1.msra.mxu0 %v412
  %3785 = vmatprep.subr.mxu0 0.0
  %3786 = vmatpush1.msra.mxu0 %v411
  %3787 = vmatprep.subr.mxu0 0.0
  %3788 = vmatpush1.msra.mxu0 %v410
  %3789 = vmatprep.subr.mxu0 0.0
  %3790 = vmatpush1.msra.mxu0 %v409
  %3791 = vmatprep.subr.mxu0 0.0
  %3792 = vmatpush1.msra.mxu0 %v408
  %3793 = vmatprep.subr.mxu0 0.0
  %3794 = vmatpush1.msra.mxu0 %v407
  %3795 = vmatprep.subr.mxu0 0.0
  %3796 = vmatpush1.msra.mxu0 %v406
  %3797 = vmatprep.subr.mxu0 0.0
  %3798 = vmatpush1.msra.mxu0 %v405
  %3799 = vmatprep.subr.mxu0 0.0
  %3800 = vmatpush1.msra.mxu0 %v404
  %3801 = vmatprep.subr.mxu0 0.0
  %3802 = vmatpush1.msra.mxu0 %v403
  %3803 = vmatprep.subr.mxu0 0.0
  %3804 = vmatpush1.msra.mxu0 %v402
  %3805 = vmatprep.subr.mxu0 0.0
  %3806 = vmatpush1.msra.mxu0 %v401
  %3807 = vmatprep.subr.mxu0 0.0
  %3808 = vmatpush1.msra.mxu0 %v400
  %3809 = vmatprep.subr.mxu0 0.0
  %3810 = vmatpush1.msra.mxu0 %v399
  %3811 = vmatprep.subr.mxu0 0.0
  %3812 = vmatpush1.msra.mxu0 %v398
  %3813 = vmatprep.subr.mxu0 0.0
  %3814 = vmatpush2.msra.mxu0 0.0
  %3815 = vmatprep.subr.mxu0 0.0
  %3816 = vmatpush2.msra.mxu0 0.0
  %3817 = vmatprep.subr.mxu0 0.0
  %3818 = vmatpush2.msra.mxu0 0.0
  %3819 = vmatprep.subr.mxu0 0.0
  %3820 = vmatpush2.msra.mxu0 0.0
  %3821 = vmatprep.subr.mxu0 0.0
  %3822 = vmatpush2.msra.mxu0 0.0
  %3823 = vmatprep.subr.mxu0 0.0
  %3824 = vmatpush2.msra.mxu0 0.0
  %3825 = vmatprep.subr.mxu0 0.0
  %3826 = vmatpush2.msra.mxu0 0.0
  %3827 = vmatprep.subr.mxu0 0.0
  %3828 = vmatpush2.msra.mxu0 0.0
  %3829 = vmatprep.subr.mxu0 0.0
  %3830 = vmatpush2.msra.mxu0 0.0
  %3831 = vmatprep.subr.mxu0 0.0
  %3832 = vmatpush2.msra.mxu0 0.0
  %3833 = vmatprep.subr.mxu0 0.0
  %3834 = vmatpush2.msra.mxu0 0.0
  %3835 = vmatprep.subr.mxu0 0.0
  %3836 = vmatpush2.msra.mxu0 0.0
  %3837 = vmatprep.subr.mxu0 0.0
  %3838 = vmatpush2.msra.mxu0 0.0
  %3839 = vmatprep.subr.mxu0 0.0
  %3840 = vmatpush2.msra.mxu0 0.0
  %3841 = vmatprep.subr.mxu0 0.0
  %3842 = vmatpush2.msra.mxu0 0.0
  %3843 = vmatprep.subr.mxu0 0.0
  %3844 = vmatpush2.msra.mxu0 0.0
  %3845 = vmatprep.mubr.f32.mxu0 0.0
  %3846 = vmatmul.mubr.f32.gmra.mxu0 %v3707
  %v3847 = vpop.f32.mrf.mxu0
  %v3848 = vadd.f32 0.0, %v3847
  %v3849 = vpop.f32.mrf.mxu0
  %3850 = vdwg.mxu0
  %v3851 = vadd.f32 %v3780, %v3848
  %v3852 = vtanh.pop %v3851
  %3853 = vmatprep.subr.mxu0 0.0
  %3854 = vmatpush1.msra.mxu0 %v501
  %3855 = vmatprep.subr.mxu0 0.0
  %3856 = vmatpush1.msra.mxu0 %v500
  %3857 = vmatprep.subr.mxu0 0.0
  %3858 = vmatpush1.msra.mxu0 %v499
  %3859 = vmatprep.subr.mxu0 0.0
  %3860 = vmatpush1.msra.mxu0 %v498
  %3861 = vmatprep.subr.mxu0 0.0
  %3862 = vmatpush1.msra.mxu0 %v497
  %3863 = vmatprep.subr.mxu0 0.0
  %3864 = vmatpush1.msra.mxu0 %v496
  %3865 = vmatprep.subr.mxu0 0.0
  %3866 = vmatpush1.msra.mxu0 %v495
  %3867 = vmatprep.subr.mxu0 0.0
  %3868 = vmatpush1.msra.mxu0 %v494
  %3869 = vmatprep.subr.mxu0 0.0
  %3870 = vmatpush1.msra.mxu0 %v493
  %3871 = vmatprep.subr.mxu0 0.0
  %3872 = vmatpush1.msra.mxu0 %v492
  %3873 = vmatprep.subr.mxu0 0.0
  %3874 = vmatpush1.msra.mxu0 %v491
  %3875 = vmatprep.subr.mxu0 0.0
  %3876 = vmatpush1.msra.mxu0 %v490
  %3877 = vmatprep.subr.mxu0 0.0
  %3878 = vmatpush1.msra.mxu0 %v489
  %3879 = vmatprep.subr.mxu0 0.0
  %3880 = vmatpush1.msra.mxu0 %v488
  %3881 = vmatprep.subr.mxu0 0.0
  %3882 = vmatpush1.msra.mxu0 %v487
  %3883 = vmatprep.subr.mxu0 0.0
  %3884 = vmatpush1.msra.mxu0 %v486
  %3885 = vmatprep.subr.mxu0 0.0
  %3886 = vmatpush2.msra.mxu0 %v517
  %3887 = vmatprep.subr.mxu0 0.0
  %3888 = vmatpush2.msra.mxu0 %v516
  %3889 = vmatprep.subr.mxu0 0.0
  %3890 = vmatpush2.msra.mxu0 %v515
  %3891 = vmatprep.subr.mxu0 0.0
  %3892 = vmatpush2.msra.mxu0 %v514
  %3893 = vmatprep.subr.mxu0 0.0
  %3894 = vmatpush2.msra.mxu0 %v513
  %3895 = vmatprep.subr.mxu0 0.0
  %3896 = vmatpush2.msra.mxu0 %v512
  %3897 = vmatprep.subr.mxu0 0.0
  %3898 = vmatpush2.msra.mxu0 %v511
  %3899 = vmatprep.subr.mxu0 0.0
  %3900 = vmatpush2.msra.mxu0 %v510
  %3901 = vmatprep.subr.mxu0 0.0
  %3902 = vmatpush2.msra.mxu0 %v509
  %3903 = vmatprep.subr.mxu0 0.0
  %3904 = vmatpush2.msra.mxu0 %v508
  %3905 = vmatprep.subr.mxu0 0.0
  %3906 = vmatpush2.msra.mxu0 %v507
  %3907 = vmatprep.subr.mxu0 0.0
  %3908 = vmatpush2.msra.mxu0 %v506
  %3909 = vmatprep.subr.mxu0 0.0
  %3910 = vmatpush2.msra.mxu0 %v505
  %3911 = vmatprep.subr.mxu0 0.0
  %3912 = vmatpush2.msra.mxu0 %v504
  %3913 = vmatprep.subr.mxu0 0.0
  %3914 = vmatpush2.msra.mxu0 %v503
  %3915 = vmatprep.subr.mxu0 0.0
  %3916 = vmatpush2.msra.mxu0 %v502
  %3917 = vmatprep.mubr.f32.mxu0 %v3778
  %3918 = vmatmul.mubr.f32.gmra.mxu0 %v3852
  %v3919 = vpop.f32.mrf.mxu0
  %v3920 = vadd.f32 %v395, %v3919
  %v3921 = vpop.f32.mrf.mxu0
  %3922 = vdwg.mxu0
  %v3923 = vtanh.pop %v3920
  %s3924 = scalar_lea.vmem [#allocation2], 192
  %v3925 = vld [vmem:[%s3924] sm:$0xff]
  %3926 = vmatprep.subr.mxu0 0.0
  %3927 = vmatpush1.msra.mxu0 %v413
  %3928 = vmatprep.subr.mxu0 0.0
  %3929 = vmatpush1.msra.mxu0 %v412
  %3930 = vmatprep.subr.mxu0 0.0
  %3931 = vmatpush1.msra.mxu0 %v411
  %3932 = vmatprep.subr.mxu0 0.0
  %3933 = vmatpush1.msra.mxu0 %v410
  %3934 = vmatprep.subr.mxu0 0.0
  %3935 = vmatpush1.msra.mxu0 %v409
  %3936 = vmatprep.subr.mxu0 0.0
  %3937 = vmatpush1.msra.mxu0 %v408
  %3938 = vmatprep.subr.mxu0 0.0
  %3939 = vmatpush1.msra.mxu0 %v407
  %3940 = vmatprep.subr.mxu0 0.0
  %3941 = vmatpush1.msra.mxu0 %v406
  %3942 = vmatprep.subr.mxu0 0.0
  %3943 = vmatpush1.msra.mxu0 %v405
  %3944 = vmatprep.subr.mxu0 0.0
  %3945 = vmatpush1.msra.mxu0 %v404
  %3946 = vmatprep.subr.mxu0 0.0
  %3947 = vmatpush1.msra.mxu0 %v403
  %3948 = vmatprep.subr.mxu0 0.0
  %3949 = vmatpush1.msra.mxu0 %v402
  %3950 = vmatprep.subr.mxu0 0.0
  %3951 = vmatpush1.msra.mxu0 %v401
  %3952 = vmatprep.subr.mxu0 0.0
  %3953 = vmatpush1.msra.mxu0 %v400
  %3954 = vmatprep.subr.mxu0 0.0
  %3955 = vmatpush1.msra.mxu0 %v399
  %3956 = vmatprep.subr.mxu0 0.0
  %3957 = vmatpush1.msra.mxu0 %v398
  %3958 = vmatprep.subr.mxu0 0.0
  %3959 = vmatpush2.msra.mxu0 0.0
  %3960 = vmatprep.subr.mxu0 0.0
  %3961 = vmatpush2.msra.mxu0 0.0
  %3962 = vmatprep.subr.mxu0 0.0
  %3963 = vmatpush2.msra.mxu0 0.0
  %3964 = vmatprep.subr.mxu0 0.0
  %3965 = vmatpush2.msra.mxu0 0.0
  %3966 = vmatprep.subr.mxu0 0.0
  %3967 = vmatpush2.msra.mxu0 0.0
  %3968 = vmatprep.subr.mxu0 0.0
  %3969 = vmatpush2.msra.mxu0 0.0
  %3970 = vmatprep.subr.mxu0 0.0
  %3971 = vmatpush2.msra.mxu0 0.0
  %3972 = vmatprep.subr.mxu0 0.0
  %3973 = vmatpush2.msra.mxu0 0.0
  %3974 = vmatprep.subr.mxu0 0.0
  %3975 = vmatpush2.msra.mxu0 0.0
  %3976 = vmatprep.subr.mxu0 0.0
  %3977 = vmatpush2.msra.mxu0 0.0
  %3978 = vmatprep.subr.mxu0 0.0
  %3979 = vmatpush2.msra.mxu0 0.0
  %3980 = vmatprep.subr.mxu0 0.0
  %3981 = vmatpush2.msra.mxu0 0.0
  %3982 = vmatprep.subr.mxu0 0.0
  %3983 = vmatpush2.msra.mxu0 0.0
  %3984 = vmatprep.subr.mxu0 0.0
  %3985 = vmatpush2.msra.mxu0 0.0
  %3986 = vmatprep.subr.mxu0 0.0
  %3987 = vmatpush2.msra.mxu0 0.0
  %3988 = vmatprep.subr.mxu0 0.0
  %3989 = vmatpush2.msra.mxu0 0.0
  %3990 = vmatprep.mubr.f32.mxu0 0.0
  %3991 = vmatmul.mubr.f32.gmra.mxu0 %v3852
  %v3992 = vpop.f32.mrf.mxu0
  %v3993 = vadd.f32 0.0, %v3992
  %v3994 = vpop.f32.mrf.mxu0
  %3995 = vdwg.mxu0
  %v3996 = vadd.f32 %v3925, %v3993
  %v3997 = vtanh.pop %v3996
  %3998 = vmatprep.subr.mxu0 0.0
  %3999 = vmatpush1.msra.mxu0 %v501
  %4000 = vmatprep.subr.mxu0 0.0
  %4001 = vmatpush1.msra.mxu0 %v500
  %4002 = vmatprep.subr.mxu0 0.0
  %4003 = vmatpush1.msra.mxu0 %v499
  %4004 = vmatprep.subr.mxu0 0.0
  %4005 = vmatpush1.msra.mxu0 %v498
  %4006 = vmatprep.subr.mxu0 0.0
  %4007 = vmatpush1.msra.mxu0 %v497
  %4008 = vmatprep.subr.mxu0 0.0
  %4009 = vmatpush1.msra.mxu0 %v496
  %4010 = vmatprep.subr.mxu0 0.0
  %4011 = vmatpush1.msra.mxu0 %v495
  %4012 = vmatprep.subr.mxu0 0.0
  %4013 = vmatpush1.msra.mxu0 %v494
  %4014 = vmatprep.subr.mxu0 0.0
  %4015 = vmatpush1.msra.mxu0 %v493
  %4016 = vmatprep.subr.mxu0 0.0
  %4017 = vmatpush1.msra.mxu0 %v492
  %4018 = vmatprep.subr.mxu0 0.0
  %4019 = vmatpush1.msra.mxu0 %v491
  %4020 = vmatprep.subr.mxu0 0.0
  %4021 = vmatpush1.msra.mxu0 %v490
  %4022 = vmatprep.subr.mxu0 0.0
  %4023 = vmatpush1.msra.mxu0 %v489
  %4024 = vmatprep.subr.mxu0 0.0
  %4025 = vmatpush1.msra.mxu0 %v488
  %4026 = vmatprep.subr.mxu0 0.0
  %4027 = vmatpush1.msra.mxu0 %v487
  %4028 = vmatprep.subr.mxu0 0.0
  %4029 = vmatpush1.msra.mxu0 %v486
  %4030 = vmatprep.subr.mxu0 0.0
  %4031 = vmatpush2.msra.mxu0 %v517
  %4032 = vmatprep.subr.mxu0 0.0
  %4033 = vmatpush2.msra.mxu0 %v516
  %4034 = vmatprep.subr.mxu0 0.0
  %4035 = vmatpush2.msra.mxu0 %v515
  %4036 = vmatprep.subr.mxu0 0.0
  %4037 = vmatpush2.msra.mxu0 %v514
  %4038 = vmatprep.subr.mxu0 0.0
  %4039 = vmatpush2.msra.mxu0 %v513
  %4040 = vmatprep.subr.mxu0 0.0
  %4041 = vmatpush2.msra.mxu0 %v512
  %4042 = vmatprep.subr.mxu0 0.0
  %4043 = vmatpush2.msra.mxu0 %v511
  %4044 = vmatprep.subr.mxu0 0.0
  %4045 = vmatpush2.msra.mxu0 %v510
  %4046 = vmatprep.subr.mxu0 0.0
  %4047 = vmatpush2.msra.mxu0 %v509
  %4048 = vmatprep.subr.mxu0 0.0
  %4049 = vmatpush2.msra.mxu0 %v508
  %4050 = vmatprep.subr.mxu0 0.0
  %4051 = vmatpush2.msra.mxu0 %v507
  %4052 = vmatprep.subr.mxu0 0.0
  %4053 = vmatpush2.msra.mxu0 %v506
  %4054 = vmatprep.subr.mxu0 0.0
  %4055 = vmatpush2.msra.mxu0 %v505
  %4056 = vmatprep.subr.mxu0 0.0
  %4057 = vmatpush2.msra.mxu0 %v504
  %4058 = vmatprep.subr.mxu0 0.0
  %4059 = vmatpush2.msra.mxu0 %v503
  %4060 = vmatprep.subr.mxu0 0.0
  %4061 = vmatpush2.msra.mxu0 %v502
  %4062 = vmatprep.mubr.f32.mxu0 %v3923
  %4063 = vmatmul.mubr.f32.gmra.mxu0 %v3997
  %v4064 = vpop.f32.mrf.mxu0
  %v4065 = vadd.f32 %v395, %v4064
  %v4066 = vpop.f32.mrf.mxu0
  %4067 = vdwg.mxu0
  %v4068 = vtanh.pop %v4065
  %s4069 = scalar_lea.vmem [#allocation2], 200
  %v4070 = vld [vmem:[%s4069] sm:$0xff]
  %4071 = vmatprep.subr.mxu0 0.0
  %4072 = vmatpush1.msra.mxu0 %v413
  %4073 = vmatprep.subr.mxu0 0.0
  %4074 = vmatpush1.msra.mxu0 %v412
  %4075 = vmatprep.subr.mxu0 0.0
  %4076 = vmatpush1.msra.mxu0 %v411
  %4077 = vmatprep.subr.mxu0 0.0
  %4078 = vmatpush1.msra.mxu0 %v410
  %4079 = vmatprep.subr.mxu0 0.0
  %4080 = vmatpush1.msra.mxu0 %v409
  %4081 = vmatprep.subr.mxu0 0.0
  %4082 = vmatpush1.msra.mxu0 %v408
  %4083 = vmatprep.subr.mxu0 0.0
  %4084 = vmatpush1.msra.mxu0 %v407
  %4085 = vmatprep.subr.mxu0 0.0
  %4086 = vmatpush1.msra.mxu0 %v406
  %4087 = vmatprep.subr.mxu0 0.0
  %4088 = vmatpush1.msra.mxu0 %v405
  %4089 = vmatprep.subr.mxu0 0.0
  %4090 = vmatpush1.msra.mxu0 %v404
  %4091 = vmatprep.subr.mxu0 0.0
  %4092 = vmatpush1.msra.mxu0 %v403
  %4093 = vmatprep.subr.mxu0 0.0
  %4094 = vmatpush1.msra.mxu0 %v402
  %4095 = vmatprep.subr.mxu0 0.0
  %4096 = vmatpush1.msra.mxu0 %v401
  %4097 = vmatprep.subr.mxu0 0.0
  %4098 = vmatpush1.msra.mxu0 %v400
  %4099 = vmatprep.subr.mxu0 0.0
  %4100 = vmatpush1.msra.mxu0 %v399
  %4101 = vmatprep.subr.mxu0 0.0
  %4102 = vmatpush1.msra.mxu0 %v398
  %4103 = vmatprep.subr.mxu0 0.0
  %4104 = vmatpush2.msra.mxu0 0.0
  %4105 = vmatprep.subr.mxu0 0.0
  %4106 = vmatpush2.msra.mxu0 0.0
  %4107 = vmatprep.subr.mxu0 0.0
  %4108 = vmatpush2.msra.mxu0 0.0
  %4109 = vmatprep.subr.mxu0 0.0
  %4110 = vmatpush2.msra.mxu0 0.0
  %4111 = vmatprep.subr.mxu0 0.0
  %4112 = vmatpush2.msra.mxu0 0.0
  %4113 = vmatprep.subr.mxu0 0.0
  %4114 = vmatpush2.msra.mxu0 0.0
  %4115 = vmatprep.subr.mxu0 0.0
  %4116 = vmatpush2.msra.mxu0 0.0
  %4117 = vmatprep.subr.mxu0 0.0
  %4118 = vmatpush2.msra.mxu0 0.0
  %4119 = vmatprep.subr.mxu0 0.0
  %4120 = vmatpush2.msra.mxu0 0.0
  %4121 = vmatprep.subr.mxu0 0.0
  %4122 = vmatpush2.msra.mxu0 0.0
  %4123 = vmatprep.subr.mxu0 0.0
  %4124 = vmatpush2.msra.mxu0 0.0
  %4125 = vmatprep.subr.mxu0 0.0
  %4126 = vmatpush2.msra.mxu0 0.0
  %4127 = vmatprep.subr.mxu0 0.0
  %4128 = vmatpush2.msra.mxu0 0.0
  %4129 = vmatprep.subr.mxu0 0.0
  %4130 = vmatpush2.msra.mxu0 0.0
  %4131 = vmatprep.subr.mxu0 0.0
  %4132 = vmatpush2.msra.mxu0 0.0
  %4133 = vmatprep.subr.mxu0 0.0
  %4134 = vmatpush2.msra.mxu0 0.0
  %4135 = vmatprep.mubr.f32.mxu0 0.0
  %4136 = vmatmul.mubr.f32.gmra.mxu0 %v3997
  %v4137 = vpop.f32.mrf.mxu0
  %v4138 = vadd.f32 0.0, %v4137
  %v4139 = vpop.f32.mrf.mxu0
  %4140 = vdwg.mxu0
  %v4141 = vadd.f32 %v4070, %v4138
  %v4142 = vtanh.pop %v4141
  %4143 = vmatprep.subr.mxu0 0.0
  %4144 = vmatpush1.msra.mxu0 %v501
  %4145 = vmatprep.subr.mxu0 0.0
  %4146 = vmatpush1.msra.mxu0 %v500
  %4147 = vmatprep.subr.mxu0 0.0
  %4148 = vmatpush1.msra.mxu0 %v499
  %4149 = vmatprep.subr.mxu0 0.0
  %4150 = vmatpush1.msra.mxu0 %v498
  %4151 = vmatprep.subr.mxu0 0.0
  %4152 = vmatpush1.msra.mxu0 %v497
  %4153 = vmatprep.subr.mxu0 0.0
  %4154 = vmatpush1.msra.mxu0 %v496
  %4155 = vmatprep.subr.mxu0 0.0
  %4156 = vmatpush1.msra.mxu0 %v495
  %4157 = vmatprep.subr.mxu0 0.0
  %4158 = vmatpush1.msra.mxu0 %v494
  %4159 = vmatprep.subr.mxu0 0.0
  %4160 = vmatpush1.msra.mxu0 %v493
  %4161 = vmatprep.subr.mxu0 0.0
  %4162 = vmatpush1.msra.mxu0 %v492
  %4163 = vmatprep.subr.mxu0 0.0
  %4164 = vmatpush1.msra.mxu0 %v491
  %4165 = vmatprep.subr.mxu0 0.0
  %4166 = vmatpush1.msra.mxu0 %v490
  %4167 = vmatprep.subr.mxu0 0.0
  %4168 = vmatpush1.msra.mxu0 %v489
  %4169 = vmatprep.subr.mxu0 0.0
  %4170 = vmatpush1.msra.mxu0 %v488
  %4171 = vmatprep.subr.mxu0 0.0
  %4172 = vmatpush1.msra.mxu0 %v487
  %4173 = vmatprep.subr.mxu0 0.0
  %4174 = vmatpush1.msra.mxu0 %v486
  %4175 = vmatprep.subr.mxu0 0.0
  %4176 = vmatpush2.msra.mxu0 %v517
  %4177 = vmatprep.subr.mxu0 0.0
  %4178 = vmatpush2.msra.mxu0 %v516
  %4179 = vmatprep.subr.mxu0 0.0
  %4180 = vmatpush2.msra.mxu0 %v515
  %4181 = vmatprep.subr.mxu0 0.0
  %4182 = vmatpush2.msra.mxu0 %v514
  %4183 = vmatprep.subr.mxu0 0.0
  %4184 = vmatpush2.msra.mxu0 %v513
  %4185 = vmatprep.subr.mxu0 0.0
  %4186 = vmatpush2.msra.mxu0 %v512
  %4187 = vmatprep.subr.mxu0 0.0
  %4188 = vmatpush2.msra.mxu0 %v511
  %4189 = vmatprep.subr.mxu0 0.0
  %4190 = vmatpush2.msra.mxu0 %v510
  %4191 = vmatprep.subr.mxu0 0.0
  %4192 = vmatpush2.msra.mxu0 %v509
  %4193 = vmatprep.subr.mxu0 0.0
  %4194 = vmatpush2.msra.mxu0 %v508
  %4195 = vmatprep.subr.mxu0 0.0
  %4196 = vmatpush2.msra.mxu0 %v507
  %4197 = vmatprep.subr.mxu0 0.0
  %4198 = vmatpush2.msra.mxu0 %v506
  %4199 = vmatprep.subr.mxu0 0.0
  %4200 = vmatpush2.msra.mxu0 %v505
  %4201 = vmatprep.subr.mxu0 0.0
  %4202 = vmatpush2.msra.mxu0 %v504
  %4203 = vmatprep.subr.mxu0 0.0
  %4204 = vmatpush2.msra.mxu0 %v503
  %4205 = vmatprep.subr.mxu0 0.0
  %4206 = vmatpush2.msra.mxu0 %v502
  %4207 = vmatprep.mubr.f32.mxu0 %v4068
  %4208 = vmatmul.mubr.f32.gmra.mxu0 %v4142
  %v4209 = vpop.f32.mrf.mxu0
  %v4210 = vadd.f32 %v395, %v4209
  %v4211 = vpop.f32.mrf.mxu0
  %4212 = vdwg.mxu0
  %v4213 = vtanh.pop %v4210
  %s4214 = scalar_lea.vmem [#allocation2], 208
  %v4215 = vld [vmem:[%s4214] sm:$0xff]
  %4216 = vmatprep.subr.mxu0 0.0
  %4217 = vmatpush1.msra.mxu0 %v413
  %4218 = vmatprep.subr.mxu0 0.0
  %4219 = vmatpush1.msra.mxu0 %v412
  %4220 = vmatprep.subr.mxu0 0.0
  %4221 = vmatpush1.msra.mxu0 %v411
  %4222 = vmatprep.subr.mxu0 0.0
  %4223 = vmatpush1.msra.mxu0 %v410
  %4224 = vmatprep.subr.mxu0 0.0
  %4225 = vmatpush1.msra.mxu0 %v409
  %4226 = vmatprep.subr.mxu0 0.0
  %4227 = vmatpush1.msra.mxu0 %v408
  %4228 = vmatprep.subr.mxu0 0.0
  %4229 = vmatpush1.msra.mxu0 %v407
  %4230 = vmatprep.subr.mxu0 0.0
  %4231 = vmatpush1.msra.mxu0 %v406
  %4232 = vmatprep.subr.mxu0 0.0
  %4233 = vmatpush1.msra.mxu0 %v405
  %4234 = vmatprep.subr.mxu0 0.0
  %4235 = vmatpush1.msra.mxu0 %v404
  %4236 = vmatprep.subr.mxu0 0.0
  %4237 = vmatpush1.msra.mxu0 %v403
  %4238 = vmatprep.subr.mxu0 0.0
  %4239 = vmatpush1.msra.mxu0 %v402
  %4240 = vmatprep.subr.mxu0 0.0
  %4241 = vmatpush1.msra.mxu0 %v401
  %4242 = vmatprep.subr.mxu0 0.0
  %4243 = vmatpush1.msra.mxu0 %v400
  %4244 = vmatprep.subr.mxu0 0.0
  %4245 = vmatpush1.msra.mxu0 %v399
  %4246 = vmatprep.subr.mxu0 0.0
  %4247 = vmatpush1.msra.mxu0 %v398
  %4248 = vmatprep.subr.mxu0 0.0
  %4249 = vmatpush2.msra.mxu0 0.0
  %4250 = vmatprep.subr.mxu0 0.0
  %4251 = vmatpush2.msra.mxu0 0.0
  %4252 = vmatprep.subr.mxu0 0.0
  %4253 = vmatpush2.msra.mxu0 0.0
  %4254 = vmatprep.subr.mxu0 0.0
  %4255 = vmatpush2.msra.mxu0 0.0
  %4256 = vmatprep.subr.mxu0 0.0
  %4257 = vmatpush2.msra.mxu0 0.0
  %4258 = vmatprep.subr.mxu0 0.0
  %4259 = vmatpush2.msra.mxu0 0.0
  %4260 = vmatprep.subr.mxu0 0.0
  %4261 = vmatpush2.msra.mxu0 0.0
  %4262 = vmatprep.subr.mxu0 0.0
  %4263 = vmatpush2.msra.mxu0 0.0
  %4264 = vmatprep.subr.mxu0 0.0
  %4265 = vmatpush2.msra.mxu0 0.0
  %4266 = vmatprep.subr.mxu0 0.0
  %4267 = vmatpush2.msra.mxu0 0.0
  %4268 = vmatprep.subr.mxu0 0.0
  %4269 = vmatpush2.msra.mxu0 0.0
  %4270 = vmatprep.subr.mxu0 0.0
  %4271 = vmatpush2.msra.mxu0 0.0
  %4272 = vmatprep.subr.mxu0 0.0
  %4273 = vmatpush2.msra.mxu0 0.0
  %4274 = vmatprep.subr.mxu0 0.0
  %4275 = vmatpush2.msra.mxu0 0.0
  %4276 = vmatprep.subr.mxu0 0.0
  %4277 = vmatpush2.msra.mxu0 0.0
  %4278 = vmatprep.subr.mxu0 0.0
  %4279 = vmatpush2.msra.mxu0 0.0
  %4280 = vmatprep.mubr.f32.mxu0 0.0
  %4281 = vmatmul.mubr.f32.gmra.mxu0 %v4142
  %v4282 = vpop.f32.mrf.mxu0
  %v4283 = vadd.f32 0.0, %v4282
  %v4284 = vpop.f32.mrf.mxu0
  %4285 = vdwg.mxu0
  %v4286 = vadd.f32 %v4215, %v4283
  %v4287 = vtanh.pop %v4286
  %4288 = vmatprep.subr.mxu0 0.0
  %4289 = vmatpush1.msra.mxu0 %v501
  %4290 = vmatprep.subr.mxu0 0.0
  %4291 = vmatpush1.msra.mxu0 %v500
  %4292 = vmatprep.subr.mxu0 0.0
  %4293 = vmatpush1.msra.mxu0 %v499
  %4294 = vmatprep.subr.mxu0 0.0
  %4295 = vmatpush1.msra.mxu0 %v498
  %4296 = vmatprep.subr.mxu0 0.0
  %4297 = vmatpush1.msra.mxu0 %v497
  %4298 = vmatprep.subr.mxu0 0.0
  %4299 = vmatpush1.msra.mxu0 %v496
  %4300 = vmatprep.subr.mxu0 0.0
  %4301 = vmatpush1.msra.mxu0 %v495
  %4302 = vmatprep.subr.mxu0 0.0
  %4303 = vmatpush1.msra.mxu0 %v494
  %4304 = vmatprep.subr.mxu0 0.0
  %4305 = vmatpush1.msra.mxu0 %v493
  %4306 = vmatprep.subr.mxu0 0.0
  %4307 = vmatpush1.msra.mxu0 %v492
  %4308 = vmatprep.subr.mxu0 0.0
  %4309 = vmatpush1.msra.mxu0 %v491
  %4310 = vmatprep.subr.mxu0 0.0
  %4311 = vmatpush1.msra.mxu0 %v490
  %4312 = vmatprep.subr.mxu0 0.0
  %4313 = vmatpush1.msra.mxu0 %v489
  %4314 = vmatprep.subr.mxu0 0.0
  %4315 = vmatpush1.msra.mxu0 %v488
  %4316 = vmatprep.subr.mxu0 0.0
  %4317 = vmatpush1.msra.mxu0 %v487
  %4318 = vmatprep.subr.mxu0 0.0
  %4319 = vmatpush1.msra.mxu0 %v486
  %4320 = vmatprep.subr.mxu0 0.0
  %4321 = vmatpush2.msra.mxu0 %v517
  %4322 = vmatprep.subr.mxu0 0.0
  %4323 = vmatpush2.msra.mxu0 %v516
  %4324 = vmatprep.subr.mxu0 0.0
  %4325 = vmatpush2.msra.mxu0 %v515
  %4326 = vmatprep.subr.mxu0 0.0
  %4327 = vmatpush2.msra.mxu0 %v514
  %4328 = vmatprep.subr.mxu0 0.0
  %4329 = vmatpush2.msra.mxu0 %v513
  %4330 = vmatprep.subr.mxu0 0.0
  %4331 = vmatpush2.msra.mxu0 %v512
  %4332 = vmatprep.subr.mxu0 0.0
  %4333 = vmatpush2.msra.mxu0 %v511
  %4334 = vmatprep.subr.mxu0 0.0
  %4335 = vmatpush2.msra.mxu0 %v510
  %4336 = vmatprep.subr.mxu0 0.0
  %4337 = vmatpush2.msra.mxu0 %v509
  %4338 = vmatprep.subr.mxu0 0.0
  %4339 = vmatpush2.msra.mxu0 %v508
  %4340 = vmatprep.subr.mxu0 0.0
  %4341 = vmatpush2.msra.mxu0 %v507
  %4342 = vmatprep.subr.mxu0 0.0
  %4343 = vmatpush2.msra.mxu0 %v506
  %4344 = vmatprep.subr.mxu0 0.0
  %4345 = vmatpush2.msra.mxu0 %v505
  %4346 = vmatprep.subr.mxu0 0.0
  %4347 = vmatpush2.msra.mxu0 %v504
  %4348 = vmatprep.subr.mxu0 0.0
  %4349 = vmatpush2.msra.mxu0 %v503
  %4350 = vmatprep.subr.mxu0 0.0
  %4351 = vmatpush2.msra.mxu0 %v502
  %4352 = vmatprep.mubr.f32.mxu0 %v4213
  %4353 = vmatmul.mubr.f32.gmra.mxu0 %v4287
  %v4354 = vpop.f32.mrf.mxu0
  %v4355 = vadd.f32 %v395, %v4354
  %v4356 = vpop.f32.mrf.mxu0
  %4357 = vdwg.mxu0
  %v4358 = vtanh.pop %v4355
  %s4359 = scalar_lea.vmem [#allocation2], 216
  %v4360 = vld [vmem:[%s4359] sm:$0xff]
  %4361 = vmatprep.subr.mxu0 0.0
  %4362 = vmatpush1.msra.mxu0 %v413
  %4363 = vmatprep.subr.mxu0 0.0
  %4364 = vmatpush1.msra.mxu0 %v412
  %4365 = vmatprep.subr.mxu0 0.0
  %4366 = vmatpush1.msra.mxu0 %v411
  %4367 = vmatprep.subr.mxu0 0.0
  %4368 = vmatpush1.msra.mxu0 %v410
  %4369 = vmatprep.subr.mxu0 0.0
  %4370 = vmatpush1.msra.mxu0 %v409
  %4371 = vmatprep.subr.mxu0 0.0
  %4372 = vmatpush1.msra.mxu0 %v408
  %4373 = vmatprep.subr.mxu0 0.0
  %4374 = vmatpush1.msra.mxu0 %v407
  %4375 = vmatprep.subr.mxu0 0.0
  %4376 = vmatpush1.msra.mxu0 %v406
  %4377 = vmatprep.subr.mxu0 0.0
  %4378 = vmatpush1.msra.mxu0 %v405
  %4379 = vmatprep.subr.mxu0 0.0
  %4380 = vmatpush1.msra.mxu0 %v404
  %4381 = vmatprep.subr.mxu0 0.0
  %4382 = vmatpush1.msra.mxu0 %v403
  %4383 = vmatprep.subr.mxu0 0.0
  %4384 = vmatpush1.msra.mxu0 %v402
  %4385 = vmatprep.subr.mxu0 0.0
  %4386 = vmatpush1.msra.mxu0 %v401
  %4387 = vmatprep.subr.mxu0 0.0
  %4388 = vmatpush1.msra.mxu0 %v400
  %4389 = vmatprep.subr.mxu0 0.0
  %4390 = vmatpush1.msra.mxu0 %v399
  %4391 = vmatprep.subr.mxu0 0.0
  %4392 = vmatpush1.msra.mxu0 %v398
  %4393 = vmatprep.subr.mxu0 0.0
  %4394 = vmatpush2.msra.mxu0 0.0
  %4395 = vmatprep.subr.mxu0 0.0
  %4396 = vmatpush2.msra.mxu0 0.0
  %4397 = vmatprep.subr.mxu0 0.0
  %4398 = vmatpush2.msra.mxu0 0.0
  %4399 = vmatprep.subr.mxu0 0.0
  %4400 = vmatpush2.msra.mxu0 0.0
  %4401 = vmatprep.subr.mxu0 0.0
  %4402 = vmatpush2.msra.mxu0 0.0
  %4403 = vmatprep.subr.mxu0 0.0
  %4404 = vmatpush2.msra.mxu0 0.0
  %4405 = vmatprep.subr.mxu0 0.0
  %4406 = vmatpush2.msra.mxu0 0.0
  %4407 = vmatprep.subr.mxu0 0.0
  %4408 = vmatpush2.msra.mxu0 0.0
  %4409 = vmatprep.subr.mxu0 0.0
  %4410 = vmatpush2.msra.mxu0 0.0
  %4411 = vmatprep.subr.mxu0 0.0
  %4412 = vmatpush2.msra.mxu0 0.0
  %4413 = vmatprep.subr.mxu0 0.0
  %4414 = vmatpush2.msra.mxu0 0.0
  %4415 = vmatprep.subr.mxu0 0.0
  %4416 = vmatpush2.msra.mxu0 0.0
  %4417 = vmatprep.subr.mxu0 0.0
  %4418 = vmatpush2.msra.mxu0 0.0
  %4419 = vmatprep.subr.mxu0 0.0
  %4420 = vmatpush2.msra.mxu0 0.0
  %4421 = vmatprep.subr.mxu0 0.0
  %4422 = vmatpush2.msra.mxu0 0.0
  %4423 = vmatprep.subr.mxu0 0.0
  %4424 = vmatpush2.msra.mxu0 0.0
  %4425 = vmatprep.mubr.f32.mxu0 0.0
  %4426 = vmatmul.mubr.f32.gmra.mxu0 %v4287
  %v4427 = vpop.f32.mrf.mxu0
  %v4428 = vadd.f32 0.0, %v4427
  %v4429 = vpop.f32.mrf.mxu0
  %4430 = vdwg.mxu0
  %v4431 = vadd.f32 %v4360, %v4428
  %v4432 = vtanh.pop %v4431
  %4433 = vmatprep.subr.mxu0 0.0
  %4434 = vmatpush1.msra.mxu0 %v501
  %4435 = vmatprep.subr.mxu0 0.0
  %4436 = vmatpush1.msra.mxu0 %v500
  %4437 = vmatprep.subr.mxu0 0.0
  %4438 = vmatpush1.msra.mxu0 %v499
  %4439 = vmatprep.subr.mxu0 0.0
  %4440 = vmatpush1.msra.mxu0 %v498
  %4441 = vmatprep.subr.mxu0 0.0
  %4442 = vmatpush1.msra.mxu0 %v497
  %4443 = vmatprep.subr.mxu0 0.0
  %4444 = vmatpush1.msra.mxu0 %v496
  %4445 = vmatprep.subr.mxu0 0.0
  %4446 = vmatpush1.msra.mxu0 %v495
  %4447 = vmatprep.subr.mxu0 0.0
  %4448 = vmatpush1.msra.mxu0 %v494
  %4449 = vmatprep.subr.mxu0 0.0
  %4450 = vmatpush1.msra.mxu0 %v493
  %4451 = vmatprep.subr.mxu0 0.0
  %4452 = vmatpush1.msra.mxu0 %v492
  %4453 = vmatprep.subr.mxu0 0.0
  %4454 = vmatpush1.msra.mxu0 %v491
  %4455 = vmatprep.subr.mxu0 0.0
  %4456 = vmatpush1.msra.mxu0 %v490
  %4457 = vmatprep.subr.mxu0 0.0
  %4458 = vmatpush1.msra.mxu0 %v489
  %4459 = vmatprep.subr.mxu0 0.0
  %4460 = vmatpush1.msra.mxu0 %v488
  %4461 = vmatprep.subr.mxu0 0.0
  %4462 = vmatpush1.msra.mxu0 %v487
  %4463 = vmatprep.subr.mxu0 0.0
  %4464 = vmatpush1.msra.mxu0 %v486
  %4465 = vmatprep.subr.mxu0 0.0
  %4466 = vmatpush2.msra.mxu0 %v517
  %4467 = vmatprep.subr.mxu0 0.0
  %4468 = vmatpush2.msra.mxu0 %v516
  %4469 = vmatprep.subr.mxu0 0.0
  %4470 = vmatpush2.msra.mxu0 %v515
  %4471 = vmatprep.subr.mxu0 0.0
  %4472 = vmatpush2.msra.mxu0 %v514
  %4473 = vmatprep.subr.mxu0 0.0
  %4474 = vmatpush2.msra.mxu0 %v513
  %4475 = vmatprep.subr.mxu0 0.0
  %4476 = vmatpush2.msra.mxu0 %v512
  %4477 = vmatprep.subr.mxu0 0.0
  %4478 = vmatpush2.msra.mxu0 %v511
  %4479 = vmatprep.subr.mxu0 0.0
  %4480 = vmatpush2.msra.mxu0 %v510
  %4481 = vmatprep.subr.mxu0 0.0
  %4482 = vmatpush2.msra.mxu0 %v509
  %4483 = vmatprep.subr.mxu0 0.0
  %4484 = vmatpush2.msra.mxu0 %v508
  %4485 = vmatprep.subr.mxu0 0.0
  %4486 = vmatpush2.msra.mxu0 %v507
  %4487 = vmatprep.subr.mxu0 0.0
  %4488 = vmatpush2.msra.mxu0 %v506
  %4489 = vmatprep.subr.mxu0 0.0
  %4490 = vmatpush2.msra.mxu0 %v505
  %4491 = vmatprep.subr.mxu0 0.0
  %4492 = vmatpush2.msra.mxu0 %v504
  %4493 = vmatprep.subr.mxu0 0.0
  %4494 = vmatpush2.msra.mxu0 %v503
  %4495 = vmatprep.subr.mxu0 0.0
  %4496 = vmatpush2.msra.mxu0 %v502
  %4497 = vmatprep.mubr.f32.mxu0 %v4358
  %4498 = vmatmul.mubr.f32.gmra.mxu0 %v4432
  %v4499 = vpop.f32.mrf.mxu0
  %v4500 = vadd.f32 %v395, %v4499
  %v4501 = vpop.f32.mrf.mxu0
  %4502 = vdwg.mxu0
  %v4503 = vtanh.pop %v4500
  %v4504 = vld [vmem:[%s6] sm:$0xff]
  %v4505 = vld [vmem:[%s6 + $0x8] sm:$0xff]
  %v4506 = vld [vmem:[%s6 + $0x10] sm:$0xff]
  %v4507 = vld [vmem:[%s6 + $0x18] sm:$0xff]
  %v4508 = vld [vmem:[%s6 + $0x20] sm:$0xff]
  %v4509 = vld [vmem:[%s6 + $0x28] sm:$0xff]
  %v4510 = vld [vmem:[%s6 + $0x30] sm:$0xff]
  %v4511 = vld [vmem:[%s6 + $0x38] sm:$0xff]
  %v4512 = vld [vmem:[%s6 + $0x40] sm:$0xff]
  %v4513 = vld [vmem:[%s6 + $0x48] sm:$0xff]
  %v4514 = vld [vmem:[%s6 + $0x50] sm:$0xff]
  %v4515 = vld [vmem:[%s6 + $0x58] sm:$0xff]
  %v4516 = vld [vmem:[%s6 + $0x60] sm:$0xff]
  %v4517 = vld [vmem:[%s6 + $0x68] sm:$0xff]
  %v4518 = vld [vmem:[%s6 + $0x70] sm:$0xff]
  %v4519 = vld [vmem:[%s6 + $0x78] sm:$0xff]
  %v4520 = vld [vmem:[%s7] sm:$0x1]
  %v4522 = vlaneseq
  %v4523 = vshrl.u32 %v4522, 7
  %v4524 = vsub.s32 0, %v4523
  %v4525 = vrot.slane %v4520, %v4524
  %4527 = vmatprep.subr.mxu0 0.0
  %4528 = vmatpush1.msra.mxu0 %v4519
  %4529 = vmatprep.subr.mxu0 0.0
  %4530 = vmatpush1.msra.mxu0 %v4518
  %4531 = vmatprep.subr.mxu0 0.0
  %4532 = vmatpush1.msra.mxu0 %v4517
  %4533 = vmatprep.subr.mxu0 0.0
  %4534 = vmatpush1.msra.mxu0 %v4516
  %4535 = vmatprep.subr.mxu0 0.0
  %4536 = vmatpush1.msra.mxu0 %v4515
  %4537 = vmatprep.subr.mxu0 0.0
  %4538 = vmatpush1.msra.mxu0 %v4514
  %4539 = vmatprep.subr.mxu0 0.0
  %4540 = vmatpush1.msra.mxu0 %v4513
  %4541 = vmatprep.subr.mxu0 0.0
  %4542 = vmatpush1.msra.mxu0 %v4512
  %4543 = vmatprep.subr.mxu0 0.0
  %4544 = vmatpush1.msra.mxu0 %v4511
  %4545 = vmatprep.subr.mxu0 0.0
  %4546 = vmatpush1.msra.mxu0 %v4510
  %4547 = vmatprep.subr.mxu0 0.0
  %4548 = vmatpush1.msra.mxu0 %v4509
  %4549 = vmatprep.subr.mxu0 0.0
  %4550 = vmatpush1.msra.mxu0 %v4508
  %4551 = vmatprep.subr.mxu0 0.0
  %4552 = vmatpush1.msra.mxu0 %v4507
  %4553 = vmatprep.subr.mxu0 0.0
  %4554 = vmatpush1.msra.mxu0 %v4506
  %4555 = vmatprep.subr.mxu0 0.0
  %4556 = vmatpush1.msra.mxu0 %v4505
  %4557 = vmatprep.subr.mxu0 0.0
  %4558 = vmatpush1.msra.mxu0 %v4504
  %4559 = vmatprep.subr.mxu0 0.0
  %4560 = vmatpush2.msra.mxu0 0.0
  %4561 = vmatprep.subr.mxu0 0.0
  %4562 = vmatpush2.msra.mxu0 0.0
  %4563 = vmatprep.subr.mxu0 0.0
  %4564 = vmatpush2.msra.mxu0 0.0
  %4565 = vmatprep.subr.mxu0 0.0
  %4566 = vmatpush2.msra.mxu0 0.0
  %4567 = vmatprep.subr.mxu0 0.0
  %4568 = vmatpush2.msra.mxu0 0.0
  %4569 = vmatprep.subr.mxu0 0.0
  %4570 = vmatpush2.msra.mxu0 0.0
  %4571 = vmatprep.subr.mxu0 0.0
  %4572 = vmatpush2.msra.mxu0 0.0
  %4573 = vmatprep.subr.mxu0 0.0
  %4574 = vmatpush2.msra.mxu0 0.0
  %4575 = vmatprep.subr.mxu0 0.0
  %4576 = vmatpush2.msra.mxu0 0.0
  %4577 = vmatprep.subr.mxu0 0.0
  %4578 = vmatpush2.msra.mxu0 0.0
  %4579 = vmatprep.subr.mxu0 0.0
  %4580 = vmatpush2.msra.mxu0 0.0
  %4581 = vmatprep.subr.mxu0 0.0
  %4582 = vmatpush2.msra.mxu0 0.0
  %4583 = vmatprep.subr.mxu0 0.0
  %4584 = vmatpush2.msra.mxu0 0.0
  %4585 = vmatprep.subr.mxu0 0.0
  %4586 = vmatpush2.msra.mxu0 0.0
  %4587 = vmatprep.subr.mxu0 0.0
  %4588 = vmatpush2.msra.mxu0 0.0
  %4589 = vmatprep.subr.mxu0 0.0
  %4590 = vmatpush2.msra.mxu0 0.0
  %4591 = vmatprep.mubr.f32.mxu0 0.0
  %4592 = vmatmul.mubr.f32.gmra.mxu0 %v4503
  %v4593 = vpop.f32.mrf.mxu0
  %v4594 = vadd.f32 %v4525, %v4593
  %v4595 = vpop.f32.mrf.mxu0
  %4596 = vdwg.mxu0
  %4597 = vst [vmem:[%s8] sm:$0xff] %v4594
  // Predicated region
  $region34: #{rnn_model_forward.1} parent=0 // pred_check
    _
  $region35: #{rnn_model_forward.1} parent=0 // pred_check_branch
    %4599 = sbr.rel (0) target = $region37
  $region36: #{rnn_model_forward.1} parent=0 // pred_region
    _
  $region37: #{rnn_model_forward.1} parent=0 // pred_fallthru
    _
  // Predicated region
  $region38: #{rnn_model_forward.1} parent=0 // pred_check
    _
  $region39: #{rnn_model_forward.1} parent=0 // pred_check_branch
    %4601 = sbr.rel (0) target = $region41
  $region40: #{rnn_model_forward.1} parent=0 // pred_region
    _
  $region41: #{rnn_model_forward.1} parent=0 // pred_fallthru
    _

</llo_original>
